<compile_context>
chip_gen: v7x
topology: tpu7x:2x2x1
jax: 0.10.0
libtpu: 0.0.40
codegen_flags: <defaults>
</compile_context>

<pallas_src>
import numpy as np

import jax
import jax.numpy as jnp
from jax import lax
from jax.experimental import pallas as pl
from jax.experimental.pallas import tpu as pltpu

_UNROLL_T = 64   # fully unroll the in-kernel time loop for T <= this


def _round_up(x, m):
    return ((x + m - 1) // m) * m


def _largest_tile(total, unit, cap):
    """Largest multiple of `unit` that divides `total` and is <= cap."""
    best = unit
    t = unit
    while t <= min(cap, total):
        if total % t == 0:
            best = t
        t += unit
    return best


def _try_halve(tile, total, unit):
    half = tile // 2
    if half >= unit and half % unit == 0 and total % half == 0:
        return half
    return None


def make_lstm_vae_forward(vocab_size, seq_len, embed_size, hidden_size,
                          latent_size, genre_embed_size,
                          logits_dtype=jnp.bfloat16):
    V, T, E, H, L, G = (vocab_size, seq_len, embed_size, hidden_size,
                        latent_size, genre_embed_size)
    Hd = H // 2
    bf = jnp.bfloat16
    # NOTE: H should be a multiple of 128 so gates[:, k*H:(k+1)*H] slices stay
    # lane-aligned; B >= 8 keeps bf16 stores from being heavily masked.

    # ------------------------------------------------------------------ #
    # Fused kernel: encoder LSTM + VAE head + decoder LSTM, grid=(1,).    #
    # ------------------------------------------------------------------ #
    def vae_kernel(x_ref, eps_ref, genre_ref,
                   ewih_ref, ewhh_ref, eb_ref,
                   wml_ref, bml_ref,
                   wzl_ref, wzg_ref, bz_ref,
                   dwih_ref, dwhh_ref, db_ref,
                   mu_ref, logvar_ref, dech_ref):
        B = eps_ref.shape[0]

        def lstm_cell(gates, c):
            # PyTorch LSTM gate order: i, f, g, o
            i_g = jax.nn.sigmoid(gates[:, 0 * H:1 * H])
            f_g = jax.nn.sigmoid(gates[:, 1 * H:2 * H])
            g_g = jnp.tanh(gates[:, 2 * H:3 * H])
            o_g = jax.nn.sigmoid(gates[:, 3 * H:4 * H])
            c_new = f_g * c + i_g * g_g
            h_new = o_g * jnp.tanh(c_new)
            return h_new, c_new

        # ---- encoder --------------------------------------------------
        # Input projection for ALL timesteps in one big MXU matmul;
        # the (1,4H) bias broadcast is hoisted out of the time loop.
        ewhh = ewhh_ref[...]
        gx = (jnp.dot(x_ref[...], ewih_ref[...],
                      preferred_element_type=jnp.float32)
              + eb_ref[...])                                   # (T*B, 4H) f32

        h = jnp.zeros((B, H), jnp.float32)
        c = jnp.zeros((B, H), jnp.float32)

        def enc_step(gx_t, h, c):
            gates = gx_t + jnp.dot(h.astype(bf), ewhh,
                                   preferred_element_type=jnp.float32)
            return lstm_cell(gates, c)

        if T <= _UNROLL_T:
            for t in range(T):
                h, c = enc_step(gx[t * B:(t + 1) * B], h, c)
        else:
            def enc_body(t, hc):
                hh, cc = hc
                gx_t = lax.dynamic_slice(gx, (t * B, 0), (B, 4 * H))
                return enc_step(gx_t, hh, cc)
            h, c = lax.fori_loop(0, T, enc_body, (h, c))

        # ---- VAE head: fused fc_mu/fc_logvar, reparameterize, fc_z -----
        ml = (jnp.dot(h.astype(bf), wml_ref[...],
                      preferred_element_type=jnp.float32) + bml_ref[...])
        mu = ml[:, :L]
        logvar = ml[:, L:]
        mu_ref[...] = mu
        logvar_ref[...] = logvar
        std = jnp.exp(0.5 * logvar)
        z = mu + eps_ref[...] * std
        # fc_z split into latent / genre halves (avoids a lane concat)
        zdec = (jnp.dot(z.astype(bf), wzl_ref[...],
                        preferred_element_type=jnp.float32)
                + jnp.dot(genre_ref[...].astype(bf), wzg_ref[...],
                          preferred_element_type=jnp.float32)
                + bz_ref[...])                                 # (B, Hd) f32

        # ---- decoder ---------------------------------------------------
        # Decoder input is z repeated over time -> x@W_ih + b is constant.
        dwhh = dwhh_ref[...]
        zx = (jnp.dot(zdec.astype(bf), dwih_ref[...],
                      preferred_element_type=jnp.float32) + db_ref[...])

        h = jnp.zeros((B, H), jnp.float32)
        c = jnp.zeros((B, H), jnp.float32)

        def dec_step(h, c):
            gates = zx + jnp.dot(h.astype(bf), dwhh,
                                 preferred_element_type=jnp.float32)
            return lstm_cell(gates, c)

        if T <= _UNROLL_T:
            for t in range(T):
                h, c = dec_step(h, c)
                dech_ref[t] = h.astype(dech_ref.dtype)
        else:
            def dec_body(t, hc):
                hh, cc = hc
                hh, cc = dec_step(hh, cc)
                dech_ref[t] = hh.astype(dech_ref.dtype)
                return (hh, cc)
            lax.fori_loop(0, T, dec_body, (h, c))

    # ------------------------------------------------------------------ #
    # fc_out projection, tiled over rows and vocab (both "parallel").     #
    # ------------------------------------------------------------------ #
    def fc_out_kernel(x_ref, w_ref, b_ref, o_ref):
        o_ref[...] = (jnp.dot(x_ref[...], w_ref[...],
                              preferred_element_type=jnp.float32)
                      + b_ref[...]).astype(o_ref.dtype)

    def forward(params, tokens, genre, eps):
        B = tokens.shape[0]

        # Embedding gather in glue, already flattened to (T*B, E) so the
        # in-kernel input projection is a single 2-D matmul.
        # TODO(synk): fuse the gather into the kernel via scalar-prefetched
        # token ids + a pl.Element row-gather BlockSpec when T*B*E is large.
        emb = params["embedding"].astype(bf)                     # (V, E)
        x_emb = jnp.take(emb, tokens.T, axis=0).reshape(T * B, E)  # bf16

        enc_wih = params["enc_wih"].astype(bf)                   # (E, 4H)
        enc_whh = params["enc_whh"].astype(bf)                   # (H, 4H)
        enc_b = params["enc_b"].reshape(1, 4 * H).astype(jnp.float32)
        w_ml = params["w_mulogvar"].astype(bf)                   # (H, 2L)
        b_ml = params["b_mulogvar"].reshape(1, 2 * L).astype(jnp.float32)
        wz_lat = params["wz_lat"].astype(bf)                     # (L, Hd)
        wz_gen = params["wz_gen"].astype(bf)                     # (G, Hd)
        b_z = params["b_z"].reshape(1, Hd).astype(jnp.float32)
        dec_wih = params["dec_wih"].astype(bf)                   # (Hd, 4H)
        dec_whh = params["dec_whh"].astype(bf)                   # (H, 4H)
        dec_b = params["dec_b"].reshape(1, 4 * H).astype(jnp.float32)
        w_out = params["w_out"].astype(bf)                       # (H, V)
        b_out = params["b_out"].reshape(1, V).astype(jnp.float32)

        # grid=(1,): every block is the full array and stays VMEM-resident
        # for the whole fused recurrence.
        # TODO(synk): for large H on v7x (64 MiB VMEM) mark the weight specs
        # pipeline_mode=pl.Buffered(1) and raise vmem_limit_bytes.
        def full(shape):
            nd = len(shape)
            return pl.BlockSpec(shape, lambda i, _n=nd: (0,) * _n)

        mu, logvar, dec_h = pl.pallas_call(
            vae_kernel,
            grid=(1,),
            in_specs=[
                full((T * B, E)),                  # x_emb (flattened)
                full((B, L)),                      # eps
                full((B, G)),                      # genre
                full((E, 4 * H)), full((H, 4 * H)), full((1, 4 * H)),
                full((H, 2 * L)), full((1, 2 * L)),
                full((L, Hd)), full((G, Hd)), full((1, Hd)),
                full((Hd, 4 * H)), full((H, 4 * H)), full((1, 4 * H)),
            ],
            out_specs=[full((B, L)), full((B, L)), full((T, B, H))],
            out_shape=[
                jax.ShapeDtypeStruct((B, L), jnp.float32),
                jax.ShapeDtypeStruct((B, L), jnp.float32),
                jax.ShapeDtypeStruct((T, B, H), jnp.bfloat16),
            ],
            compiler_params=pltpu.CompilerParams(
                dimension_semantics=("arbitrary",)),
        )(x_emb, eps, genre,
          enc_wih, enc_whh, enc_b,
          w_ml, b_ml,
          wz_lat, wz_gen, b_z,
          dec_wih, dec_whh, dec_b)

        # Transpose the (small, H-wide) hidden states BEFORE fc_out so the
        # logits -- the dominant HBM stream -- are written directly in
        # (B, T, V) order.  This replaces the old post-hoc logits transpose.
        x_rows = jnp.transpose(dec_h, (1, 0, 2)).reshape(B * T, H)

        R = B * T
        R_pad = _round_up(R, 8)
        V_pad = _round_up(V, 128)
        rM = _largest_tile(R_pad, 8, 512)      # rows per tile (<= 512)
        vN = _largest_tile(V_pad, 128, 1024)   # lane-dense vocab tile
        # Give v7x's two TensorCores >= 2 parallel tiles when shapes allow.
        if (R_pad // rM) * (V_pad // vN) < 2:
            nv = _try_halve(vN, V_pad, 128)
            if nv is not None:
                vN = nv
            else:
                nr = _try_halve(rM, R_pad, 8)
                if nr is not None:
                    rM = nr

        if R_pad != R:
            x_rows = jnp.pad(x_rows, ((0, R_pad - R), (0, 0)))
        w_out_p = w_out if V_pad == V else jnp.pad(w_out, ((0, 0), (0, V_pad - V)))
        b_out_p = b_out if V_pad == V else jnp.pad(b_out, ((0, 0), (0, V_pad - V)))

        logits = pl.pallas_call(
            fc_out_kernel,
            grid=(R_pad // rM, V_pad // vN),
            in_specs=[pl.BlockSpec((rM, H), lambda i, j: (i, 0)),
                      pl.BlockSpec((H, vN), lambda i, j: (0, j)),
                      pl.BlockSpec((1, vN), lambda i, j: (0, j))],
            out_specs=pl.BlockSpec((rM, vN), lambda i, j: (i, j)),
            out_shape=jax.ShapeDtypeStruct((R_pad, V_pad), logits_dtype),
            compiler_params=pltpu.CompilerParams(
                dimension_semantics=("parallel", "parallel")),
        )(x_rows, w_out_p, b_out_p)

        if R_pad != R or V_pad != V:
            logits = logits[:R, :V]
        op = logits.reshape(B, T, V)
        return op, mu, logvar

    return jax.jit(forward)


# ---------------------------------------------------------------------- #
# Parameter init (weights stored pre-transposed: (in_features, out)).     #
# ---------------------------------------------------------------------- #
def init_params(key, vocab_size, embed_size, hidden_size, latent_size,
                genre_embed_size):
    V, E, H, L, G = vocab_size, embed_size, hidden_size, latent_size, genre_embed_size
    Hd = H // 2
    ks = list(jax.random.split(key, 14))

    def dense(k, fan_in, shape):
        return jax.random.normal(k, shape, jnp.float32) / np.sqrt(fan_in)

    return {
        "embedding": 0.1 * jax.random.normal(ks[0], (V, E), jnp.float32),
        # encoder LSTM (gate order i, f, g, o; fused bias = b_ih + b_hh)
        "enc_wih": dense(ks[1], E, (E, 4 * H)),
        "enc_whh": dense(ks[2], H, (H, 4 * H)),
        "enc_b": dense(ks[3], H, (4 * H,)),
        # fused fc_mu / fc_logvar: columns [0:L] = mu, [L:2L] = logvar
        "w_mulogvar": dense(ks[4], H, (H, 2 * L)),
        "b_mulogvar": dense(ks[5], H, (2 * L,)),
        # fc_z split into latent / genre halves
        "wz_lat": dense(ks[6], L + G, (L, Hd)),
        "wz_gen": dense(ks[7], L + G, (G, Hd)),
        "b_z": dense(ks[8], L + G, (Hd,)),
        # decoder LSTM
        "dec_wih": dense(ks[9], Hd, (Hd, 4 * H)),
        "dec_whh": dense(ks[10], H, (H, 4 * H)),
        "dec_b": dense(ks[11], H, (4 * H,)),
        # fc_out
        "w_out": dense(ks[12], H, (H, V)),
        "b_out": dense(ks[13], H, (V,)),
    }


# ---------------------------------------------------------------------- #
# Pure-JAX reference with the same bf16 matmul casting (sanity check).    #
# ---------------------------------------------------------------------- #
def reference_forward(params, tokens, genre, eps, *, seq_len, hidden_size,
                      latent_size, vocab_size):
    T, H, L, V = seq_len, hidden_size, latent_size, vocab_size
    Hd = H // 2
    B = tokens.shape[0]
    bf = jnp.bfloat16

    def lstm_step(x_t, h, c, wih, whh, b):
        gates = (jnp.dot(x_t, wih, preferred_element_type=jnp.float32)
                 + jnp.dot(h.astype(bf), whh, preferred_element_type=jnp.float32)
                 + b)
        i_g = jax.nn.sigmoid(gates[:, 0 * H:1 * H])
        f_g = jax.nn.sigmoid(gates[:, 1 * H:2 * H])
        g_g = jnp.tanh(gates[:, 2 * H:3 * H])
        o_g = jax.nn.sigmoid(gates[:, 3 * H:4 * H])
        c = f_g * c + i_g * g_g
        h = o_g * jnp.tanh(c)
        return h, c

    x_emb = jnp.take(params["embedding"].astype(bf), tokens.T, axis=0)  # (T,B,E)
    enc_wih = params["enc_wih"].astype(bf)
    enc_whh = params["enc_whh"].astype(bf)
    enc_b = params["enc_b"].reshape(1, 4 * H)
    h = jnp.zeros((B, H), jnp.float32)
    c = jnp.zeros((B, H), jnp.float32)
    for t in range(T):
        h, c = lstm_step(x_emb[t], h, c, enc_wih, enc_whh, enc_b)

    ml = (jnp.dot(h.astype(bf), params["w_mulogvar"].astype(bf),
                  preferred_element_type=jnp.float32)
          + params["b_mulogvar"].reshape(1, 2 * L))
    mu, logvar = ml[:, :L], ml[:, L:]
    z = mu + eps * jnp.exp(0.5 * logvar)
    z_dec = (jnp.dot(z.astype(bf), params["wz_lat"].astype(bf),
                     preferred_element_type=jnp.float32)
             + jnp.dot(genre.astype(bf), params["wz_gen"].astype(bf),
                       preferred_element_type=jnp.float32)
             + params["b_z"].reshape(1, Hd))

    z_dec_b = z_dec.astype(bf)
    dec_wih = params["dec_wih"].astype(bf)
    dec_whh = params["dec_whh"].astype(bf)
    dec_b = params["dec_b"].reshape(1, 4 * H)
    h = jnp.zeros((B, H), jnp.float32)
    c = jnp.zeros((B, H), jnp.float32)
    hs = []
    for t in range(T):
        h, c = lstm_step(z_dec_b, h, c, dec_wih, dec_whh, dec_b)
        hs.append(h.astype(bf))
    hs = jnp.stack(hs, axis=0).reshape(T * B, H)
    logits = (jnp.dot(hs, params["w_out"].astype(bf),
                      preferred_element_type=jnp.float32)
              + params["b_out"].reshape(1, V))
    op = jnp.transpose(logits.reshape(T, B, V), (1, 0, 2))
    return op, mu, logvar


if __name__ == "__main__":
    vocab_size = 256
    seq_len = 8
    embed_size = 128
    hidden_size = 128
    latent_size = 32
    genre_embed_size = 16
    batch = 8

    key = jax.random.PRNGKey(0)
    k_param, k_tok, k_genre, k_eps = jax.random.split(key, 4)
    params = init_params(k_param, vocab_size, embed_size, hidden_size,
                         latent_size, genre_embed_size)
    tokens = jax.random.randint(k_tok, (batch, seq_len), 0, vocab_size,
                                dtype=jnp.int32)
    genre = jax.random.normal(k_genre, (batch, genre_embed_size), jnp.float32)
    eps = jax.random.normal(k_eps, (batch, latent_size), jnp.float32)

    fwd = make_lstm_vae_forward(vocab_size, seq_len, embed_size, hidden_size,
                                latent_size, genre_embed_size)
    op, mu, logvar = fwd(params, tokens, genre, eps)
    jax.block_until_ready((op, mu, logvar))

    # Sanity check against a pure-JAX reference using the same bf16 casting.
    op_r, mu_r, lv_r = reference_forward(
        params, tokens, genre, eps, seq_len=seq_len, hidden_size=hidden_size,
        latent_size=latent_size, vocab_size=vocab_size)

    def maxdiff(a, b):
        return float(jnp.max(jnp.abs(a.astype(jnp.float32) - b.astype(jnp.float32))))

    d_op, d_mu, d_lv = maxdiff(op, op_r), maxdiff(mu, mu_r), maxdiff(logvar, lv_r)
    assert np.isfinite(d_op) and np.isfinite(d_mu) and np.isfinite(d_lv)
    assert d_op < 5e-2 and d_mu < 5e-2 and d_lv < 5e-2, (d_op, d_mu, d_lv)
    print("KERNEL_OK")
</pallas_src>

<mosaic_0001>
module attributes {stable_mosaic.version = 11 : i64} {
  func.func @fc_out_kernel(%arg0: i32, %arg1: i32, %arg2: memref<64x128xbf16, #tpu.memory_space<vmem>>, %arg3: memref<128x128xbf16, #tpu.memory_space<vmem>>, %arg4: memref<1x128xf32, #tpu.memory_space<vmem>>, %arg5: memref<64x128xbf16, #tpu.memory_space<vmem>>) attributes {dimension_semantics = [#tpu.dimension_semantics<parallel>, #tpu.dimension_semantics<parallel>], iteration_bounds = array<i64: 1, 2>, scalar_prefetch = 0 : i64, scratch_operands = 0 : i64, tpu.core_type = #tpu.core_type<tc>, window_params = [{transform_indices = @transform_0, window_bounds = array<i64: 64, 128>}, {transform_indices = @transform_1, window_bounds = array<i64: 128, 128>}, {transform_indices = @transform_2, window_bounds = array<i64: 1, 128>}, {transform_indices = @transform_3, window_bounds = array<i64: 64, 128>}]} {
    %c0 = arith.constant 0 : index
    %c0_0 = arith.constant 0 : index
    %0 = vector.load %arg2[%c0, %c0_0] : memref<64x128xbf16, #tpu.memory_space<vmem>>, vector<64x128xbf16>
    %c0_1 = arith.constant 0 : index
    %c0_2 = arith.constant 0 : index
    %1 = vector.load %arg3[%c0_1, %c0_2] : memref<128x128xbf16, #tpu.memory_space<vmem>>, vector<128x128xbf16>
    %cst = arith.constant dense<0.000000e+00> : vector<64x128xf32>
    %2 = tpu.matmul %0, %1, %cst {dimension_numbers = #tpu.dot_dimension_numbers<[1], [0], [0], [1], [0, 0, 1, 1], [], []>} : vector<64x128xbf16>, vector<128x128xbf16>, vector<64x128xf32> -> vector<64x128xf32>
    %c0_3 = arith.constant 0 : index
    %c0_4 = arith.constant 0 : index
    %3 = vector.load %arg4[%c0_3, %c0_4] : memref<1x128xf32, #tpu.memory_space<vmem>>, vector<1x128xf32>
    %4 = vector.broadcast %3 : vector<1x128xf32> to vector<64x128xf32>
    %5 = arith.addf %2, %4 : vector<64x128xf32>
    %6 = arith.truncf %5 : vector<64x128xf32> to vector<64x128xbf16>
    %c0_5 = arith.constant 0 : index
    %c0_6 = arith.constant 0 : index
    %7 = vector.load %arg5[%c0_5, %c0_6] : memref<64x128xbf16, #tpu.memory_space<vmem>>, vector<64x128xbf16>
    tpu.vector_store %arg5[%c0_5, %c0_6], %6 {strides = array<i32>} : memref<64x128xbf16, #tpu.memory_space<vmem>>, vector<64x128xbf16>,
    return
  }
  func.func @transform_0(%arg0: i32, %arg1: i32) -> (i32, i32) {
    %c0_i32 = arith.constant 0 : i32
    %c0_i32_0 = arith.constant 0 : i32
    return %arg0, %c0_i32 : i32, i32
  }
  func.func @transform_1(%arg0: i32, %arg1: i32) -> (i32, i32) {
    %c0_i32 = arith.constant 0 : i32
    %c0_i32_0 = arith.constant 0 : i32
    return %c0_i32, %arg1 : i32, i32
  }
  func.func @transform_2(%arg0: i32, %arg1: i32) -> (i32, i32) {
    %c0_i32 = arith.constant 0 : i32
    %c0_i32_0 = arith.constant 0 : i32
    return %c0_i32, %arg1 : i32, i32
  }
  func.func @transform_3(%arg0: i32, %arg1: i32) -> (i32, i32) {
    %c0_i32 = arith.constant 0 : i32
    return %arg0, %arg1 : i32, i32
  }
}

module attributes {stable_mosaic.version = 11 : i64} {
  func.func @vae_kernel(%arg0: i32, %arg1: memref<64x128xbf16, #tpu.memory_space<vmem>>, %arg2: memref<8x32xf32, #tpu.memory_space<vmem>>, %arg3: memref<8x16xf32, #tpu.memory_space<vmem>>, %arg4: memref<128x512xbf16, #tpu.memory_space<vmem>>, %arg5: memref<128x512xbf16, #tpu.memory_space<vmem>>, %arg6: memref<1x512xf32, #tpu.memory_space<vmem>>, %arg7: memref<128x64xbf16, #tpu.memory_space<vmem>>, %arg8: memref<1x64xf32, #tpu.memory_space<vmem>>, %arg9: memref<32x64xbf16, #tpu.memory_space<vmem>>, %arg10: memref<16x64xbf16, #tpu.memory_space<vmem>>, %arg11: memref<1x64xf32, #tpu.memory_space<vmem>>, %arg12: memref<64x512xbf16, #tpu.memory_space<vmem>>, %arg13: memref<128x512xbf16, #tpu.memory_space<vmem>>, %arg14: memref<1x512xf32, #tpu.memory_space<vmem>>, %arg15: memref<8x32xf32, #tpu.memory_space<vmem>>, %arg16: memref<8x32xf32, #tpu.memory_space<vmem>>, %arg17: memref<8x8x128xbf16, #tpu.memory_space<vmem>>) attributes {dimension_semantics = [#tpu.dimension_semantics<arbitrary>], iteration_bounds = array<i64: 1>, scalar_prefetch = 0 : i64, scratch_operands = 0 : i64, tpu.core_type = #tpu.core_type<tc>, window_params = [{pipeline_mode = #tpu.pipeline_mode<synchronous>, transform_indices = @transform_0, window_bounds = array<i64: 64, 128>}, {pipeline_mode = #tpu.pipeline_mode<synchronous>, transform_indices = @transform_1, window_bounds = array<i64: 8, 32>}, {pipeline_mode = #tpu.pipeline_mode<synchronous>, transform_indices = @transform_2, window_bounds = array<i64: 8, 16>}, {pipeline_mode = #tpu.pipeline_mode<synchronous>, transform_indices = @transform_3, window_bounds = array<i64: 128, 512>}, {pipeline_mode = #tpu.pipeline_mode<synchronous>, transform_indices = @transform_4, window_bounds = array<i64: 128, 512>}, {pipeline_mode = #tpu.pipeline_mode<synchronous>, transform_indices = @transform_5, window_bounds = array<i64: 1, 512>}, {pipeline_mode = #tpu.pipeline_mode<synchronous>, transform_indices = @transform_6, window_bounds = array<i64: 128, 64>}, {pipeline_mode = #tpu.pipeline_mode<synchronous>, transform_indices = @transform_7, window_bounds = array<i64: 1, 64>}, {pipeline_mode = #tpu.pipeline_mode<synchronous>, transform_indices = @transform_8, window_bounds = array<i64: 32, 64>}, {pipeline_mode = #tpu.pipeline_mode<synchronous>, transform_indices = @transform_9, window_bounds = array<i64: 16, 64>}, {pipeline_mode = #tpu.pipeline_mode<synchronous>, transform_indices = @transform_10, window_bounds = array<i64: 1, 64>}, {pipeline_mode = #tpu.pipeline_mode<synchronous>, transform_indices = @transform_11, window_bounds = array<i64: 64, 512>}, {pipeline_mode = #tpu.pipeline_mode<synchronous>, transform_indices = @transform_12, window_bounds = array<i64: 128, 512>}, {pipeline_mode = #tpu.pipeline_mode<synchronous>, transform_indices = @transform_13, window_bounds = array<i64: 1, 512>}, {pipeline_mode = #tpu.pipeline_mode<synchronous>, transform_indices = @transform_14, window_bounds = array<i64: 8, 32>}, {pipeline_mode = #tpu.pipeline_mode<synchronous>, transform_indices = @transform_15, window_bounds = array<i64: 8, 32>}, {pipeline_mode = #tpu.pipeline_mode<synchronous>, transform_indices = @transform_16, window_bounds = array<i64: 8, 8, 128>}]} {
    %c0 = arith.constant 0 : index
    %c0_0 = arith.constant 0 : index
    %0 = vector.load %arg5[%c0, %c0_0] : memref<128x512xbf16, #tpu.memory_space<vmem>>, vector<128x512xbf16>
    %c0_1 = arith.constant 0 : index
    %c0_2 = arith.constant 0 : index
    %1 = vector.load %arg1[%c0_1, %c0_2] : memref<64x128xbf16, #tpu.memory_space<vmem>>, vector<64x128xbf16>
    %c0_3 = arith.constant 0 : index
    %c0_4 = arith.constant 0 : index
    %2 = vector.load %arg4[%c0_3, %c0_4] : memref<128x512xbf16, #tpu.memory_space<vmem>>, vector<128x512xbf16>
    %cst = arith.constant dense<0.000000e+00> : vector<64x512xf32>
    %3 = tpu.matmul %1, %2, %cst {dimension_numbers = #tpu.dot_dimension_numbers<[1], [0], [0], [1], [0, 0, 1, 1], [], []>} : vector<64x128xbf16>, vector<128x512xbf16>, vector<64x512xf32> -> vector<64x512xf32>
    %c0_5 = arith.constant 0 : index
    %c0_6 = arith.constant 0 : index
    %4 = vector.load %arg6[%c0_5, %c0_6] : memref<1x512xf32, #tpu.memory_space<vmem>>, vector<1x512xf32>
    %5 = vector.broadcast %4 : vector<1x512xf32> to vector<64x512xf32>
    %6 = arith.addf %3, %5 : vector<64x512xf32>
    %cst_7 = arith.constant 0.000000e+00 : f32
    %7 = vector.broadcast %cst_7 : f32 to vector<8x128xf32>
    %cst_8 = arith.constant 0.000000e+00 : f32
    %8 = vector.broadcast %cst_8 : f32 to vector<8x128xf32>
    %9 = vector.extract_strided_slice %6 {offsets = [0, 0], sizes = [8, 512], strides = [1, 1]} : vector<64x512xf32> to vector<8x512xf32>
    %10 = arith.truncf %7 : vector<8x128xf32> to vector<8x128xbf16>
    %cst_9 = arith.constant dense<0.000000e+00> : vector<8x512xf32>
    %11 = tpu.matmul %10, %0, %cst_9 {dimension_numbers = #tpu.dot_dimension_numbers<[1], [0], [0], [1], [0, 0, 1, 1], [], []>} : vector<8x128xbf16>, vector<128x512xbf16>, vector<8x512xf32> -> vector<8x512xf32>
    %12 = arith.addf %9, %11 : vector<8x512xf32>
    %13 = vector.extract_strided_slice %12 {offsets = [0, 0], sizes = [8, 128], strides = [1, 1]} : vector<8x512xf32> to vector<8x128xf32>
    %14 = arith.negf %13 : vector<8x128xf32>
    %15 = math.exp %14 : vector<8x128xf32>
    %cst_10 = arith.constant 1.000000e+00 : f32
    %16 = vector.broadcast %cst_10 : f32 to vector<8x128xf32>
    %17 = arith.addf %16, %15 : vector<8x128xf32>
    %18 = arith.divf %16, %17 : vector<8x128xf32>
    %19 = vector.extract_strided_slice %12 {offsets = [0, 128], sizes = [8, 128], strides = [1, 1]} : vector<8x512xf32> to vector<8x128xf32>
    %20 = arith.negf %19 : vector<8x128xf32>
    %21 = math.exp %20 : vector<8x128xf32>
    %cst_11 = arith.constant 1.000000e+00 : f32
    %22 = vector.broadcast %cst_11 : f32 to vector<8x128xf32>
    %23 = arith.addf %22, %21 : vector<8x128xf32>
    %24 = arith.divf %22, %23 : vector<8x128xf32>
    %25 = vector.extract_strided_slice %12 {offsets = [0, 256], sizes = [8, 128], strides = [1, 1]} : vector<8x512xf32> to vector<8x128xf32>
    %26 = math.tanh %25 : vector<8x128xf32>
    %27 = vector.extract_strided_slice %12 {offsets = [0, 384], sizes = [8, 128], strides = [1, 1]} : vector<8x512xf32> to vector<8x128xf32>
    %28 = arith.negf %27 : vector<8x128xf32>
    %29 = math.exp %28 : vector<8x128xf32>
    %cst_12 = arith.constant 1.000000e+00 : f32
    %30 = vector.broadcast %cst_12 : f32 to vector<8x128xf32>
    %31 = arith.addf %30, %29 : vector<8x128xf32>
    %32 = arith.divf %30, %31 : vector<8x128xf32>
    %33 = arith.mulf %24, %8 : vector<8x128xf32>
    %34 = arith.mulf %18, %26 : vector<8x128xf32>
    %35 = arith.addf %33, %34 : vector<8x128xf32>
    %36 = math.tanh %35 : vector<8x128xf32>
    %37 = arith.mulf %32, %36 : vector<8x128xf32>
    %38 = vector.extract_strided_slice %6 {offsets = [8, 0], sizes = [8, 512], strides = [1, 1]} : vector<64x512xf32> to vector<8x512xf32>
    %39 = arith.truncf %37 : vector<8x128xf32> to vector<8x128xbf16>
    %cst_13 = arith.constant dense<0.000000e+00> : vector<8x512xf32>
    %40 = tpu.matmul %39, %0, %cst_13 {dimension_numbers = #tpu.dot_dimension_numbers<[1], [0], [0], [1], [0, 0, 1, 1], [], []>} : vector<8x128xbf16>, vector<128x512xbf16>, vector<8x512xf32> -> vector<8x512xf32>
    %41 = arith.addf %38, %40 : vector<8x512xf32>
    %42 = vector.extract_strided_slice %41 {offsets = [0, 0], sizes = [8, 128], strides = [1, 1]} : vector<8x512xf32> to vector<8x128xf32>
    %43 = arith.negf %42 : vector<8x128xf32>
    %44 = math.exp %43 : vector<8x128xf32>
    %cst_14 = arith.constant 1.000000e+00 : f32
    %45 = vector.broadcast %cst_14 : f32 to vector<8x128xf32>
    %46 = arith.addf %45, %44 : vector<8x128xf32>
    %47 = arith.divf %45, %46 : vector<8x128xf32>
    %48 = vector.extract_strided_slice %41 {offsets = [0, 128], sizes = [8, 128], strides = [1, 1]} : vector<8x512xf32> to vector<8x128xf32>
    %49 = arith.negf %48 : vector<8x128xf32>
    %50 = math.exp %49 : vector<8x128xf32>
    %cst_15 = arith.constant 1.000000e+00 : f32
    %51 = vector.broadcast %cst_15 : f32 to vector<8x128xf32>
    %52 = arith.addf %51, %50 : vector<8x128xf32>
    %53 = arith.divf %51, %52 : vector<8x128xf32>
    %54 = vector.extract_strided_slice %41 {offsets = [0, 256], sizes = [8, 128], strides = [1, 1]} : vector<8x512xf32> to vector<8x128xf32>
    %55 = math.tanh %54 : vector<8x128xf32>
    %56 = vector.extract_strided_slice %41 {offsets = [0, 384], sizes = [8, 128], strides = [1, 1]} : vector<8x512xf32> to vector<8x128xf32>
    %57 = arith.negf %56 : vector<8x128xf32>
    %58 = math.exp %57 : vector<8x128xf32>
    %cst_16 = arith.constant 1.000000e+00 : f32
    %59 = vector.broadcast %cst_16 : f32 to vector<8x128xf32>
    %60 = arith.addf %59, %58 : vector<8x128xf32>
    %61 = arith.divf %59, %60 : vector<8x128xf32>
    %62 = arith.mulf %53, %35 : vector<8x128xf32>
    %63 = arith.mulf %47, %55 : vector<8x128xf32>
    %64 = arith.addf %62, %63 : vector<8x128xf32>
    %65 = math.tanh %64 : vector<8x128xf32>
    %66 = arith.mulf %61, %65 : vector<8x128xf32>
    %67 = vector.extract_strided_slice %6 {offsets = [16, 0], sizes = [8, 512], strides = [1, 1]} : vector<64x512xf32> to vector<8x512xf32>
    %68 = arith.truncf %66 : vector<8x128xf32> to vector<8x128xbf16>
    %cst_17 = arith.constant dense<0.000000e+00> : vector<8x512xf32>
    %69 = tpu.matmul %68, %0, %cst_17 {dimension_numbers = #tpu.dot_dimension_numbers<[1], [0], [0], [1], [0, 0, 1, 1], [], []>} : vector<8x128xbf16>, vector<128x512xbf16>, vector<8x512xf32> -> vector<8x512xf32>
    %70 = arith.addf %67, %69 : vector<8x512xf32>
    %71 = vector.extract_strided_slice %70 {offsets = [0, 0], sizes = [8, 128], strides = [1, 1]} : vector<8x512xf32> to vector<8x128xf32>
    %72 = arith.negf %71 : vector<8x128xf32>
    %73 = math.exp %72 : vector<8x128xf32>
    %cst_18 = arith.constant 1.000000e+00 : f32
    %74 = vector.broadcast %cst_18 : f32 to vector<8x128xf32>
    %75 = arith.addf %74, %73 : vector<8x128xf32>
    %76 = arith.divf %74, %75 : vector<8x128xf32>
    %77 = vector.extract_strided_slice %70 {offsets = [0, 128], sizes = [8, 128], strides = [1, 1]} : vector<8x512xf32> to vector<8x128xf32>
    %78 = arith.negf %77 : vector<8x128xf32>
    %79 = math.exp %78 : vector<8x128xf32>
    %cst_19 = arith.constant 1.000000e+00 : f32
    %80 = vector.broadcast %cst_19 : f32 to vector<8x128xf32>
    %81 = arith.addf %80, %79 : vector<8x128xf32>
    %82 = arith.divf %80, %81 : vector<8x128xf32>
    %83 = vector.extract_strided_slice %70 {offsets = [0, 256], sizes = [8, 128], strides = [1, 1]} : vector<8x512xf32> to vector<8x128xf32>
    %84 = math.tanh %83 : vector<8x128xf32>
    %85 = vector.extract_strided_slice %70 {offsets = [0, 384], sizes = [8, 128], strides = [1, 1]} : vector<8x512xf32> to vector<8x128xf32>
    %86 = arith.negf %85 : vector<8x128xf32>
    %87 = math.exp %86 : vector<8x128xf32>
    %cst_20 = arith.constant 1.000000e+00 : f32
    %88 = vector.broadcast %cst_20 : f32 to vector<8x128xf32>
    %89 = arith.addf %88, %87 : vector<8x128xf32>
    %90 = arith.divf %88, %89 : vector<8x128xf32>
    %91 = arith.mulf %82, %64 : vector<8x128xf32>
    %92 = arith.mulf %76, %84 : vector<8x128xf32>
    %93 = arith.addf %91, %92 : vector<8x128xf32>
    %94 = math.tanh %93 : vector<8x128xf32>
    %95 = arith.mulf %90, %94 : vector<8x128xf32>
    %96 = vector.extract_strided_slice %6 {offsets = [24, 0], sizes = [8, 512], strides = [1, 1]} : vector<64x512xf32> to vector<8x512xf32>
    %97 = arith.truncf %95 : vector<8x128xf32> to vector<8x128xbf16>
    %cst_21 = arith.constant dense<0.000000e+00> : vector<8x512xf32>
    %98 = tpu.matmul %97, %0, %cst_21 {dimension_numbers = #tpu.dot_dimension_numbers<[1], [0], [0], [1], [0, 0, 1, 1], [], []>} : vector<8x128xbf16>, vector<128x512xbf16>, vector<8x512xf32> -> vector<8x512xf32>
    %99 = arith.addf %96, %98 : vector<8x512xf32>
    %100 = vector.extract_strided_slice %99 {offsets = [0, 0], sizes = [8, 128], strides = [1, 1]} : vector<8x512xf32> to vector<8x128xf32>
    %101 = arith.negf %100 : vector<8x128xf32>
    %102 = math.exp %101 : vector<8x128xf32>
    %cst_22 = arith.constant 1.000000e+00 : f32
    %103 = vector.broadcast %cst_22 : f32 to vector<8x128xf32>
    %104 = arith.addf %103, %102 : vector<8x128xf32>
    %105 = arith.divf %103, %104 : vector<8x128xf32>
    %106 = vector.extract_strided_slice %99 {offsets = [0, 128], sizes = [8, 128], strides = [1, 1]} : vector<8x512xf32> to vector<8x128xf32>
    %107 = arith.negf %106 : vector<8x128xf32>
    %108 = math.exp %107 : vector<8x128xf32>
    %cst_23 = arith.constant 1.000000e+00 : f32
    %109 = vector.broadcast %cst_23 : f32 to vector<8x128xf32>
    %110 = arith.addf %109, %108 : vector<8x128xf32>
    %111 = arith.divf %109, %110 : vector<8x128xf32>
    %112 = vector.extract_strided_slice %99 {offsets = [0, 256], sizes = [8, 128], strides = [1, 1]} : vector<8x512xf32> to vector<8x128xf32>
    %113 = math.tanh %112 : vector<8x128xf32>
    %114 = vector.extract_strided_slice %99 {offsets = [0, 384], sizes = [8, 128], strides = [1, 1]} : vector<8x512xf32> to vector<8x128xf32>
    %115 = arith.negf %114 : vector<8x128xf32>
    %116 = math.exp %115 : vector<8x128xf32>
    %cst_24 = arith.constant 1.000000e+00 : f32
    %117 = vector.broadcast %cst_24 : f32 to vector<8x128xf32>
    %118 = arith.addf %117, %116 : vector<8x128xf32>
    %119 = arith.divf %117, %118 : vector<8x128xf32>
    %120 = arith.mulf %111, %93 : vector<8x128xf32>
    %121 = arith.mulf %105, %113 : vector<8x128xf32>
    %122 = arith.addf %120, %121 : vector<8x128xf32>
    %123 = math.tanh %122 : vector<8x128xf32>
    %124 = arith.mulf %119, %123 : vector<8x128xf32>
    %125 = vector.extract_strided_slice %6 {offsets = [32, 0], sizes = [8, 512], strides = [1, 1]} : vector<64x512xf32> to vector<8x512xf32>
    %126 = arith.truncf %124 : vector<8x128xf32> to vector<8x128xbf16>
    %cst_25 = arith.constant dense<0.000000e+00> : vector<8x512xf32>
    %127 = tpu.matmul %126, %0, %cst_25 {dimension_numbers = #tpu.dot_dimension_numbers<[1], [0], [0], [1], [0, 0, 1, 1], [], []>} : vector<8x128xbf16>, vector<128x512xbf16>, vector<8x512xf32> -> vector<8x512xf32>
    %128 = arith.addf %125, %127 : vector<8x512xf32>
    %129 = vector.extract_strided_slice %128 {offsets = [0, 0], sizes = [8, 128], strides = [1, 1]} : vector<8x512xf32> to vector<8x128xf32>
    %130 = arith.negf %129 : vector<8x128xf32>
    %131 = math.exp %130 : vector<8x128xf32>
    %cst_26 = arith.constant 1.000000e+00 : f32
    %132 = vector.broadcast %cst_26 : f32 to vector<8x128xf32>
    %133 = arith.addf %132, %131 : vector<8x128xf32>
    %134 = arith.divf %132, %133 : vector<8x128xf32>
    %135 = vector.extract_strided_slice %128 {offsets = [0, 128], sizes = [8, 128], strides = [1, 1]} : vector<8x512xf32> to vector<8x128xf32>
    %136 = arith.negf %135 : vector<8x128xf32>
    %137 = math.exp %136 : vector<8x128xf32>
    %cst_27 = arith.constant 1.000000e+00 : f32
    %138 = vector.broadcast %cst_27 : f32 to vector<8x128xf32>
    %139 = arith.addf %138, %137 : vector<8x128xf32>
    %140 = arith.divf %138, %139 : vector<8x128xf32>
    %141 = vector.extract_strided_slice %128 {offsets = [0, 256], sizes = [8, 128], strides = [1, 1]} : vector<8x512xf32> to vector<8x128xf32>
    %142 = math.tanh %141 : vector<8x128xf32>
    %143 = vector.extract_strided_slice %128 {offsets = [0, 384], sizes = [8, 128], strides = [1, 1]} : vector<8x512xf32> to vector<8x128xf32>
    %144 = arith.negf %143 : vector<8x128xf32>
    %145 = math.exp %144 : vector<8x128xf32>
    %cst_28 = arith.constant 1.000000e+00 : f32
    %146 = vector.broadcast %cst_28 : f32 to vector<8x128xf32>
    %147 = arith.addf %146, %145 : vector<8x128xf32>
    %148 = arith.divf %146, %147 : vector<8x128xf32>
    %149 = arith.mulf %140, %122 : vector<8x128xf32>
    %150 = arith.mulf %134, %142 : vector<8x128xf32>
    %151 = arith.addf %149, %150 : vector<8x128xf32>
    %152 = math.tanh %151 : vector<8x128xf32>
    %153 = arith.mulf %148, %152 : vector<8x128xf32>
    %154 = vector.extract_strided_slice %6 {offsets = [40, 0], sizes = [8, 512], strides = [1, 1]} : vector<64x512xf32> to vector<8x512xf32>
    %155 = arith.truncf %153 : vector<8x128xf32> to vector<8x128xbf16>
    %cst_29 = arith.constant dense<0.000000e+00> : vector<8x512xf32>
    %156 = tpu.matmul %155, %0, %cst_29 {dimension_numbers = #tpu.dot_dimension_numbers<[1], [0], [0], [1], [0, 0, 1, 1], [], []>} : vector<8x128xbf16>, vector<128x512xbf16>, vector<8x512xf32> -> vector<8x512xf32>
    %157 = arith.addf %154, %156 : vector<8x512xf32>
    %158 = vector.extract_strided_slice %157 {offsets = [0, 0], sizes = [8, 128], strides = [1, 1]} : vector<8x512xf32> to vector<8x128xf32>
    %159 = arith.negf %158 : vector<8x128xf32>
    %160 = math.exp %159 : vector<8x128xf32>
    %cst_30 = arith.constant 1.000000e+00 : f32
    %161 = vector.broadcast %cst_30 : f32 to vector<8x128xf32>
    %162 = arith.addf %161, %160 : vector<8x128xf32>
    %163 = arith.divf %161, %162 : vector<8x128xf32>
    %164 = vector.extract_strided_slice %157 {offsets = [0, 128], sizes = [8, 128], strides = [1, 1]} : vector<8x512xf32> to vector<8x128xf32>
    %165 = arith.negf %164 : vector<8x128xf32>
    %166 = math.exp %165 : vector<8x128xf32>
    %cst_31 = arith.constant 1.000000e+00 : f32
    %167 = vector.broadcast %cst_31 : f32 to vector<8x128xf32>
    %168 = arith.addf %167, %166 : vector<8x128xf32>
    %169 = arith.divf %167, %168 : vector<8x128xf32>
    %170 = vector.extract_strided_slice %157 {offsets = [0, 256], sizes = [8, 128], strides = [1, 1]} : vector<8x512xf32> to vector<8x128xf32>
    %171 = math.tanh %170 : vector<8x128xf32>
    %172 = vector.extract_strided_slice %157 {offsets = [0, 384], sizes = [8, 128], strides = [1, 1]} : vector<8x512xf32> to vector<8x128xf32>
    %173 = arith.negf %172 : vector<8x128xf32>
    %174 = math.exp %173 : vector<8x128xf32>
    %cst_32 = arith.constant 1.000000e+00 : f32
    %175 = vector.broadcast %cst_32 : f32 to vector<8x128xf32>
    %176 = arith.addf %175, %174 : vector<8x128xf32>
    %177 = arith.divf %175, %176 : vector<8x128xf32>
    %178 = arith.mulf %169, %151 : vector<8x128xf32>
    %179 = arith.mulf %163, %171 : vector<8x128xf32>
    %180 = arith.addf %178, %179 : vector<8x128xf32>
    %181 = math.tanh %180 : vector<8x128xf32>
    %182 = arith.mulf %177, %181 : vector<8x128xf32>
    %183 = vector.extract_strided_slice %6 {offsets = [48, 0], sizes = [8, 512], strides = [1, 1]} : vector<64x512xf32> to vector<8x512xf32>
    %184 = arith.truncf %182 : vector<8x128xf32> to vector<8x128xbf16>
    %cst_33 = arith.constant dense<0.000000e+00> : vector<8x512xf32>
    %185 = tpu.matmul %184, %0, %cst_33 {dimension_numbers = #tpu.dot_dimension_numbers<[1], [0], [0], [1], [0, 0, 1, 1], [], []>} : vector<8x128xbf16>, vector<128x512xbf16>, vector<8x512xf32> -> vector<8x512xf32>
    %186 = arith.addf %183, %185 : vector<8x512xf32>
    %187 = vector.extract_strided_slice %186 {offsets = [0, 0], sizes = [8, 128], strides = [1, 1]} : vector<8x512xf32> to vector<8x128xf32>
    %188 = arith.negf %187 : vector<8x128xf32>
    %189 = math.exp %188 : vector<8x128xf32>
    %cst_34 = arith.constant 1.000000e+00 : f32
    %190 = vector.broadcast %cst_34 : f32 to vector<8x128xf32>
    %191 = arith.addf %190, %189 : vector<8x128xf32>
    %192 = arith.divf %190, %191 : vector<8x128xf32>
    %193 = vector.extract_strided_slice %186 {offsets = [0, 128], sizes = [8, 128], strides = [1, 1]} : vector<8x512xf32> to vector<8x128xf32>
    %194 = arith.negf %193 : vector<8x128xf32>
    %195 = math.exp %194 : vector<8x128xf32>
    %cst_35 = arith.constant 1.000000e+00 : f32
    %196 = vector.broadcast %cst_35 : f32 to vector<8x128xf32>
    %197 = arith.addf %196, %195 : vector<8x128xf32>
    %198 = arith.divf %196, %197 : vector<8x128xf32>
    %199 = vector.extract_strided_slice %186 {offsets = [0, 256], sizes = [8, 128], strides = [1, 1]} : vector<8x512xf32> to vector<8x128xf32>
    %200 = math.tanh %199 : vector<8x128xf32>
    %201 = vector.extract_strided_slice %186 {offsets = [0, 384], sizes = [8, 128], strides = [1, 1]} : vector<8x512xf32> to vector<8x128xf32>
    %202 = arith.negf %201 : vector<8x128xf32>
    %203 = math.exp %202 : vector<8x128xf32>
    %cst_36 = arith.constant 1.000000e+00 : f32
    %204 = vector.broadcast %cst_36 : f32 to vector<8x128xf32>
    %205 = arith.addf %204, %203 : vector<8x128xf32>
    %206 = arith.divf %204, %205 : vector<8x128xf32>
    %207 = arith.mulf %198, %180 : vector<8x128xf32>
    %208 = arith.mulf %192, %200 : vector<8x128xf32>
    %209 = arith.addf %207, %208 : vector<8x128xf32>
    %210 = math.tanh %209 : vector<8x128xf32>
    %211 = arith.mulf %206, %210 : vector<8x128xf32>
    %212 = vector.extract_strided_slice %6 {offsets = [56, 0], sizes = [8, 512], strides = [1, 1]} : vector<64x512xf32> to vector<8x512xf32>
    %213 = arith.truncf %211 : vector<8x128xf32> to vector<8x128xbf16>
    %cst_37 = arith.constant dense<0.000000e+00> : vector<8x512xf32>
    %214 = tpu.matmul %213, %0, %cst_37 {dimension_numbers = #tpu.dot_dimension_numbers<[1], [0], [0], [1], [0, 0, 1, 1], [], []>} : vector<8x128xbf16>, vector<128x512xbf16>, vector<8x512xf32> -> vector<8x512xf32>
    %215 = arith.addf %212, %214 : vector<8x512xf32>
    %216 = vector.extract_strided_slice %215 {offsets = [0, 0], sizes = [8, 128], strides = [1, 1]} : vector<8x512xf32> to vector<8x128xf32>
    %217 = arith.negf %216 : vector<8x128xf32>
    %218 = math.exp %217 : vector<8x128xf32>
    %cst_38 = arith.constant 1.000000e+00 : f32
    %219 = vector.broadcast %cst_38 : f32 to vector<8x128xf32>
    %220 = arith.addf %219, %218 : vector<8x128xf32>
    %221 = arith.divf %219, %220 : vector<8x128xf32>
    %222 = vector.extract_strided_slice %215 {offsets = [0, 128], sizes = [8, 128], strides = [1, 1]} : vector<8x512xf32> to vector<8x128xf32>
    %223 = arith.negf %222 : vector<8x128xf32>
    %224 = math.exp %223 : vector<8x128xf32>
    %cst_39 = arith.constant 1.000000e+00 : f32
    %225 = vector.broadcast %cst_39 : f32 to vector<8x128xf32>
    %226 = arith.addf %225, %224 : vector<8x128xf32>
    %227 = arith.divf %225, %226 : vector<8x128xf32>
    %228 = vector.extract_strided_slice %215 {offsets = [0, 256], sizes = [8, 128], strides = [1, 1]} : vector<8x512xf32> to vector<8x128xf32>
    %229 = math.tanh %228 : vector<8x128xf32>
    %230 = vector.extract_strided_slice %215 {offsets = [0, 384], sizes = [8, 128], strides = [1, 1]} : vector<8x512xf32> to vector<8x128xf32>
    %231 = arith.negf %230 : vector<8x128xf32>
    %232 = math.exp %231 : vector<8x128xf32>
    %cst_40 = arith.constant 1.000000e+00 : f32
    %233 = vector.broadcast %cst_40 : f32 to vector<8x128xf32>
    %234 = arith.addf %233, %232 : vector<8x128xf32>
    %235 = arith.divf %233, %234 : vector<8x128xf32>
    %236 = arith.mulf %227, %209 : vector<8x128xf32>
    %237 = arith.mulf %221, %229 : vector<8x128xf32>
    %238 = arith.addf %236, %237 : vector<8x128xf32>
    %239 = math.tanh %238 : vector<8x128xf32>
    %240 = arith.mulf %235, %239 : vector<8x128xf32>
    %241 = arith.truncf %240 : vector<8x128xf32> to vector<8x128xbf16>
    %c0_41 = arith.constant 0 : index
    %c0_42 = arith.constant 0 : index
    %242 = vector.load %arg7[%c0_41, %c0_42] : memref<128x64xbf16, #tpu.memory_space<vmem>>, vector<128x64xbf16>
    %cst_43 = arith.constant dense<0.000000e+00> : vector<8x64xf32>
    %243 = tpu.matmul %241, %242, %cst_43 {dimension_numbers = #tpu.dot_dimension_numbers<[1], [0], [0], [1], [0, 0, 1, 1], [], []>} : vector<8x128xbf16>, vector<128x64xbf16>, vector<8x64xf32> -> vector<8x64xf32>
    %c0_44 = arith.constant 0 : index
    %c0_45 = arith.constant 0 : index
    %244 = vector.load %arg8[%c0_44, %c0_45] : memref<1x64xf32, #tpu.memory_space<vmem>>, vector<1x64xf32>
    %245 = vector.broadcast %244 : vector<1x64xf32> to vector<8x64xf32>
    %246 = arith.addf %243, %245 : vector<8x64xf32>
    %247 = vector.extract_strided_slice %246 {offsets = [0, 0], sizes = [8, 32], strides = [1, 1]} : vector<8x64xf32> to vector<8x32xf32>
    %248 = vector.extract_strided_slice %246 {offsets = [0, 32], sizes = [8, 32], strides = [1, 1]} : vector<8x64xf32> to vector<8x32xf32>
    %c0_46 = arith.constant 0 : index
    %c0_47 = arith.constant 0 : index
    %249 = vector.load %arg15[%c0_46, %c0_47] : memref<8x32xf32, #tpu.memory_space<vmem>>, vector<8x32xf32>
    tpu.vector_store %arg15[%c0_46, %c0_47], %247 {strides = array<i32>} : memref<8x32xf32, #tpu.memory_space<vmem>>, vector<8x32xf32>,
    %c0_48 = arith.constant 0 : index
    %c0_49 = arith.constant 0 : index
    %250 = vector.load %arg16[%c0_48, %c0_49] : memref<8x32xf32, #tpu.memory_space<vmem>>, vector<8x32xf32>
    tpu.vector_store %arg16[%c0_48, %c0_49], %248 {strides = array<i32>} : memref<8x32xf32, #tpu.memory_space<vmem>>, vector<8x32xf32>,
    %cst_50 = arith.constant 5.000000e-01 : f32
    %251 = vector.broadcast %cst_50 : f32 to vector<8x32xf32>
    %252 = arith.mulf %251, %248 : vector<8x32xf32>
    %253 = math.exp %252 : vector<8x32xf32>
    %c0_51 = arith.constant 0 : index
    %c0_52 = arith.constant 0 : index
    %254 = vector.load %arg2[%c0_51, %c0_52] : memref<8x32xf32, #tpu.memory_space<vmem>>, vector<8x32xf32>
    %255 = arith.mulf %254, %253 : vector<8x32xf32>
    %256 = arith.addf %247, %255 : vector<8x32xf32>
    %257 = arith.truncf %256 : vector<8x32xf32> to vector<8x32xbf16>
    %c0_53 = arith.constant 0 : index
    %c0_54 = arith.constant 0 : index
    %258 = vector.load %arg9[%c0_53, %c0_54] : memref<32x64xbf16, #tpu.memory_space<vmem>>, vector<32x64xbf16>
    %cst_55 = arith.constant dense<0.000000e+00> : vector<8x64xf32>
    %259 = tpu.matmul %257, %258, %cst_55 {dimension_numbers = #tpu.dot_dimension_numbers<[1], [0], [0], [1], [0, 0, 1, 1], [], []>} : vector<8x32xbf16>, vector<32x64xbf16>, vector<8x64xf32> -> vector<8x64xf32>
    %c0_56 = arith.constant 0 : index
    %c0_57 = arith.constant 0 : index
    %260 = vector.load %arg3[%c0_56, %c0_57] : memref<8x16xf32, #tpu.memory_space<vmem>>, vector<8x16xf32>
    %261 = arith.truncf %260 : vector<8x16xf32> to vector<8x16xbf16>
    %c0_58 = arith.constant 0 : index
    %c0_59 = arith.constant 0 : index
    %262 = vector.load %arg10[%c0_58, %c0_59] : memref<16x64xbf16, #tpu.memory_space<vmem>>, vector<16x64xbf16>
    %cst_60 = arith.constant dense<0.000000e+00> : vector<8x64xf32>
    %263 = tpu.matmul %261, %262, %cst_60 {dimension_numbers = #tpu.dot_dimension_numbers<[1], [0], [0], [1], [0, 0, 1, 1], [], []>} : vector<8x16xbf16>, vector<16x64xbf16>, vector<8x64xf32> -> vector<8x64xf32>
    %264 = arith.addf %259, %263 : vector<8x64xf32>
    %c0_61 = arith.constant 0 : index
    %c0_62 = arith.constant 0 : index
    %265 = vector.load %arg11[%c0_61, %c0_62] : memref<1x64xf32, #tpu.memory_space<vmem>>, vector<1x64xf32>
    %266 = vector.broadcast %265 : vector<1x64xf32> to vector<8x64xf32>
    %267 = arith.addf %264, %266 : vector<8x64xf32>
    %c0_63 = arith.constant 0 : index
    %c0_64 = arith.constant 0 : index
    %268 = vector.load %arg13[%c0_63, %c0_64] : memref<128x512xbf16, #tpu.memory_space<vmem>>, vector<128x512xbf16>
    %269 = arith.truncf %267 : vector<8x64xf32> to vector<8x64xbf16>
    %c0_65 = arith.constant 0 : index
    %c0_66 = arith.constant 0 : index
    %270 = vector.load %arg12[%c0_65, %c0_66] : memref<64x512xbf16, #tpu.memory_space<vmem>>, vector<64x512xbf16>
    %cst_67 = arith.constant dense<0.000000e+00> : vector<8x512xf32>
    %271 = tpu.matmul %269, %270, %cst_67 {dimension_numbers = #tpu.dot_dimension_numbers<[1], [0], [0], [1], [0, 0, 1, 1], [], []>} : vector<8x64xbf16>, vector<64x512xbf16>, vector<8x512xf32> -> vector<8x512xf32>
    %c0_68 = arith.constant 0 : index
    %c0_69 = arith.constant 0 : index
    %272 = vector.load %arg14[%c0_68, %c0_69] : memref<1x512xf32, #tpu.memory_space<vmem>>, vector<1x512xf32>
    %273 = vector.broadcast %272 : vector<1x512xf32> to vector<8x512xf32>
    %274 = arith.addf %271, %273 : vector<8x512xf32>
    %cst_70 = arith.constant 0.000000e+00 : f32
    %275 = vector.broadcast %cst_70 : f32 to vector<8x128xf32>
    %cst_71 = arith.constant 0.000000e+00 : f32
    %276 = vector.broadcast %cst_71 : f32 to vector<8x128xf32>
    %277 = arith.truncf %275 : vector<8x128xf32> to vector<8x128xbf16>
    %cst_72 = arith.constant dense<0.000000e+00> : vector<8x512xf32>
    %278 = tpu.matmul %277, %268, %cst_72 {dimension_numbers = #tpu.dot_dimension_numbers<[1], [0], [0], [1], [0, 0, 1, 1], [], []>} : vector<8x128xbf16>, vector<128x512xbf16>, vector<8x512xf32> -> vector<8x512xf32>
    %279 = arith.addf %274, %278 : vector<8x512xf32>
    %280 = vector.extract_strided_slice %279 {offsets = [0, 0], sizes = [8, 128], strides = [1, 1]} : vector<8x512xf32> to vector<8x128xf32>
    %281 = arith.negf %280 : vector<8x128xf32>
    %282 = math.exp %281 : vector<8x128xf32>
    %cst_73 = arith.constant 1.000000e+00 : f32
    %283 = vector.broadcast %cst_73 : f32 to vector<8x128xf32>
    %284 = arith.addf %283, %282 : vector<8x128xf32>
    %285 = arith.divf %283, %284 : vector<8x128xf32>
    %286 = vector.extract_strided_slice %279 {offsets = [0, 128], sizes = [8, 128], strides = [1, 1]} : vector<8x512xf32> to vector<8x128xf32>
    %287 = arith.negf %286 : vector<8x128xf32>
    %288 = math.exp %287 : vector<8x128xf32>
    %cst_74 = arith.constant 1.000000e+00 : f32
    %289 = vector.broadcast %cst_74 : f32 to vector<8x128xf32>
    %290 = arith.addf %289, %288 : vector<8x128xf32>
    %291 = arith.divf %289, %290 : vector<8x128xf32>
    %292 = vector.extract_strided_slice %279 {offsets = [0, 256], sizes = [8, 128], strides = [1, 1]} : vector<8x512xf32> to vector<8x128xf32>
    %293 = math.tanh %292 : vector<8x128xf32>
    %294 = vector.extract_strided_slice %279 {offsets = [0, 384], sizes = [8, 128], strides = [1, 1]} : vector<8x512xf32> to vector<8x128xf32>
    %295 = arith.negf %294 : vector<8x128xf32>
    %296 = math.exp %295 : vector<8x128xf32>
    %cst_75 = arith.constant 1.000000e+00 : f32
    %297 = vector.broadcast %cst_75 : f32 to vector<8x128xf32>
    %298 = arith.addf %297, %296 : vector<8x128xf32>
    %299 = arith.divf %297, %298 : vector<8x128xf32>
    %300 = arith.mulf %291, %276 : vector<8x128xf32>
    %301 = arith.mulf %285, %293 : vector<8x128xf32>
    %302 = arith.addf %300, %301 : vector<8x128xf32>
    %303 = math.tanh %302 : vector<8x128xf32>
    %304 = arith.mulf %299, %303 : vector<8x128xf32>
    %305 = arith.truncf %304 : vector<8x128xf32> to vector<8x128xbf16>
    %c0_76 = arith.constant 0 : index
    %c0_77 = arith.constant 0 : index
    %c0_78 = arith.constant 0 : index
    %306 = vector.load %arg17[%c0_76, %c0_77, %c0_78] : memref<8x8x128xbf16, #tpu.memory_space<vmem>>, vector<1x8x128xbf16>
    %307 = vector.shape_cast %306 : vector<1x8x128xbf16> to vector<8x128xbf16>
    %308 = vector.shape_cast %305 : vector<8x128xbf16> to vector<1x8x128xbf16>
    tpu.vector_store %arg17[%c0_76, %c0_77, %c0_78], %308 {strides = array<i32>} : memref<8x8x128xbf16, #tpu.memory_space<vmem>>, vector<1x8x128xbf16>,
    %309 = arith.truncf %304 : vector<8x128xf32> to vector<8x128xbf16>
    %cst_79 = arith.constant dense<0.000000e+00> : vector<8x512xf32>
    %310 = tpu.matmul %309, %268, %cst_79 {dimension_numbers = #tpu.dot_dimension_numbers<[1], [0], [0], [1], [0, 0, 1, 1], [], []>} : vector<8x128xbf16>, vector<128x512xbf16>, vector<8x512xf32> -> vector<8x512xf32>
    %311 = arith.addf %274, %310 : vector<8x512xf32>
    %312 = vector.extract_strided_slice %311 {offsets = [0, 0], sizes = [8, 128], strides = [1, 1]} : vector<8x512xf32> to vector<8x128xf32>
    %313 = arith.negf %312 : vector<8x128xf32>
    %314 = math.exp %313 : vector<8x128xf32>
    %cst_80 = arith.constant 1.000000e+00 : f32
    %315 = vector.broadcast %cst_80 : f32 to vector<8x128xf32>
    %316 = arith.addf %315, %314 : vector<8x128xf32>
    %317 = arith.divf %315, %316 : vector<8x128xf32>
    %318 = vector.extract_strided_slice %311 {offsets = [0, 128], sizes = [8, 128], strides = [1, 1]} : vector<8x512xf32> to vector<8x128xf32>
    %319 = arith.negf %318 : vector<8x128xf32>
    %320 = math.exp %319 : vector<8x128xf32>
    %cst_81 = arith.constant 1.000000e+00 : f32
    %321 = vector.broadcast %cst_81 : f32 to vector<8x128xf32>
    %322 = arith.addf %321, %320 : vector<8x128xf32>
    %323 = arith.divf %321, %322 : vector<8x128xf32>
    %324 = vector.extract_strided_slice %311 {offsets = [0, 256], sizes = [8, 128], strides = [1, 1]} : vector<8x512xf32> to vector<8x128xf32>
    %325 = math.tanh %324 : vector<8x128xf32>
    %326 = vector.extract_strided_slice %311 {offsets = [0, 384], sizes = [8, 128], strides = [1, 1]} : vector<8x512xf32> to vector<8x128xf32>
    %327 = arith.negf %326 : vector<8x128xf32>
    %328 = math.exp %327 : vector<8x128xf32>
    %cst_82 = arith.constant 1.000000e+00 : f32
    %329 = vector.broadcast %cst_82 : f32 to vector<8x128xf32>
    %330 = arith.addf %329, %328 : vector<8x128xf32>
    %331 = arith.divf %329, %330 : vector<8x128xf32>
    %332 = arith.mulf %323, %302 : vector<8x128xf32>
    %333 = arith.mulf %317, %325 : vector<8x128xf32>
    %334 = arith.addf %332, %333 : vector<8x128xf32>
    %335 = math.tanh %334 : vector<8x128xf32>
    %336 = arith.mulf %331, %335 : vector<8x128xf32>
    %337 = arith.truncf %336 : vector<8x128xf32> to vector<8x128xbf16>
    %c1 = arith.constant 1 : index
    %c0_83 = arith.constant 0 : index
    %c0_84 = arith.constant 0 : index
    %338 = vector.load %arg17[%c1, %c0_83, %c0_84] : memref<8x8x128xbf16, #tpu.memory_space<vmem>>, vector<1x8x128xbf16>
    %339 = vector.shape_cast %338 : vector<1x8x128xbf16> to vector<8x128xbf16>
    %340 = vector.shape_cast %337 : vector<8x128xbf16> to vector<1x8x128xbf16>
    tpu.vector_store %arg17[%c1, %c0_83, %c0_84], %340 {strides = array<i32>} : memref<8x8x128xbf16, #tpu.memory_space<vmem>>, vector<1x8x128xbf16>,
    %341 = arith.truncf %336 : vector<8x128xf32> to vector<8x128xbf16>
    %cst_85 = arith.constant dense<0.000000e+00> : vector<8x512xf32>
    %342 = tpu.matmul %341, %268, %cst_85 {dimension_numbers = #tpu.dot_dimension_numbers<[1], [0], [0], [1], [0, 0, 1, 1], [], []>} : vector<8x128xbf16>, vector<128x512xbf16>, vector<8x512xf32> -> vector<8x512xf32>
    %343 = arith.addf %274, %342 : vector<8x512xf32>
    %344 = vector.extract_strided_slice %343 {offsets = [0, 0], sizes = [8, 128], strides = [1, 1]} : vector<8x512xf32> to vector<8x128xf32>
    %345 = arith.negf %344 : vector<8x128xf32>
    %346 = math.exp %345 : vector<8x128xf32>
    %cst_86 = arith.constant 1.000000e+00 : f32
    %347 = vector.broadcast %cst_86 : f32 to vector<8x128xf32>
    %348 = arith.addf %347, %346 : vector<8x128xf32>
    %349 = arith.divf %347, %348 : vector<8x128xf32>
    %350 = vector.extract_strided_slice %343 {offsets = [0, 128], sizes = [8, 128], strides = [1, 1]} : vector<8x512xf32> to vector<8x128xf32>
    %351 = arith.negf %350 : vector<8x128xf32>
    %352 = math.exp %351 : vector<8x128xf32>
    %cst_87 = arith.constant 1.000000e+00 : f32
    %353 = vector.broadcast %cst_87 : f32 to vector<8x128xf32>
    %354 = arith.addf %353, %352 : vector<8x128xf32>
    %355 = arith.divf %353, %354 : vector<8x128xf32>
    %356 = vector.extract_strided_slice %343 {offsets = [0, 256], sizes = [8, 128], strides = [1, 1]} : vector<8x512xf32> to vector<8x128xf32>
    %357 = math.tanh %356 : vector<8x128xf32>
    %358 = vector.extract_strided_slice %343 {offsets = [0, 384], sizes = [8, 128], strides = [1, 1]} : vector<8x512xf32> to vector<8x128xf32>
    %359 = arith.negf %358 : vector<8x128xf32>
    %360 = math.exp %359 : vector<8x128xf32>
    %cst_88 = arith.constant 1.000000e+00 : f32
    %361 = vector.broadcast %cst_88 : f32 to vector<8x128xf32>
    %362 = arith.addf %361, %360 : vector<8x128xf32>
    %363 = arith.divf %361, %362 : vector<8x128xf32>
    %364 = arith.mulf %355, %334 : vector<8x128xf32>
    %365 = arith.mulf %349, %357 : vector<8x128xf32>
    %366 = arith.addf %364, %365 : vector<8x128xf32>
    %367 = math.tanh %366 : vector<8x128xf32>
    %368 = arith.mulf %363, %367 : vector<8x128xf32>
    %369 = arith.truncf %368 : vector<8x128xf32> to vector<8x128xbf16>
    %c2 = arith.constant 2 : index
    %c0_89 = arith.constant 0 : index
    %c0_90 = arith.constant 0 : index
    %370 = vector.load %arg17[%c2, %c0_89, %c0_90] : memref<8x8x128xbf16, #tpu.memory_space<vmem>>, vector<1x8x128xbf16>
    %371 = vector.shape_cast %370 : vector<1x8x128xbf16> to vector<8x128xbf16>
    %372 = vector.shape_cast %369 : vector<8x128xbf16> to vector<1x8x128xbf16>
    tpu.vector_store %arg17[%c2, %c0_89, %c0_90], %372 {strides = array<i32>} : memref<8x8x128xbf16, #tpu.memory_space<vmem>>, vector<1x8x128xbf16>,
    %373 = arith.truncf %368 : vector<8x128xf32> to vector<8x128xbf16>
    %cst_91 = arith.constant dense<0.000000e+00> : vector<8x512xf32>
    %374 = tpu.matmul %373, %268, %cst_91 {dimension_numbers = #tpu.dot_dimension_numbers<[1], [0], [0], [1], [0, 0, 1, 1], [], []>} : vector<8x128xbf16>, vector<128x512xbf16>, vector<8x512xf32> -> vector<8x512xf32>
    %375 = arith.addf %274, %374 : vector<8x512xf32>
    %376 = vector.extract_strided_slice %375 {offsets = [0, 0], sizes = [8, 128], strides = [1, 1]} : vector<8x512xf32> to vector<8x128xf32>
    %377 = arith.negf %376 : vector<8x128xf32>
    %378 = math.exp %377 : vector<8x128xf32>
    %cst_92 = arith.constant 1.000000e+00 : f32
    %379 = vector.broadcast %cst_92 : f32 to vector<8x128xf32>
    %380 = arith.addf %379, %378 : vector<8x128xf32>
    %381 = arith.divf %379, %380 : vector<8x128xf32>
    %382 = vector.extract_strided_slice %375 {offsets = [0, 128], sizes = [8, 128], strides = [1, 1]} : vector<8x512xf32> to vector<8x128xf32>
    %383 = arith.negf %382 : vector<8x128xf32>
    %384 = math.exp %383 : vector<8x128xf32>
    %cst_93 = arith.constant 1.000000e+00 : f32
    %385 = vector.broadcast %cst_93 : f32 to vector<8x128xf32>
    %386 = arith.addf %385, %384 : vector<8x128xf32>
    %387 = arith.divf %385, %386 : vector<8x128xf32>
    %388 = vector.extract_strided_slice %375 {offsets = [0, 256], sizes = [8, 128], strides = [1, 1]} : vector<8x512xf32> to vector<8x128xf32>
    %389 = math.tanh %388 : vector<8x128xf32>
    %390 = vector.extract_strided_slice %375 {offsets = [0, 384], sizes = [8, 128], strides = [1, 1]} : vector<8x512xf32> to vector<8x128xf32>
    %391 = arith.negf %390 : vector<8x128xf32>
    %392 = math.exp %391 : vector<8x128xf32>
    %cst_94 = arith.constant 1.000000e+00 : f32
    %393 = vector.broadcast %cst_94 : f32 to vector<8x128xf32>
    %394 = arith.addf %393, %392 : vector<8x128xf32>
    %395 = arith.divf %393, %394 : vector<8x128xf32>
    %396 = arith.mulf %387, %366 : vector<8x128xf32>
    %397 = arith.mulf %381, %389 : vector<8x128xf32>
    %398 = arith.addf %396, %397 : vector<8x128xf32>
    %399 = math.tanh %398 : vector<8x128xf32>
    %400 = arith.mulf %395, %399 : vector<8x128xf32>
    %401 = arith.truncf %400 : vector<8x128xf32> to vector<8x128xbf16>
    %c3 = arith.constant 3 : index
    %c0_95 = arith.constant 0 : index
    %c0_96 = arith.constant 0 : index
    %402 = vector.load %arg17[%c3, %c0_95, %c0_96] : memref<8x8x128xbf16, #tpu.memory_space<vmem>>, vector<1x8x128xbf16>
    %403 = vector.shape_cast %402 : vector<1x8x128xbf16> to vector<8x128xbf16>
    %404 = vector.shape_cast %401 : vector<8x128xbf16> to vector<1x8x128xbf16>
    tpu.vector_store %arg17[%c3, %c0_95, %c0_96], %404 {strides = array<i32>} : memref<8x8x128xbf16, #tpu.memory_space<vmem>>, vector<1x8x128xbf16>,
    %405 = arith.truncf %400 : vector<8x128xf32> to vector<8x128xbf16>
    %cst_97 = arith.constant dense<0.000000e+00> : vector<8x512xf32>
    %406 = tpu.matmul %405, %268, %cst_97 {dimension_numbers = #tpu.dot_dimension_numbers<[1], [0], [0], [1], [0, 0, 1, 1], [], []>} : vector<8x128xbf16>, vector<128x512xbf16>, vector<8x512xf32> -> vector<8x512xf32>
    %407 = arith.addf %274, %406 : vector<8x512xf32>
    %408 = vector.extract_strided_slice %407 {offsets = [0, 0], sizes = [8, 128], strides = [1, 1]} : vector<8x512xf32> to vector<8x128xf32>
    %409 = arith.negf %408 : vector<8x128xf32>
    %410 = math.exp %409 : vector<8x128xf32>
    %cst_98 = arith.constant 1.000000e+00 : f32
    %411 = vector.broadcast %cst_98 : f32 to vector<8x128xf32>
    %412 = arith.addf %411, %410 : vector<8x128xf32>
    %413 = arith.divf %411, %412 : vector<8x128xf32>
    %414 = vector.extract_strided_slice %407 {offsets = [0, 128], sizes = [8, 128], strides = [1, 1]} : vector<8x512xf32> to vector<8x128xf32>
    %415 = arith.negf %414 : vector<8x128xf32>
    %416 = math.exp %415 : vector<8x128xf32>
    %cst_99 = arith.constant 1.000000e+00 : f32
    %417 = vector.broadcast %cst_99 : f32 to vector<8x128xf32>
    %418 = arith.addf %417, %416 : vector<8x128xf32>
    %419 = arith.divf %417, %418 : vector<8x128xf32>
    %420 = vector.extract_strided_slice %407 {offsets = [0, 256], sizes = [8, 128], strides = [1, 1]} : vector<8x512xf32> to vector<8x128xf32>
    %421 = math.tanh %420 : vector<8x128xf32>
    %422 = vector.extract_strided_slice %407 {offsets = [0, 384], sizes = [8, 128], strides = [1, 1]} : vector<8x512xf32> to vector<8x128xf32>
    %423 = arith.negf %422 : vector<8x128xf32>
    %424 = math.exp %423 : vector<8x128xf32>
    %cst_100 = arith.constant 1.000000e+00 : f32
    %425 = vector.broadcast %cst_100 : f32 to vector<8x128xf32>
    %426 = arith.addf %425, %424 : vector<8x128xf32>
    %427 = arith.divf %425, %426 : vector<8x128xf32>
    %428 = arith.mulf %419, %398 : vector<8x128xf32>
    %429 = arith.mulf %413, %421 : vector<8x128xf32>
    %430 = arith.addf %428, %429 : vector<8x128xf32>
    %431 = math.tanh %430 : vector<8x128xf32>
    %432 = arith.mulf %427, %431 : vector<8x128xf32>
    %433 = arith.truncf %432 : vector<8x128xf32> to vector<8x128xbf16>
    %c4 = arith.constant 4 : index
    %c0_101 = arith.constant 0 : index
    %c0_102 = arith.constant 0 : index
    %434 = vector.load %arg17[%c4, %c0_101, %c0_102] : memref<8x8x128xbf16, #tpu.memory_space<vmem>>, vector<1x8x128xbf16>
    %435 = vector.shape_cast %434 : vector<1x8x128xbf16> to vector<8x128xbf16>
    %436 = vector.shape_cast %433 : vector<8x128xbf16> to vector<1x8x128xbf16>
    tpu.vector_store %arg17[%c4, %c0_101, %c0_102], %436 {strides = array<i32>} : memref<8x8x128xbf16, #tpu.memory_space<vmem>>, vector<1x8x128xbf16>,
    %437 = arith.truncf %432 : vector<8x128xf32> to vector<8x128xbf16>
    %cst_103 = arith.constant dense<0.000000e+00> : vector<8x512xf32>
    %438 = tpu.matmul %437, %268, %cst_103 {dimension_numbers = #tpu.dot_dimension_numbers<[1], [0], [0], [1], [0, 0, 1, 1], [], []>} : vector<8x128xbf16>, vector<128x512xbf16>, vector<8x512xf32> -> vector<8x512xf32>
    %439 = arith.addf %274, %438 : vector<8x512xf32>
    %440 = vector.extract_strided_slice %439 {offsets = [0, 0], sizes = [8, 128], strides = [1, 1]} : vector<8x512xf32> to vector<8x128xf32>
    %441 = arith.negf %440 : vector<8x128xf32>
    %442 = math.exp %441 : vector<8x128xf32>
    %cst_104 = arith.constant 1.000000e+00 : f32
    %443 = vector.broadcast %cst_104 : f32 to vector<8x128xf32>
    %444 = arith.addf %443, %442 : vector<8x128xf32>
    %445 = arith.divf %443, %444 : vector<8x128xf32>
    %446 = vector.extract_strided_slice %439 {offsets = [0, 128], sizes = [8, 128], strides = [1, 1]} : vector<8x512xf32> to vector<8x128xf32>
    %447 = arith.negf %446 : vector<8x128xf32>
    %448 = math.exp %447 : vector<8x128xf32>
    %cst_105 = arith.constant 1.000000e+00 : f32
    %449 = vector.broadcast %cst_105 : f32 to vector<8x128xf32>
    %450 = arith.addf %449, %448 : vector<8x128xf32>
    %451 = arith.divf %449, %450 : vector<8x128xf32>
    %452 = vector.extract_strided_slice %439 {offsets = [0, 256], sizes = [8, 128], strides = [1, 1]} : vector<8x512xf32> to vector<8x128xf32>
    %453 = math.tanh %452 : vector<8x128xf32>
    %454 = vector.extract_strided_slice %439 {offsets = [0, 384], sizes = [8, 128], strides = [1, 1]} : vector<8x512xf32> to vector<8x128xf32>
    %455 = arith.negf %454 : vector<8x128xf32>
    %456 = math.exp %455 : vector<8x128xf32>
    %cst_106 = arith.constant 1.000000e+00 : f32
    %457 = vector.broadcast %cst_106 : f32 to vector<8x128xf32>
    %458 = arith.addf %457, %456 : vector<8x128xf32>
    %459 = arith.divf %457, %458 : vector<8x128xf32>
    %460 = arith.mulf %451, %430 : vector<8x128xf32>
    %461 = arith.mulf %445, %453 : vector<8x128xf32>
    %462 = arith.addf %460, %461 : vector<8x128xf32>
    %463 = math.tanh %462 : vector<8x128xf32>
    %464 = arith.mulf %459, %463 : vector<8x128xf32>
    %465 = arith.truncf %464 : vector<8x128xf32> to vector<8x128xbf16>
    %c5 = arith.constant 5 : index
    %c0_107 = arith.constant 0 : index
    %c0_108 = arith.constant 0 : index
    %466 = vector.load %arg17[%c5, %c0_107, %c0_108] : memref<8x8x128xbf16, #tpu.memory_space<vmem>>, vector<1x8x128xbf16>
    %467 = vector.shape_cast %466 : vector<1x8x128xbf16> to vector<8x128xbf16>
    %468 = vector.shape_cast %465 : vector<8x128xbf16> to vector<1x8x128xbf16>
    tpu.vector_store %arg17[%c5, %c0_107, %c0_108], %468 {strides = array<i32>} : memref<8x8x128xbf16, #tpu.memory_space<vmem>>, vector<1x8x128xbf16>,
    %469 = arith.truncf %464 : vector<8x128xf32> to vector<8x128xbf16>
    %cst_109 = arith.constant dense<0.000000e+00> : vector<8x512xf32>
    %470 = tpu.matmul %469, %268, %cst_109 {dimension_numbers = #tpu.dot_dimension_numbers<[1], [0], [0], [1], [0, 0, 1, 1], [], []>} : vector<8x128xbf16>, vector<128x512xbf16>, vector<8x512xf32> -> vector<8x512xf32>
    %471 = arith.addf %274, %470 : vector<8x512xf32>
    %472 = vector.extract_strided_slice %471 {offsets = [0, 0], sizes = [8, 128], strides = [1, 1]} : vector<8x512xf32> to vector<8x128xf32>
    %473 = arith.negf %472 : vector<8x128xf32>
    %474 = math.exp %473 : vector<8x128xf32>
    %cst_110 = arith.constant 1.000000e+00 : f32
    %475 = vector.broadcast %cst_110 : f32 to vector<8x128xf32>
    %476 = arith.addf %475, %474 : vector<8x128xf32>
    %477 = arith.divf %475, %476 : vector<8x128xf32>
    %478 = vector.extract_strided_slice %471 {offsets = [0, 128], sizes = [8, 128], strides = [1, 1]} : vector<8x512xf32> to vector<8x128xf32>
    %479 = arith.negf %478 : vector<8x128xf32>
    %480 = math.exp %479 : vector<8x128xf32>
    %cst_111 = arith.constant 1.000000e+00 : f32
    %481 = vector.broadcast %cst_111 : f32 to vector<8x128xf32>
    %482 = arith.addf %481, %480 : vector<8x128xf32>
    %483 = arith.divf %481, %482 : vector<8x128xf32>
    %484 = vector.extract_strided_slice %471 {offsets = [0, 256], sizes = [8, 128], strides = [1, 1]} : vector<8x512xf32> to vector<8x128xf32>
    %485 = math.tanh %484 : vector<8x128xf32>
    %486 = vector.extract_strided_slice %471 {offsets = [0, 384], sizes = [8, 128], strides = [1, 1]} : vector<8x512xf32> to vector<8x128xf32>
    %487 = arith.negf %486 : vector<8x128xf32>
    %488 = math.exp %487 : vector<8x128xf32>
    %cst_112 = arith.constant 1.000000e+00 : f32
    %489 = vector.broadcast %cst_112 : f32 to vector<8x128xf32>
    %490 = arith.addf %489, %488 : vector<8x128xf32>
    %491 = arith.divf %489, %490 : vector<8x128xf32>
    %492 = arith.mulf %483, %462 : vector<8x128xf32>
    %493 = arith.mulf %477, %485 : vector<8x128xf32>
    %494 = arith.addf %492, %493 : vector<8x128xf32>
    %495 = math.tanh %494 : vector<8x128xf32>
    %496 = arith.mulf %491, %495 : vector<8x128xf32>
    %497 = arith.truncf %496 : vector<8x128xf32> to vector<8x128xbf16>
    %c6 = arith.constant 6 : index
    %c0_113 = arith.constant 0 : index
    %c0_114 = arith.constant 0 : index
    %498 = vector.load %arg17[%c6, %c0_113, %c0_114] : memref<8x8x128xbf16, #tpu.memory_space<vmem>>, vector<1x8x128xbf16>
    %499 = vector.shape_cast %498 : vector<1x8x128xbf16> to vector<8x128xbf16>
    %500 = vector.shape_cast %497 : vector<8x128xbf16> to vector<1x8x128xbf16>
    tpu.vector_store %arg17[%c6, %c0_113, %c0_114], %500 {strides = array<i32>} : memref<8x8x128xbf16, #tpu.memory_space<vmem>>, vector<1x8x128xbf16>,
    %501 = arith.truncf %496 : vector<8x128xf32> to vector<8x128xbf16>
    %cst_115 = arith.constant dense<0.000000e+00> : vector<8x512xf32>
    %502 = tpu.matmul %501, %268, %cst_115 {dimension_numbers = #tpu.dot_dimension_numbers<[1], [0], [0], [1], [0, 0, 1, 1], [], []>} : vector<8x128xbf16>, vector<128x512xbf16>, vector<8x512xf32> -> vector<8x512xf32>
    %503 = arith.addf %274, %502 : vector<8x512xf32>
    %504 = vector.extract_strided_slice %503 {offsets = [0, 0], sizes = [8, 128], strides = [1, 1]} : vector<8x512xf32> to vector<8x128xf32>
    %505 = arith.negf %504 : vector<8x128xf32>
    %506 = math.exp %505 : vector<8x128xf32>
    %cst_116 = arith.constant 1.000000e+00 : f32
    %507 = vector.broadcast %cst_116 : f32 to vector<8x128xf32>
    %508 = arith.addf %507, %506 : vector<8x128xf32>
    %509 = arith.divf %507, %508 : vector<8x128xf32>
    %510 = vector.extract_strided_slice %503 {offsets = [0, 128], sizes = [8, 128], strides = [1, 1]} : vector<8x512xf32> to vector<8x128xf32>
    %511 = arith.negf %510 : vector<8x128xf32>
    %512 = math.exp %511 : vector<8x128xf32>
    %cst_117 = arith.constant 1.000000e+00 : f32
    %513 = vector.broadcast %cst_117 : f32 to vector<8x128xf32>
    %514 = arith.addf %513, %512 : vector<8x128xf32>
    %515 = arith.divf %513, %514 : vector<8x128xf32>
    %516 = vector.extract_strided_slice %503 {offsets = [0, 256], sizes = [8, 128], strides = [1, 1]} : vector<8x512xf32> to vector<8x128xf32>
    %517 = math.tanh %516 : vector<8x128xf32>
    %518 = vector.extract_strided_slice %503 {offsets = [0, 384], sizes = [8, 128], strides = [1, 1]} : vector<8x512xf32> to vector<8x128xf32>
    %519 = arith.negf %518 : vector<8x128xf32>
    %520 = math.exp %519 : vector<8x128xf32>
    %cst_118 = arith.constant 1.000000e+00 : f32
    %521 = vector.broadcast %cst_118 : f32 to vector<8x128xf32>
    %522 = arith.addf %521, %520 : vector<8x128xf32>
    %523 = arith.divf %521, %522 : vector<8x128xf32>
    %524 = arith.mulf %515, %494 : vector<8x128xf32>
    %525 = arith.mulf %509, %517 : vector<8x128xf32>
    %526 = arith.addf %524, %525 : vector<8x128xf32>
    %527 = math.tanh %526 : vector<8x128xf32>
    %528 = arith.mulf %523, %527 : vector<8x128xf32>
    %529 = arith.truncf %528 : vector<8x128xf32> to vector<8x128xbf16>
    %c7 = arith.constant 7 : index
    %c0_119 = arith.constant 0 : index
    %c0_120 = arith.constant 0 : index
    %530 = vector.load %arg17[%c7, %c0_119, %c0_120] : memref<8x8x128xbf16, #tpu.memory_space<vmem>>, vector<1x8x128xbf16>
    %531 = vector.shape_cast %530 : vector<1x8x128xbf16> to vector<8x128xbf16>
    %532 = vector.shape_cast %529 : vector<8x128xbf16> to vector<1x8x128xbf16>
    tpu.vector_store %arg17[%c7, %c0_119, %c0_120], %532 {strides = array<i32>} : memref<8x8x128xbf16, #tpu.memory_space<vmem>>, vector<1x8x128xbf16>,
    return
  }
  func.func @transform_0(%arg0: i32) -> (i32, i32) {
    %c0_i32 = arith.constant 0 : i32
    %c0_i32_0 = arith.constant 0 : i32
    %c0_i32_1 = arith.constant 0 : i32
    return %c0_i32, %c0_i32_0 : i32, i32
  }
  func.func @transform_1(%arg0: i32) -> (i32, i32) {
    %c0_i32 = arith.constant 0 : i32
    %c0_i32_0 = arith.constant 0 : i32
    %c0_i32_1 = arith.constant 0 : i32
    return %c0_i32, %c0_i32_0 : i32, i32
  }
  func.func @transform_2(%arg0: i32) -> (i32, i32) {
    %c0_i32 = arith.constant 0 : i32
    %c0_i32_0 = arith.constant 0 : i32
    %c0_i32_1 = arith.constant 0 : i32
    return %c0_i32, %c0_i32_0 : i32, i32
  }
  func.func @transform_3(%arg0: i32) -> (i32, i32) {
    %c0_i32 = arith.constant 0 : i32
    %c0_i32_0 = arith.constant 0 : i32
    %c0_i32_1 = arith.constant 0 : i32
    return %c0_i32, %c0_i32_0 : i32, i32
  }
  func.func @transform_4(%arg0: i32) -> (i32, i32) {
    %c0_i32 = arith.constant 0 : i32
    %c0_i32_0 = arith.constant 0 : i32
    %c0_i32_1 = arith.constant 0 : i32
    return %c0_i32, %c0_i32_0 : i32, i32
  }
  func.func @transform_5(%arg0: i32) -> (i32, i32) {
    %c0_i32 = arith.constant 0 : i32
    %c0_i32_0 = arith.constant 0 : i32
    %c0_i32_1 = arith.constant 0 : i32
    return %c0_i32, %c0_i32_0 : i32, i32
  }
  func.func @transform_6(%arg0: i32) -> (i32, i32) {
    %c0_i32 = arith.constant 0 : i32
    %c0_i32_0 = arith.constant 0 : i32
    %c0_i32_1 = arith.constant 0 : i32
    return %c0_i32, %c0_i32_0 : i32, i32
  }
  func.func @transform_7(%arg0: i32) -> (i32, i32) {
    %c0_i32 = arith.constant 0 : i32
    %c0_i32_0 = arith.constant 0 : i32
    %c0_i32_1 = arith.constant 0 : i32
    return %c0_i32, %c0_i32_0 : i32, i32
  }
  func.func @transform_8(%arg0: i32) -> (i32, i32) {
    %c0_i32 = arith.constant 0 : i32
    %c0_i32_0 = arith.constant 0 : i32
    %c0_i32_1 = arith.constant 0 : i32
    return %c0_i32, %c0_i32_0 : i32, i32
  }
  func.func @transform_9(%arg0: i32) -> (i32, i32) {
    %c0_i32 = arith.constant 0 : i32
    %c0_i32_0 = arith.constant 0 : i32
    %c0_i32_1 = arith.constant 0 : i32
    return %c0_i32, %c0_i32_0 : i32, i32
  }
  func.func @transform_10(%arg0: i32) -> (i32, i32) {
    %c0_i32 = arith.constant 0 : i32
    %c0_i32_0 = arith.constant 0 : i32
    %c0_i32_1 = arith.constant 0 : i32
    return %c0_i32, %c0_i32_0 : i32, i32
  }
  func.func @transform_11(%arg0: i32) -> (i32, i32) {
    %c0_i32 = arith.constant 0 : i32
    %c0_i32_0 = arith.constant 0 : i32
    %c0_i32_1 = arith.constant 0 : i32
    return %c0_i32, %c0_i32_0 : i32, i32
  }
  func.func @transform_12(%arg0: i32) -> (i32, i32) {
    %c0_i32 = arith.constant 0 : i32
    %c0_i32_0 = arith.constant 0 : i32
    %c0_i32_1 = arith.constant 0 : i32
    return %c0_i32, %c0_i32_0 : i32, i32
  }
  func.func @transform_13(%arg0: i32) -> (i32, i32) {
    %c0_i32 = arith.constant 0 : i32
    %c0_i32_0 = arith.constant 0 : i32
    %c0_i32_1 = arith.constant 0 : i32
    return %c0_i32, %c0_i32_0 : i32, i32
  }
  func.func @transform_14(%arg0: i32) -> (i32, i32) {
    %c0_i32 = arith.constant 0 : i32
    %c0_i32_0 = arith.constant 0 : i32
    %c0_i32_1 = arith.constant 0 : i32
    return %c0_i32, %c0_i32_0 : i32, i32
  }
  func.func @transform_15(%arg0: i32) -> (i32, i32) {
    %c0_i32 = arith.constant 0 : i32
    %c0_i32_0 = arith.constant 0 : i32
    %c0_i32_1 = arith.constant 0 : i32
    return %c0_i32, %c0_i32_0 : i32, i32
  }
  func.func @transform_16(%arg0: i32) -> (i32, i32, i32) {
    %c0_i32 = arith.constant 0 : i32
    %c0_i32_0 = arith.constant 0 : i32
    %c0_i32_1 = arith.constant 0 : i32
    %c0_i32_2 = arith.constant 0 : i32
    return %c0_i32, %c0_i32_0, %c0_i32_1 : i32, i32, i32
  }
}

</mosaic_0001>

<llo_original>
// kernel: forward.3
$region0: #{forward.3}
  #allocation0 [shape = 'u32[]', space=smem, size = 0x4, offset = 0x4, fixed_abs, tag = 'smem constant byte address 0x4 - core index']
  #allocation1 [shape = 'u32[144,128]{1,0:T(1,128)}', space=vmem, size = 0x12000, scoped, tag = 'internal scratch']
  %s0 = inlined_call_operand.vmem [shape: bf16[64,128], index: 0, kind: input, shape index: {}]
  %s1 = inlined_call_operand.vmem [shape: bf16[128,256], index: 1, kind: input, shape index: {}]
  %s2 = inlined_call_operand.vmem [shape: f32[1,256], index: 2, kind: input, shape index: {}]
  %s3 = inlined_call_operand.hbm [shape: bf16[64,256], index: 3, kind: output, shape index: {}]
  %s4 = sld [smem:[#allocation0]]
  $region86: #{forward.3} parent=0
    _
  %s6 = ssub.s32 1, %s4
  %s7 = scalar_select 0, %s6, %s4
  $region1: #{forward.3} parent=0
    #allocation2 [shape = 'u8[65536]{0}', space=vmem, size = 0x10000, scoped, tag = 'input window, operand 1']
    #allocation3 [shape = 'u8[32768]{0}', space=vmem, size = 0x8000, scoped, tag = 'output window, operand 0']
    #allocation4 [shape = 's32[2]{0}', space=sflag, size = 0x8, scoped, tag = 'scoped memory for forward.3']
    %8 = vsyncpa [#allocation4], 0
    %s9 = scalar_lea.sflag [#allocation4], 1
    %10 = vsyncpa %s9, 0
    loop: start=0, step=1, limit=4
    $region2: #{forward.3} parent=1 // loop_pre_header
      _
    $region3: #{forward.3} parent=1 // loop_header
      %s12 = sphi 0, %s16
      %p13 = scmp.ge.s32.totalorder %s12, 4
      %s19 = sphi 0, %s31
      %s20 = sphi 0, %s27
      %s21 = sphi 0, %s19
      %s22 = sphi 0, %s20
      %s23 = sphi 0, %s21
      %s24 = sphi 0, %s22
      %s34 = sphi 0, %s36
      %s37 = sphi 0, %s34
      %s38 = sphi 0, %s37
      %s54 = sphi 0, %s38
      %s60 = sphi 0, %s62
      %s63 = sphi 0, %s60
      %s64 = sphi 0, %s63
      %s80 = sphi 0, %s64
      %s86 = sphi 0, %s88
      %s89 = sphi 0, %s86
      %s90 = sphi 0, %s89
      %s106 = sphi 0, %s90
      %s114 = sphi 0, %s116
      %s117 = sphi 0, %s114
      %s118 = sphi 0, %s117
      %s134 = sphi 0, %s118
    $region4: #{forward.3} parent=1 // loop_header_branch
      %15 = sbr.rel (%p13) target = $region8
    $region5: #{forward.3} parent=1 // loop_body
      %s17 = ssub.s32 %s12, 1
      %s18 = ssub.s32 %s12, 2
      %s25 = sadd.s32 1, %s20
      %p26 = scmp.ge.s32.totalorder %s25, 2
      %s27 = scalar_select %p26, 0, %s25
      %s28 = sadd.s32 1, %s19
      %s29 = scalar_select %p26, %s28, %s19
      %p30 = scmp.ge.s32.totalorder %s29, 1
      %s31 = scalar_select %p30, 0, %s29
      %s32 = ssub.s32 %s19, %s31
      %p33 = scmp.eq.s32.totalorder %s32, 0
      %s35 = sadd.s32 %s34, 1
      %s36 = scalar_select %p33, %s34, %s35
      %p39 = pneg %p33
      %p40 = scmp.eq.s32.totalorder %s12, 1
      %p41 = por %p39, %p40
      %p42 = scmp.ne.s32.totalorder %s34, %s37
      %p43 = scmp.eq.s32.totalorder %s12, 0
      %p44 = por %p42, %p43
      %p45 = scmp.ne.s32.totalorder %s34, %s37
      %p46 = scmp.eq.s32.totalorder %s17, 1
      %p47 = por %p45, %p46
      %p48 = scmp.ne.s32.totalorder %s37, %s38
      %p49 = scmp.eq.s32.totalorder %s17, 0
      %p50 = por %p48, %p49
      %p51 = scmp.ne.s32.totalorder %s37, %s38
      %p52 = scmp.eq.s32.totalorder %s18, 1
      %p53 = por %p51, %p52
      %p55 = scmp.ne.s32.totalorder %s38, %s54
      %p56 = scmp.eq.s32.totalorder %s18, 0
      %p57 = por %p55, %p56
      %s58 = ssub.s32 %s20, %s27
      %p59 = scmp.eq.s32.totalorder %s58, 0
      %s61 = sadd.s32 %s60, 1
      %s62 = scalar_select %p59, %s60, %s61
      %p65 = pneg %p59
      %p66 = scmp.eq.s32.totalorder %s12, 1
      %p67 = por %p65, %p66
      %p68 = scmp.ne.s32.totalorder %s60, %s63
      %p69 = scmp.eq.s32.totalorder %s12, 0
      %p70 = por %p68, %p69
      %p71 = scmp.ne.s32.totalorder %s60, %s63
      %p72 = scmp.eq.s32.totalorder %s17, 1
      %p73 = por %p71, %p72
      %p74 = scmp.ne.s32.totalorder %s63, %s64
      %p75 = scmp.eq.s32.totalorder %s17, 0
      %p76 = por %p74, %p75
      %p77 = scmp.ne.s32.totalorder %s63, %s64
      %p78 = scmp.eq.s32.totalorder %s18, 1
      %p79 = por %p77, %p78
      %p81 = scmp.ne.s32.totalorder %s64, %s80
      %p82 = scmp.eq.s32.totalorder %s18, 0
      %p83 = por %p81, %p82
      %s84 = ssub.s32 %s20, %s27
      %p85 = scmp.eq.s32.totalorder %s84, 0
      %s87 = sadd.s32 %s86, 1
      %s88 = scalar_select %p85, %s86, %s87
      %p91 = pneg %p85
      %p92 = scmp.eq.s32.totalorder %s12, 1
      %p93 = por %p91, %p92
      %p94 = scmp.ne.s32.totalorder %s86, %s89
      %p95 = scmp.eq.s32.totalorder %s12, 0
      %p96 = por %p94, %p95
      %p97 = scmp.ne.s32.totalorder %s86, %s89
      %p98 = scmp.eq.s32.totalorder %s17, 1
      %p99 = por %p97, %p98
      %p100 = scmp.ne.s32.totalorder %s89, %s90
      %p101 = scmp.eq.s32.totalorder %s17, 0
      %p102 = por %p100, %p101
      %p103 = scmp.ne.s32.totalorder %s89, %s90
      %p104 = scmp.eq.s32.totalorder %s18, 1
      %p105 = por %p103, %p104
      %p107 = scmp.ne.s32.totalorder %s90, %s106
      %p108 = scmp.eq.s32.totalorder %s18, 0
      %p109 = por %p107, %p108
      %s110 = ssub.s32 %s19, %s31
      %s111 = ssub.s32 %s20, %s27
      %s112 = sor.u32 %s110, %s111
      %p113 = scmp.eq.s32.totalorder %s112, 0
      %s115 = sadd.s32 %s114, 1
      %s116 = scalar_select %p113, %s114, %s115
      %p119 = pneg %p113
      %p120 = scmp.eq.s32.totalorder %s12, 1
      %p121 = por %p119, %p120
      %p122 = scmp.ne.s32.totalorder %s114, %s117
      %p123 = scmp.eq.s32.totalorder %s12, 0
      %p124 = por %p122, %p123
      %p125 = scmp.ne.s32.totalorder %s114, %s117
      %p126 = scmp.eq.s32.totalorder %s17, 1
      %p127 = por %p125, %p126
      %p128 = scmp.ne.s32.totalorder %s117, %s118
      %p129 = scmp.eq.s32.totalorder %s17, 0
      %p130 = por %p128, %p129
      %p131 = scmp.ne.s32.totalorder %s117, %s118
      %p132 = scmp.eq.s32.totalorder %s18, 1
      %p133 = por %p131, %p132
      %p135 = scmp.ne.s32.totalorder %s118, %s134
      %p136 = scmp.eq.s32.totalorder %s18, 0
      %p137 = por %p135, %p136
      %p138 = scmp.le.s32.totalorder 1, %s12
      %p139 = scmp.lt.s32.totalorder %s12, 3
      %p140 = pnand %p138, %p139
      %p141 = pneg %p140
      // Predicated region
      $region9: #{forward.3} parent=5 // pred_check
        _
      $region10: #{forward.3} parent=5 // pred_check_branch
        %143 = sbr.rel (%p140) target = $region12
      $region11: #{forward.3} parent=5 // pred_region
        %s144 = ssub.s32 %s12, 1
        // Predicated region
        $region13: #{forward.3} parent=11 // pred_check
          %p145 = pneg %p50
        $region14: #{forward.3} parent=11 // pred_check_branch
          %147 = sbr.rel (%p145) target = $region16
        $region15: #{forward.3} parent=11 // pred_region
          %s148 = smul.u32 8, %s21
          %p149 = scmp.lt.s32.totalorder %s148, 7
          %s150 = scalar_select %p149, %s148, 7
          %s151 = smul.addr %s150, 4
          %s152 = scalar_lea.vmem %s0, %s151
          %s153 = smul.u32 8, %s21
        $region16: #{forward.3} parent=11 // pred_fallthru
          _
      $region12: #{forward.3} parent=5 // pred_fallthru
        _
      %p154 = scmp.lt.s32.totalorder %s12, 2
      // Predicated region
      $region17: #{forward.3} parent=5 // pred_check
        %p155 = pneg %p154
      $region18: #{forward.3} parent=5 // pred_check_branch
        %157 = sbr.rel (%p155) target = $region20
      $region19: #{forward.3} parent=5 // pred_region
        // Predicated region
        $region21: #{forward.3} parent=19 // pred_check
          %p158 = pneg %p70
        $region22: #{forward.3} parent=19 // pred_check_branch
          %160 = sbr.rel (%p158) target = $region24
        $region23: #{forward.3} parent=19 // pred_region
          %s161 = sand.u32 %s60, 1
          %s162 = sand.u32 %s60, 1
          %s163 = smul.addr %s162, 64
          %s164 = scalar_lea.vmem [#allocation2], %s163
          %s165 = smul.addr %s20, 4
          %s166 = scalar_lea.vmem %s1, %s165
          // Predicated region
          $region25: #{forward.3} parent=23 // pred_check
            _
          $region26: #{forward.3} parent=23 // pred_check_branch
            %168 = sbr.rel (0) target = $region28
          $region27: #{forward.3} parent=23 // pred_region
            // Predicated region
            $region29: #{forward.3} parent=27 // pred_check
              _
            $region30: #{forward.3} parent=27 // pred_check_branch
              %170 = sbr.rel target = $region32
            $region31: #{forward.3} parent=27 // pred_region
              // Predicated region
              $region44: #{forward.3} parent=31 // pred_check
                _
              $region45: #{forward.3} parent=31 // pred_check_branch
                %215 = sbr.rel (0) target = $region47
              $region46: #{forward.3} parent=31 // pred_region
                loop: start=0, step=1, limit=1
                $region48: #{forward.3} parent=46 // loop_pre_header
                  _
                $region49: #{forward.3} parent=46 // loop_header
                  %s217 = sphi 0, %s221
                  %p218 = scmp.ge.s32.totalorder %s217, 1
                  %s222 = sphi %s166, %s166
                  %s223 = sphi %s164, %s164
                $region50: #{forward.3} parent=46 // loop_header_branch
                  %220 = sbr.rel (%p218) target = $region54
                $region51: #{forward.3} parent=46 // loop_body
                  _
                $region52: #{forward.3} parent=46 // loop_footer
                  %s221 = sadd.s32 1, %s217
                $region53: #{forward.3} parent=46 // loop_footer_branch
                  %216 = sbr.rel target = $region49
                $region54: #{forward.3} parent=46 // loop_exit
                  _
                loop: start=0, step=1, limit=1
                $region55: #{forward.3} parent=46 // loop_pre_header
                  _
                $region56: #{forward.3} parent=46 // loop_header
                  %s226 = sphi 0, %s230
                  %p227 = scmp.ge.s32.totalorder %s226, 1
                  %s231 = sphi %s166, %s166
                  %s232 = sphi %s164, %s164
                $region57: #{forward.3} parent=46 // loop_header_branch
                  %229 = sbr.rel (%p227) target = $region61
                $region58: #{forward.3} parent=46 // loop_body
                  %v233 = vld [vmem:[%s231] sm:$0xf]
                  %234 = vst [vmem:[%s232] sm:$0xf] %v233
                  %v235 = vld [vmem:[%s231 + $0x8] sm:$0xf]
                  %236 = vst [vmem:[%s232 + $0x4] sm:$0xf] %v235
                  %v237 = vld [vmem:[%s231 + $0x10] sm:$0xf]
                  %238 = vst [vmem:[%s232 + $0x8] sm:$0xf] %v237
                  %v239 = vld [vmem:[%s231 + $0x18] sm:$0xf]
                  %240 = vst [vmem:[%s232 + $0xc] sm:$0xf] %v239
                  %v241 = vld [vmem:[%s231 + $0x20] sm:$0xf]
                  %242 = vst [vmem:[%s232 + $0x10] sm:$0xf] %v241
                  %v243 = vld [vmem:[%s231 + $0x28] sm:$0xf]
                  %244 = vst [vmem:[%s232 + $0x14] sm:$0xf] %v243
                  %v245 = vld [vmem:[%s231 + $0x30] sm:$0xf]
                  %246 = vst [vmem:[%s232 + $0x18] sm:$0xf] %v245
                  %v247 = vld [vmem:[%s231 + $0x38] sm:$0xf]
                  %248 = vst [vmem:[%s232 + $0x1c] sm:$0xf] %v247
                  %v249 = vld [vmem:[%s231 + $0x40] sm:$0xf]
                  %250 = vst [vmem:[%s232 + $0x20] sm:$0xf] %v249
                  %v251 = vld [vmem:[%s231 + $0x48] sm:$0xf]
                  %252 = vst [vmem:[%s232 + $0x24] sm:$0xf] %v251
                  %v253 = vld [vmem:[%s231 + $0x50] sm:$0xf]
                  %254 = vst [vmem:[%s232 + $0x28] sm:$0xf] %v253
                  %v255 = vld [vmem:[%s231 + $0x58] sm:$0xf]
                  %256 = vst [vmem:[%s232 + $0x2c] sm:$0xf] %v255
                  %v257 = vld [vmem:[%s231 + $0x60] sm:$0xf]
                  %258 = vst [vmem:[%s232 + $0x30] sm:$0xf] %v257
                  %v259 = vld [vmem:[%s231 + $0x68] sm:$0xf]
                  %260 = vst [vmem:[%s232 + $0x34] sm:$0xf] %v259
                  %v261 = vld [vmem:[%s231 + $0x70] sm:$0xf]
                  %262 = vst [vmem:[%s232 + $0x38] sm:$0xf] %v261
                  %v263 = vld [vmem:[%s231 + $0x78] sm:$0xf]
                  %264 = vst [vmem:[%s232 + $0x3c] sm:$0xf] %v263
                $region59: #{forward.3} parent=46 // loop_footer
                  %s230 = sadd.s32 1, %s226
                $region60: #{forward.3} parent=46 // loop_footer_branch
                  %225 = sbr.rel target = $region56
                $region61: #{forward.3} parent=46 // loop_exit
                  _
              $region47: #{forward.3} parent=31 // pred_fallthru
                _
            $region32: #{forward.3} parent=27 // pred_fallthru
              _
            // Predicated region
            $region33: #{forward.3} parent=27 // pred_check
              _
            $region34: #{forward.3} parent=27 // pred_check_branch
              %172 = sbr.rel (0) target = $region36
            $region35: #{forward.3} parent=27 // pred_region
              loop: start=0, step=1, limit=1
              $region37: #{forward.3} parent=35 // loop_pre_header
                _
              $region38: #{forward.3} parent=35 // loop_header
                %s175 = sphi 0, %s179
                %p176 = scmp.ge.s32.totalorder %s175, 1
                %s180 = sphi %s166, %s166
                %s181 = sphi %s164, %s164
              $region39: #{forward.3} parent=35 // loop_header_branch
                %178 = sbr.rel (%p176) target = $region43
              $region40: #{forward.3} parent=35 // loop_body
                %v182 = vld [vmem:[%s180] sm:$0xf]
                %183 = vst [vmem:[%s181] sm:$0xf] %v182
                %v184 = vld [vmem:[%s180 + $0x8] sm:$0xf]
                %185 = vst [vmem:[%s181 + $0x4] sm:$0xf] %v184
                %v186 = vld [vmem:[%s180 + $0x10] sm:$0xf]
                %187 = vst [vmem:[%s181 + $0x8] sm:$0xf] %v186
                %v188 = vld [vmem:[%s180 + $0x18] sm:$0xf]
                %189 = vst [vmem:[%s181 + $0xc] sm:$0xf] %v188
                %v190 = vld [vmem:[%s180 + $0x20] sm:$0xf]
                %191 = vst [vmem:[%s181 + $0x10] sm:$0xf] %v190
                %v192 = vld [vmem:[%s180 + $0x28] sm:$0xf]
                %193 = vst [vmem:[%s181 + $0x14] sm:$0xf] %v192
                %v194 = vld [vmem:[%s180 + $0x30] sm:$0xf]
                %195 = vst [vmem:[%s181 + $0x18] sm:$0xf] %v194
                %v196 = vld [vmem:[%s180 + $0x38] sm:$0xf]
                %197 = vst [vmem:[%s181 + $0x1c] sm:$0xf] %v196
                %v198 = vld [vmem:[%s180 + $0x40] sm:$0xf]
                %199 = vst [vmem:[%s181 + $0x20] sm:$0xf] %v198
                %v200 = vld [vmem:[%s180 + $0x48] sm:$0xf]
                %201 = vst [vmem:[%s181 + $0x24] sm:$0xf] %v200
                %v202 = vld [vmem:[%s180 + $0x50] sm:$0xf]
                %203 = vst [vmem:[%s181 + $0x28] sm:$0xf] %v202
                %v204 = vld [vmem:[%s180 + $0x58] sm:$0xf]
                %205 = vst [vmem:[%s181 + $0x2c] sm:$0xf] %v204
                %v206 = vld [vmem:[%s180 + $0x60] sm:$0xf]
                %207 = vst [vmem:[%s181 + $0x30] sm:$0xf] %v206
                %v208 = vld [vmem:[%s180 + $0x68] sm:$0xf]
                %209 = vst [vmem:[%s181 + $0x34] sm:$0xf] %v208
                %v210 = vld [vmem:[%s180 + $0x70] sm:$0xf]
                %211 = vst [vmem:[%s181 + $0x38] sm:$0xf] %v210
                %v212 = vld [vmem:[%s180 + $0x78] sm:$0xf]
                %213 = vst [vmem:[%s181 + $0x3c] sm:$0xf] %v212
              $region41: #{forward.3} parent=35 // loop_footer
                %s179 = sadd.s32 1, %s175
              $region42: #{forward.3} parent=35 // loop_footer_branch
                %174 = sbr.rel target = $region38
              $region43: #{forward.3} parent=35 // loop_exit
                _
            $region36: #{forward.3} parent=27 // pred_fallthru
              _
          $region28: #{forward.3} parent=23 // pred_fallthru
            _
          %265 = vnop
        $region24: #{forward.3} parent=19 // pred_fallthru
          _
        // Predicated region
        $region62: #{forward.3} parent=19 // pred_check
          %p266 = pneg %p96
        $region63: #{forward.3} parent=19 // pred_check_branch
          %268 = sbr.rel (%p266) target = $region65
        $region64: #{forward.3} parent=19 // pred_region
          %p269 = scmp.lt.s32.totalorder %s20, 1
          %s270 = scalar_select %p269, %s20, 1
          %s271 = scalar_lea.vmem %s2, %s270
        $region65: #{forward.3} parent=19 // pred_fallthru
          _
      $region20: #{forward.3} parent=5 // pred_fallthru
        _
      %p272 = scmp.le.s32.totalorder 1, %s12
      %p273 = scmp.lt.s32.totalorder %s12, 3
      %p274 = pnand %p272, %p273
      %p275 = pneg %p274
      // Predicated region
      $region66: #{forward.3} parent=5 // pred_check
        _
      $region67: #{forward.3} parent=5 // pred_check_branch
        %277 = sbr.rel (%p274) target = $region69
      $region68: #{forward.3} parent=5 // pred_region
        %s278 = ssub.s32 %s12, 1
        %s279 = sand.u32 %s63, 1
        %s280 = sand.u32 %s63, 1
        %s281 = smul.addr %s280, 64
        %s282 = scalar_lea.vmem [#allocation2], %s281
        // Predicated region
        $region70: #{forward.3} parent=68 // pred_check
          %p283 = pneg %p76
        $region71: #{forward.3} parent=68 // pred_check_branch
          %285 = sbr.rel (%p283) target = $region73
        $region72: #{forward.3} parent=68 // pred_region
          _
        $region73: #{forward.3} parent=68 // pred_fallthru
          _
        %s286 = smul.u32 8, %s21
        %p287 = scmp.lt.s32.totalorder %s286, 7
        %s288 = scalar_select %p287, %s286, 7
        %s289 = smul.addr %s288, 4
        %s290 = scalar_lea.vmem %s0, %s289
        %p291 = pneg %p50
        %p292 = pneg %p47
        %s293 = sand.u32 %s63, 1
        %s294 = sand.u32 %s63, 1
        %s295 = smul.addr %s294, 64
        %s296 = scalar_lea.vmem [#allocation2], %s295
        %p297 = pneg %p76
        %p298 = pneg %p73
        %p299 = scmp.lt.s32.totalorder %s22, 1
        %s300 = scalar_select %p299, %s22, 1
        %s301 = scalar_lea.vmem %s2, %s300
        %p302 = pneg %p102
        %p303 = pneg %p99
        %p304 = pneg %p130
        %p305 = pneg %p127
        %s306 = sand.u32 %s117, 1
        %s307 = scalar_lea.sflag [#allocation4], %s306
        %s308 = sand.u32 %s117, 1
        %s309 = smul.addr %s308, 32
        %s310 = scalar_lea.vmem [#allocation3], %s309
        %s311 = smul.u32 8, %s21
        %p312 = scmp.lt.s32.totalorder %s311, 7
        %s313 = scalar_select %p312, %s311, 7
        %s314 = smul.addr %s313, 4
        %s315 = scalar_lea.vmem %s0, %s314
        %s316 = smul.u32 8, %s21
        %p317 = scmp.lt.s32.totalorder %s22, 1
        %s318 = scalar_select %p317, %s22, 1
        %s319 = scalar_lea.vmem %s2, %s318
        %s320 = smul.u32 8, %s21
        %v322 = vld [vmem:[%s315] sm:$0xf]
        %v323 = vld [vmem:[%s315 + $0x4] sm:$0xf]
        %v324 = vld [vmem:[%s315 + $0x8] sm:$0xf]
        %v325 = vld [vmem:[%s315 + $0xc] sm:$0xf]
        %v326 = vld [vmem:[%s315 + $0x10] sm:$0xf]
        %v327 = vld [vmem:[%s315 + $0x14] sm:$0xf]
        %v328 = vld [vmem:[%s315 + $0x18] sm:$0xf]
        %v329 = vld [vmem:[%s315 + $0x1c] sm:$0xf]
        %v330 = vld [vmem:[%s282] sm:$0xf]
        %v331 = vld [vmem:[%s282 + $0x4] sm:$0xf]
        %v332 = vld [vmem:[%s282 + $0x8] sm:$0xf]
        %v333 = vld [vmem:[%s282 + $0xc] sm:$0xf]
        %v334 = vld [vmem:[%s282 + $0x10] sm:$0xf]
        %v335 = vld [vmem:[%s282 + $0x14] sm:$0xf]
        %v336 = vld [vmem:[%s282 + $0x18] sm:$0xf]
        %v337 = vld [vmem:[%s282 + $0x1c] sm:$0xf]
        %v338 = vld [vmem:[%s282 + $0x20] sm:$0xf]
        %v339 = vld [vmem:[%s282 + $0x24] sm:$0xf]
        %v340 = vld [vmem:[%s282 + $0x28] sm:$0xf]
        %v341 = vld [vmem:[%s282 + $0x2c] sm:$0xf]
        %v342 = vld [vmem:[%s282 + $0x30] sm:$0xf]
        %v343 = vld [vmem:[%s282 + $0x34] sm:$0xf]
        %v344 = vld [vmem:[%s282 + $0x38] sm:$0xf]
        %v345 = vld [vmem:[%s282 + $0x3c] sm:$0xf]
        %v346 = vld [vmem:[%s319] sm:$0x1]
        %v348 = vlaneseq
        %v349 = vshrl.u32 %v348, 7
        %v350 = vsub.s32 0, %v349
        %v351 = vrot.slane %v346, %v350
        %v361 = vunpack.c.l.b16 %v322
        %v362 = vunpack.c.l.b16 %v323
        %v363 = vunpack.c.l.b16 %v324
        %v364 = vunpack.c.l.b16 %v325
        %v365 = vunpack.c.l.b16 %v326
        %v366 = vunpack.c.l.b16 %v327
        %v367 = vunpack.c.l.b16 %v328
        %v368 = vunpack.c.l.b16 %v329
        %v369 = vpack.c.b16 %v362, %v361
        %v370 = vpack.c.b16 %v364, %v363
        %v371 = vpack.c.b16 %v366, %v365
        %v372 = vpack.c.b16 %v368, %v367
        %v393 = vunpack.c.l.b16 %v330
        %v394 = vunpack.c.l.b16 %v331
        %v395 = vunpack.c.l.b16 %v332
        %v396 = vunpack.c.l.b16 %v333
        %v397 = vunpack.c.l.b16 %v334
        %v398 = vunpack.c.l.b16 %v335
        %v399 = vunpack.c.l.b16 %v336
        %v400 = vunpack.c.l.b16 %v337
        %v401 = vunpack.c.l.b16 %v338
        %v402 = vunpack.c.l.b16 %v339
        %v403 = vunpack.c.l.b16 %v340
        %v404 = vunpack.c.l.b16 %v341
        %v405 = vunpack.c.l.b16 %v342
        %v406 = vunpack.c.l.b16 %v343
        %v407 = vunpack.c.l.b16 %v344
        %v408 = vunpack.c.l.b16 %v345
        %v409 = vpack.c.b16 %v394, %v393
        %v410 = vpack.c.b16 %v396, %v395
        %v411 = vpack.c.b16 %v398, %v397
        %v412 = vpack.c.b16 %v400, %v399
        %v413 = vpack.c.b16 %v402, %v401
        %v414 = vpack.c.b16 %v404, %v403
        %v415 = vpack.c.b16 %v406, %v405
        %v416 = vpack.c.b16 %v408, %v407
        %425 = vmatprep.subr.bf16.mxu0 0
        %426 = vmatpush1.bf16.msra.mxu0 %v409
        %427 = vmatprep.subr.bf16.mxu0 0
        %428 = vmatpush1.bf16.msra.mxu0 %v410
        %429 = vmatprep.subr.bf16.mxu0 0
        %430 = vmatpush1.bf16.msra.mxu0 %v411
        %431 = vmatprep.subr.bf16.mxu0 0
        %432 = vmatpush1.bf16.msra.mxu0 %v412
        %433 = vmatprep.subr.bf16.mxu0 0
        %434 = vmatpush1.bf16.msra.mxu0 %v413
        %435 = vmatprep.subr.bf16.mxu0 0
        %436 = vmatpush1.bf16.msra.mxu0 %v414
        %437 = vmatprep.subr.bf16.mxu0 0
        %438 = vmatpush1.bf16.msra.mxu0 %v415
        %439 = vmatprep.subr.bf16.mxu0 0
        %440 = vmatpush1.bf16.msra.mxu0 %v416
        %441 = vmatprep.subr.bf16.mxu0 0
        %442 = vmatpush1.bf16.msra.mxu0 0
        %443 = vmatprep.subr.bf16.mxu0 0
        %444 = vmatpush1.bf16.msra.mxu0 0
        %445 = vmatprep.subr.bf16.mxu0 0
        %446 = vmatpush1.bf16.msra.mxu0 0
        %447 = vmatprep.subr.bf16.mxu0 0
        %448 = vmatpush1.bf16.msra.mxu0 0
        %449 = vmatprep.subr.bf16.mxu0 0
        %450 = vmatpush1.bf16.msra.mxu0 0
        %451 = vmatprep.subr.bf16.mxu0 0
        %452 = vmatpush1.bf16.msra.mxu0 0
        %453 = vmatprep.subr.bf16.mxu0 0
        %454 = vmatpush1.bf16.msra.mxu0 0
        %455 = vmatprep.subr.bf16.mxu0 0
        %456 = vmatpush1.bf16.msra.mxu0 0
        %457 = vmatprep.mubr.bf16.mxu0 0
        %458 = vmatmul.mubr.bf16.gmra.mrb[0].mxu0 %v369
        %v459 = vpop.f32.mrb[0].mxu0
        %v460 = vadd.f32 %v351, %v459
        %v461 = vpop.f32.mrb[0].mxu0
        %v462 = vpop.f32.mrb[0].mxu0
        %v463 = vadd.f32 %v351, %v462
        %v464 = vpop.f32.mrb[0].mxu0
        %465 = vmatprep.mubr.bf16.mxu0 0
        %466 = vmatmul.mubr.bf16.gmra.mrb[0].mxu0 %v370
        %v467 = vpop.f32.mrb[0].mxu0
        %v468 = vadd.f32 %v351, %v467
        %v469 = vpop.f32.mrb[0].mxu0
        %v470 = vpop.f32.mrb[0].mxu0
        %v471 = vadd.f32 %v351, %v470
        %v472 = vpop.f32.mrb[0].mxu0
        %473 = vmatprep.mubr.bf16.mxu0 0
        %474 = vmatmul.mubr.bf16.gmra.mrb[0].mxu0 %v371
        %v475 = vpop.f32.mrb[0].mxu0
        %v476 = vadd.f32 %v351, %v475
        %v477 = vpop.f32.mrb[0].mxu0
        %v478 = vpop.f32.mrb[0].mxu0
        %v479 = vadd.f32 %v351, %v478
        %v480 = vpop.f32.mrb[0].mxu0
        %481 = vmatprep.mubr.bf16.mxu0 0
        %482 = vmatmul.mubr.bf16.gmra.mrb[0].mxu0 %v372
        %v483 = vpop.f32.mrb[0].mxu0
        %v484 = vadd.f32 %v351, %v483
        %v485 = vpop.f32.mrb[0].mxu0
        %v486 = vpop.f32.mrb[0].mxu0
        %v487 = vadd.f32 %v351, %v486
        %v488 = vpop.f32.mrb[0].mxu0
        %489 = vdwg.mxu0
        %v490 = vpack.c.bf16 %v463, %v460
        %v491 = vpack.c.bf16 %v471, %v468
        %v492 = vpack.c.bf16 %v479, %v476
        %v493 = vpack.c.bf16 %v487, %v484
        %v498 = vunpack.c.l.b16 %v490
        %v499 = vunpack.c.h.b16 %v490
        %v500 = vunpack.c.l.b16 %v491
        %v501 = vunpack.c.h.b16 %v491
        %v502 = vunpack.c.l.b16 %v492
        %v503 = vunpack.c.h.b16 %v492
        %v504 = vunpack.c.l.b16 %v493
        %v505 = vunpack.c.h.b16 %v493
        %v506 = vpack.c.b16 %v498, %v498
        %v507 = vpack.c.b16 %v499, %v499
        %v508 = vpack.c.b16 %v500, %v500
        %v509 = vpack.c.b16 %v501, %v501
        %v510 = vpack.c.b16 %v502, %v502
        %v511 = vpack.c.b16 %v503, %v503
        %v512 = vpack.c.b16 %v504, %v504
        %v513 = vpack.c.b16 %v505, %v505
        %522 = vst [vmem:[%s310] sm:$0xf] %v506
        %523 = vst [vmem:[%s310 + $0x4] sm:$0xf] %v507
        %524 = vst [vmem:[%s310 + $0x8] sm:$0xf] %v508
        %525 = vst [vmem:[%s310 + $0xc] sm:$0xf] %v509
        %526 = vst [vmem:[%s310 + $0x10] sm:$0xf] %v510
        %527 = vst [vmem:[%s310 + $0x14] sm:$0xf] %v511
        %528 = vst [vmem:[%s310 + $0x18] sm:$0xf] %v512
        %529 = vst [vmem:[%s310 + $0x1c] sm:$0xf] %v513
        %s530 = sand.u32 %s117, 1
        %s531 = scalar_lea.sflag [#allocation4], %s530
        %s532 = sand.u32 %s117, 1
        %s533 = smul.addr %s532, 32
        %s534 = scalar_lea.vmem [#allocation3], %s533
        // Predicated region
        $region74: #{forward.3} parent=68 // pred_check
          %p535 = pneg %p127
        $region75: #{forward.3} parent=68 // pred_check_branch
          %537 = sbr.rel (%p535) target = $region77
        $region76: #{forward.3} parent=68 // pred_region
          %s538 = smul.u32 8, %s21
          %s540 = ssub.s32 512, 512
          %541 = vsyncadd %s531, %s540
          %s542 = smul.addr %s538, 2
          %s543 = sadd.s32 %s22, %s542
          %s544 = smul.addr %s543, 64
          %s545 = scalar_lea.hbm %s3, %s544
          %s546 = sshll.u32 %s534, 4
          %s547 = int_to_ptr.vmem [resolvable:$true] %s546
          %552 = dma.vmem_to_hbm [thread:$0]  %s547, 512, %s545, %s531, 64, 128, 4
        $region77: #{forward.3} parent=68 // pred_fallthru
          _
      $region69: #{forward.3} parent=5 // pred_fallthru
        _
      %p553 = scmp.le.s32.totalorder 2, %s12
      // Predicated region
      $region78: #{forward.3} parent=5 // pred_check
        %p554 = pneg %p553
      $region79: #{forward.3} parent=5 // pred_check_branch
        %556 = sbr.rel (%p554) target = $region81
      $region80: #{forward.3} parent=5 // pred_region
        %s557 = ssub.s32 %s12, 2
        // Predicated region
        $region82: #{forward.3} parent=80 // pred_check
          %p558 = pneg %p133
        $region83: #{forward.3} parent=80 // pred_check_branch
          %560 = sbr.rel (%p558) target = $region85
        $region84: #{forward.3} parent=80 // pred_region
          %s561 = sand.u32 %s118, 1
          %s562 = scalar_lea.sflag [#allocation4], %s561
          %s563 = sand.u32 %s118, 1
          %s564 = smul.addr %s563, 32
          %s565 = scalar_lea.vmem [#allocation3], %s564
          %566 = dma.done %s562, 512
        $region85: #{forward.3} parent=80 // pred_fallthru
          _
      $region81: #{forward.3} parent=5 // pred_fallthru
        _
    $region6: #{forward.3} parent=1 // loop_footer
      %s16 = sadd.s32 1, %s12
    $region7: #{forward.3} parent=1 // loop_footer_branch
      %11 = sbr.rel target = $region3
    $region8: #{forward.3} parent=1 // loop_exit
      _
    %567 = vsyncpa [#allocation4], 1
    %s568 = scalar_lea.sflag [#allocation4], 1
    %569 = vsyncpa %s568, 1

// kernel: forward.2
$region0: #{forward.2}
  #allocation0 [shape = 'u32[]', space=smem, size = 0x4, offset = 0x4, fixed_abs, tag = 'smem constant byte address 0x4 - core index']
  #allocation1 [shape = 'u32[144,128]{1,0:T(1,128)}', space=vmem, size = 0x12000, scoped, tag = 'internal scratch']
  %s0 = inlined_call_operand.vmem [shape: bf16[64,128], index: 0, kind: input, shape index: {}]
  %s1 = inlined_call_operand.vmem [shape: f32[8,32], index: 1, kind: input, shape index: {}]
  %s2 = inlined_call_operand.vmem [shape: f32[8,16], index: 2, kind: input, shape index: {}]
  %s3 = inlined_call_operand.vmem [shape: bf16[128,512], index: 3, kind: input, shape index: {}]
  %s4 = inlined_call_operand.vmem [shape: bf16[128,512], index: 4, kind: input, shape index: {}]
  %s5 = inlined_call_operand.vmem [shape: f32[1,512], index: 5, kind: input, shape index: {}]
  %s6 = inlined_call_operand.vmem [shape: bf16[128,64], index: 6, kind: input, shape index: {}]
  %s7 = inlined_call_operand.vmem [shape: f32[1,64], index: 7, kind: input, shape index: {}]
  %s8 = inlined_call_operand.vmem [shape: bf16[32,64], index: 8, kind: input, shape index: {}]
  %s9 = inlined_call_operand.vmem [shape: bf16[16,64], index: 9, kind: input, shape index: {}]
  %s10 = inlined_call_operand.vmem [shape: f32[1,64], index: 10, kind: input, shape index: {}]
  %s11 = inlined_call_operand.vmem [shape: bf16[64,512], index: 11, kind: input, shape index: {}]
  %s12 = inlined_call_operand.vmem [shape: bf16[128,512], index: 12, kind: input, shape index: {}]
  %s13 = inlined_call_operand.vmem [shape: f32[1,512], index: 13, kind: input, shape index: {}]
  %s14 = inlined_call_operand.hbm [shape: f32[8,32], index: 14, kind: output, shape index: {0}]
  %s15 = inlined_call_operand.hbm [shape: f32[8,32], index: 15, kind: output, shape index: {1}]
  %s16 = inlined_call_operand.vmem [shape: bf16[8,8,128], index: 16, kind: output, shape index: {2}]
  %17 = xla_tuple %s14, %s15, %s16
  %s18 = sld [smem:[#allocation0]]
  $region82: #{forward.2} parent=0
    _
  %s20 = ssub.s32 1, %s18
  %s21 = scalar_select 0, %s20, %s18
  $region1: #{forward.2} parent=0
    #allocation2 [shape = 'u8[4096]{0}', space=vmem, size = 0x1000, scoped, tag = 'output window, operand 0, single buffered']
    #allocation3 [shape = 's32[1]{0}', space=sflag, size = 0x4, scoped, tag = 'scoped memory for forward.2']
    #allocation4 [shape = 'u8[4096]{0}', space=vmem, size = 0x1000, scoped, tag = 'output window, operand 1, single buffered']
    #allocation5 [shape = 's32[1]{0}', space=sflag, size = 0x4, scoped, tag = 'scoped memory for forward.2']
    %22 = vsyncpa [#allocation3], 0
    %23 = vsyncpa [#allocation5], 0
    // Predicated region
    $region2: #{forward.2} parent=1 // pred_check
      _
    $region3: #{forward.2} parent=1 // pred_check_branch
      %25 = sbr.rel (0) target = $region5
    $region4: #{forward.2} parent=1 // pred_region
      _
    $region5: #{forward.2} parent=1 // pred_fallthru
      _
    // Predicated region
    $region6: #{forward.2} parent=1 // pred_check
      _
    $region7: #{forward.2} parent=1 // pred_check_branch
      %27 = sbr.rel (0) target = $region9
    $region8: #{forward.2} parent=1 // pred_region
      _
    $region9: #{forward.2} parent=1 // pred_fallthru
      _
    // Predicated region
    $region10: #{forward.2} parent=1 // pred_check
      _
    $region11: #{forward.2} parent=1 // pred_check_branch
      %29 = sbr.rel (0) target = $region13
    $region12: #{forward.2} parent=1 // pred_region
      _
    $region13: #{forward.2} parent=1 // pred_fallthru
      _
    // Predicated region
    $region14: #{forward.2} parent=1 // pred_check
      _
    $region15: #{forward.2} parent=1 // pred_check_branch
      %31 = sbr.rel (0) target = $region17
    $region16: #{forward.2} parent=1 // pred_region
      _
    $region17: #{forward.2} parent=1 // pred_fallthru
      _
    // Predicated region
    $region18: #{forward.2} parent=1 // pred_check
      _
    $region19: #{forward.2} parent=1 // pred_check_branch
      %33 = sbr.rel (0) target = $region21
    $region20: #{forward.2} parent=1 // pred_region
      _
    $region21: #{forward.2} parent=1 // pred_fallthru
      _
    // Predicated region
    $region22: #{forward.2} parent=1 // pred_check
      _
    $region23: #{forward.2} parent=1 // pred_check_branch
      %35 = sbr.rel (0) target = $region25
    $region24: #{forward.2} parent=1 // pred_region
      _
    $region25: #{forward.2} parent=1 // pred_fallthru
      _
    // Predicated region
    $region26: #{forward.2} parent=1 // pred_check
      _
    $region27: #{forward.2} parent=1 // pred_check_branch
      %37 = sbr.rel (0) target = $region29
    $region28: #{forward.2} parent=1 // pred_region
      _
    $region29: #{forward.2} parent=1 // pred_fallthru
      _
    // Predicated region
    $region30: #{forward.2} parent=1 // pred_check
      _
    $region31: #{forward.2} parent=1 // pred_check_branch
      %39 = sbr.rel (0) target = $region33
    $region32: #{forward.2} parent=1 // pred_region
      _
    $region33: #{forward.2} parent=1 // pred_fallthru
      _
    // Predicated region
    $region34: #{forward.2} parent=1 // pred_check
      _
    $region35: #{forward.2} parent=1 // pred_check_branch
      %41 = sbr.rel (0) target = $region37
    $region36: #{forward.2} parent=1 // pred_region
      _
    $region37: #{forward.2} parent=1 // pred_fallthru
      _
    // Predicated region
    $region38: #{forward.2} parent=1 // pred_check
      _
    $region39: #{forward.2} parent=1 // pred_check_branch
      %43 = sbr.rel (0) target = $region41
    $region40: #{forward.2} parent=1 // pred_region
      _
    $region41: #{forward.2} parent=1 // pred_fallthru
      _
    // Predicated region
    $region42: #{forward.2} parent=1 // pred_check
      _
    $region43: #{forward.2} parent=1 // pred_check_branch
      %45 = sbr.rel (0) target = $region45
    $region44: #{forward.2} parent=1 // pred_region
      _
    $region45: #{forward.2} parent=1 // pred_fallthru
      _
    // Predicated region
    $region46: #{forward.2} parent=1 // pred_check
      _
    $region47: #{forward.2} parent=1 // pred_check_branch
      %47 = sbr.rel (0) target = $region49
    $region48: #{forward.2} parent=1 // pred_region
      _
    $region49: #{forward.2} parent=1 // pred_fallthru
      _
    // Predicated region
    $region50: #{forward.2} parent=1 // pred_check
      _
    $region51: #{forward.2} parent=1 // pred_check_branch
      %49 = sbr.rel (0) target = $region53
    $region52: #{forward.2} parent=1 // pred_region
      _
    $region53: #{forward.2} parent=1 // pred_fallthru
      _
    // Predicated region
    $region54: #{forward.2} parent=1 // pred_check
      _
    $region55: #{forward.2} parent=1 // pred_check_branch
      %51 = sbr.rel (0) target = $region57
    $region56: #{forward.2} parent=1 // pred_region
      _
    $region57: #{forward.2} parent=1 // pred_fallthru
      _
    %v53 = vld [vmem:[%s4] sm:$0xff]
    %v54 = vld [vmem:[%s4 + $0x8] sm:$0xff]
    %v55 = vld [vmem:[%s4 + $0x10] sm:$0xff]
    %v56 = vld [vmem:[%s4 + $0x18] sm:$0xff]
    %v57 = vld [vmem:[%s4 + $0x20] sm:$0xff]
    %v58 = vld [vmem:[%s4 + $0x28] sm:$0xff]
    %v59 = vld [vmem:[%s4 + $0x30] sm:$0xff]
    %v60 = vld [vmem:[%s4 + $0x38] sm:$0xff]
    %v61 = vld [vmem:[%s4 + $0x40] sm:$0xff]
    %v62 = vld [vmem:[%s4 + $0x48] sm:$0xff]
    %v63 = vld [vmem:[%s4 + $0x50] sm:$0xff]
    %v64 = vld [vmem:[%s4 + $0x58] sm:$0xff]
    %v65 = vld [vmem:[%s4 + $0x60] sm:$0xff]
    %v66 = vld [vmem:[%s4 + $0x68] sm:$0xff]
    %v67 = vld [vmem:[%s4 + $0x70] sm:$0xff]
    %v68 = vld [vmem:[%s4 + $0x78] sm:$0xff]
    %v69 = vld [vmem:[%s4 + $0x80] sm:$0xff]
    %v70 = vld [vmem:[%s4 + $0x88] sm:$0xff]
    %v71 = vld [vmem:[%s4 + $0x90] sm:$0xff]
    %v72 = vld [vmem:[%s4 + $0x98] sm:$0xff]
    %v73 = vld [vmem:[%s4 + $0xa0] sm:$0xff]
    %v74 = vld [vmem:[%s4 + $0xa8] sm:$0xff]
    %v75 = vld [vmem:[%s4 + $0xb0] sm:$0xff]
    %v76 = vld [vmem:[%s4 + $0xb8] sm:$0xff]
    %v77 = vld [vmem:[%s4 + $0xc0] sm:$0xff]
    %v78 = vld [vmem:[%s4 + $0xc8] sm:$0xff]
    %v79 = vld [vmem:[%s4 + $0xd0] sm:$0xff]
    %v80 = vld [vmem:[%s4 + $0xd8] sm:$0xff]
    %v81 = vld [vmem:[%s4 + $0xe0] sm:$0xff]
    %v82 = vld [vmem:[%s4 + $0xe8] sm:$0xff]
    %v83 = vld [vmem:[%s4 + $0xf0] sm:$0xff]
    %v84 = vld [vmem:[%s4 + $0xf8] sm:$0xff]
    %v85 = vld [vmem:[%s0] sm:$0xf]
    %v86 = vld [vmem:[%s0 + $0x4] sm:$0xf]
    %v87 = vld [vmem:[%s0 + $0x8] sm:$0xf]
    %v88 = vld [vmem:[%s0 + $0xc] sm:$0xf]
    %v89 = vld [vmem:[%s0 + $0x10] sm:$0xf]
    %v90 = vld [vmem:[%s0 + $0x14] sm:$0xf]
    %v91 = vld [vmem:[%s0 + $0x18] sm:$0xf]
    %v92 = vld [vmem:[%s0 + $0x1c] sm:$0xf]
    %v93 = vld [vmem:[%s3] sm:$0xff]
    %v94 = vld [vmem:[%s3 + $0x8] sm:$0xff]
    %v95 = vld [vmem:[%s3 + $0x10] sm:$0xff]
    %v96 = vld [vmem:[%s3 + $0x18] sm:$0xff]
    %v97 = vld [vmem:[%s3 + $0x20] sm:$0xff]
    %v98 = vld [vmem:[%s3 + $0x28] sm:$0xff]
    %v99 = vld [vmem:[%s3 + $0x30] sm:$0xff]
    %v100 = vld [vmem:[%s3 + $0x38] sm:$0xff]
    %v101 = vld [vmem:[%s3 + $0x40] sm:$0xff]
    %v102 = vld [vmem:[%s3 + $0x48] sm:$0xff]
    %v103 = vld [vmem:[%s3 + $0x50] sm:$0xff]
    %v104 = vld [vmem:[%s3 + $0x58] sm:$0xff]
    %v105 = vld [vmem:[%s3 + $0x60] sm:$0xff]
    %v106 = vld [vmem:[%s3 + $0x68] sm:$0xff]
    %v107 = vld [vmem:[%s3 + $0x70] sm:$0xff]
    %v108 = vld [vmem:[%s3 + $0x78] sm:$0xff]
    %v109 = vld [vmem:[%s3 + $0x80] sm:$0xff]
    %v110 = vld [vmem:[%s3 + $0x88] sm:$0xff]
    %v111 = vld [vmem:[%s3 + $0x90] sm:$0xff]
    %v112 = vld [vmem:[%s3 + $0x98] sm:$0xff]
    %v113 = vld [vmem:[%s3 + $0xa0] sm:$0xff]
    %v114 = vld [vmem:[%s3 + $0xa8] sm:$0xff]
    %v115 = vld [vmem:[%s3 + $0xb0] sm:$0xff]
    %v116 = vld [vmem:[%s3 + $0xb8] sm:$0xff]
    %v117 = vld [vmem:[%s3 + $0xc0] sm:$0xff]
    %v118 = vld [vmem:[%s3 + $0xc8] sm:$0xff]
    %v119 = vld [vmem:[%s3 + $0xd0] sm:$0xff]
    %v120 = vld [vmem:[%s3 + $0xd8] sm:$0xff]
    %v121 = vld [vmem:[%s3 + $0xe0] sm:$0xff]
    %v122 = vld [vmem:[%s3 + $0xe8] sm:$0xff]
    %v123 = vld [vmem:[%s3 + $0xf0] sm:$0xff]
    %v124 = vld [vmem:[%s3 + $0xf8] sm:$0xff]
    %v125 = vld [vmem:[%s5] sm:$0xf]
    %v127 = vlaneseq
    %v128 = vshrl.u32 %v127, 7
    %v129 = vsub.s32 0, %v128
    %v130 = vrot.slane %v125, %v129
    %v131 = vlaneseq
    %v132 = vshrl.u32 %v131, 7
    %v133 = vsub.s32 1, %v132
    %v134 = vrot.slane %v125, %v133
    %v135 = vlaneseq
    %v136 = vshrl.u32 %v135, 7
    %v137 = vsub.s32 2, %v136
    %v138 = vrot.slane %v125, %v137
    %v139 = vlaneseq
    %v140 = vshrl.u32 %v139, 7
    %v141 = vsub.s32 3, %v140
    %v142 = vrot.slane %v125, %v141
    %v155 = vunpack.c.l.b16 %v85
    %v156 = vunpack.c.l.b16 %v86
    %v157 = vunpack.c.l.b16 %v87
    %v158 = vunpack.c.l.b16 %v88
    %v159 = vunpack.c.l.b16 %v89
    %v160 = vunpack.c.l.b16 %v90
    %v161 = vunpack.c.l.b16 %v91
    %v162 = vunpack.c.l.b16 %v92
    %v163 = vpack.c.b16 %v156, %v155
    %v164 = vpack.c.b16 %v158, %v157
    %v165 = vpack.c.b16 %v160, %v159
    %v166 = vpack.c.b16 %v162, %v161
    %v203 = vunpack.c.l.b16 %v93
    %v204 = vunpack.c.h.b16 %v93
    %v205 = vunpack.c.l.b16 %v94
    %v206 = vunpack.c.h.b16 %v94
    %v207 = vunpack.c.l.b16 %v95
    %v208 = vunpack.c.h.b16 %v95
    %v209 = vunpack.c.l.b16 %v96
    %v210 = vunpack.c.h.b16 %v96
    %v211 = vunpack.c.l.b16 %v97
    %v212 = vunpack.c.h.b16 %v97
    %v213 = vunpack.c.l.b16 %v98
    %v214 = vunpack.c.h.b16 %v98
    %v215 = vunpack.c.l.b16 %v99
    %v216 = vunpack.c.h.b16 %v99
    %v217 = vunpack.c.l.b16 %v100
    %v218 = vunpack.c.h.b16 %v100
    %v219 = vunpack.c.l.b16 %v101
    %v220 = vunpack.c.h.b16 %v101
    %v221 = vunpack.c.l.b16 %v102
    %v222 = vunpack.c.h.b16 %v102
    %v223 = vunpack.c.l.b16 %v103
    %v224 = vunpack.c.h.b16 %v103
    %v225 = vunpack.c.l.b16 %v104
    %v226 = vunpack.c.h.b16 %v104
    %v227 = vunpack.c.l.b16 %v105
    %v228 = vunpack.c.h.b16 %v105
    %v229 = vunpack.c.l.b16 %v106
    %v230 = vunpack.c.h.b16 %v106
    %v231 = vunpack.c.l.b16 %v107
    %v232 = vunpack.c.h.b16 %v107
    %v233 = vunpack.c.l.b16 %v108
    %v234 = vunpack.c.h.b16 %v108
    %v235 = vunpack.c.l.b16 %v109
    %v236 = vunpack.c.h.b16 %v109
    %v237 = vunpack.c.l.b16 %v110
    %v238 = vunpack.c.h.b16 %v110
    %v239 = vunpack.c.l.b16 %v111
    %v240 = vunpack.c.h.b16 %v111
    %v241 = vunpack.c.l.b16 %v112
    %v242 = vunpack.c.h.b16 %v112
    %v243 = vunpack.c.l.b16 %v113
    %v244 = vunpack.c.h.b16 %v113
    %v245 = vunpack.c.l.b16 %v114
    %v246 = vunpack.c.h.b16 %v114
    %v247 = vunpack.c.l.b16 %v115
    %v248 = vunpack.c.h.b16 %v115
    %v249 = vunpack.c.l.b16 %v116
    %v250 = vunpack.c.h.b16 %v116
    %v251 = vunpack.c.l.b16 %v117
    %v252 = vunpack.c.h.b16 %v117
    %v253 = vunpack.c.l.b16 %v118
    %v254 = vunpack.c.h.b16 %v118
    %v255 = vunpack.c.l.b16 %v119
    %v256 = vunpack.c.h.b16 %v119
    %v257 = vunpack.c.l.b16 %v120
    %v258 = vunpack.c.h.b16 %v120
    %v259 = vunpack.c.l.b16 %v121
    %v260 = vunpack.c.h.b16 %v121
    %v261 = vunpack.c.l.b16 %v122
    %v262 = vunpack.c.h.b16 %v122
    %v263 = vunpack.c.l.b16 %v123
    %v264 = vunpack.c.h.b16 %v123
    %v265 = vunpack.c.l.b16 %v124
    %v266 = vunpack.c.h.b16 %v124
    %v267 = vpack.c.b16 %v207, %v203
    %v268 = vpack.c.b16 %v208, %v204
    %v269 = vpack.c.b16 %v209, %v205
    %v270 = vpack.c.b16 %v210, %v206
    %v271 = vpack.c.b16 %v215, %v211
    %v272 = vpack.c.b16 %v216, %v212
    %v273 = vpack.c.b16 %v217, %v213
    %v274 = vpack.c.b16 %v218, %v214
    %v275 = vpack.c.b16 %v223, %v219
    %v276 = vpack.c.b16 %v224, %v220
    %v277 = vpack.c.b16 %v225, %v221
    %v278 = vpack.c.b16 %v226, %v222
    %v279 = vpack.c.b16 %v231, %v227
    %v280 = vpack.c.b16 %v232, %v228
    %v281 = vpack.c.b16 %v233, %v229
    %v282 = vpack.c.b16 %v234, %v230
    %v283 = vpack.c.b16 %v239, %v235
    %v284 = vpack.c.b16 %v240, %v236
    %v285 = vpack.c.b16 %v241, %v237
    %v286 = vpack.c.b16 %v242, %v238
    %v287 = vpack.c.b16 %v247, %v243
    %v288 = vpack.c.b16 %v248, %v244
    %v289 = vpack.c.b16 %v249, %v245
    %v290 = vpack.c.b16 %v250, %v246
    %v291 = vpack.c.b16 %v255, %v251
    %v292 = vpack.c.b16 %v256, %v252
    %v293 = vpack.c.b16 %v257, %v253
    %v294 = vpack.c.b16 %v258, %v254
    %v295 = vpack.c.b16 %v263, %v259
    %v296 = vpack.c.b16 %v264, %v260
    %v297 = vpack.c.b16 %v265, %v261
    %v298 = vpack.c.b16 %v266, %v262
    %331 = vmatprep.subr.bf16.mxu0 %v268
    %332 = vmatpush1.bf16.msra.mxu0 %v267
    %333 = vmatprep.subr.bf16.mxu0 %v272
    %334 = vmatpush1.bf16.msra.mxu0 %v271
    %335 = vmatprep.subr.bf16.mxu0 %v276
    %336 = vmatpush1.bf16.msra.mxu0 %v275
    %337 = vmatprep.subr.bf16.mxu0 %v280
    %338 = vmatpush1.bf16.msra.mxu0 %v279
    %339 = vmatprep.subr.bf16.mxu0 %v284
    %340 = vmatpush1.bf16.msra.mxu0 %v283
    %341 = vmatprep.subr.bf16.mxu0 %v288
    %342 = vmatpush1.bf16.msra.mxu0 %v287
    %343 = vmatprep.subr.bf16.mxu0 %v292
    %344 = vmatpush1.bf16.msra.mxu0 %v291
    %345 = vmatprep.subr.bf16.mxu0 %v296
    %346 = vmatpush1.bf16.msra.mxu0 %v295
    %347 = vmatprep.subr.bf16.mxu0 0
    %348 = vmatpush1.bf16.msra.mxu0 0
    %349 = vmatprep.subr.bf16.mxu0 0
    %350 = vmatpush1.bf16.msra.mxu0 0
    %351 = vmatprep.subr.bf16.mxu0 0
    %352 = vmatpush1.bf16.msra.mxu0 0
    %353 = vmatprep.subr.bf16.mxu0 0
    %354 = vmatpush1.bf16.msra.mxu0 0
    %355 = vmatprep.subr.bf16.mxu0 0
    %356 = vmatpush1.bf16.msra.mxu0 0
    %357 = vmatprep.subr.bf16.mxu0 0
    %358 = vmatpush1.bf16.msra.mxu0 0
    %359 = vmatprep.subr.bf16.mxu0 0
    %360 = vmatpush1.bf16.msra.mxu0 0
    %361 = vmatprep.subr.bf16.mxu0 0
    %362 = vmatpush1.bf16.msra.mxu0 0
    %363 = vmatprep.mubr.bf16.mxu0 0
    %364 = vmatmul.mubr.bf16.gmra.mrb[0].mxu0 %v163
    %v365 = vpop.f32.mrb[0].mxu0
    %v366 = vadd.f32 %v130, %v365
    %v367 = vpop.f32.mrb[0].mxu0
    %v368 = vadd.f32 %v134, %v367
    %v369 = vpop.f32.mrb[0].mxu0
    %v370 = vadd.f32 %v130, %v369
    %v371 = vpop.f32.mrb[0].mxu0
    %v372 = vadd.f32 %v134, %v371
    %373 = vmatprep.mubr.bf16.mxu0 0
    %374 = vmatmul.mubr.bf16.gmra.mrb[0].mxu0 %v164
    %v375 = vpop.f32.mrb[0].mxu0
    %v376 = vadd.f32 %v130, %v375
    %v377 = vpop.f32.mrb[0].mxu0
    %v378 = vadd.f32 %v134, %v377
    %v379 = vpop.f32.mrb[0].mxu0
    %v380 = vadd.f32 %v130, %v379
    %v381 = vpop.f32.mrb[0].mxu0
    %v382 = vadd.f32 %v134, %v381
    %383 = vmatprep.mubr.bf16.mxu0 0
    %384 = vmatmul.mubr.bf16.gmra.mrb[0].mxu0 %v165
    %v385 = vpop.f32.mrb[0].mxu0
    %v386 = vadd.f32 %v130, %v385
    %v387 = vpop.f32.mrb[0].mxu0
    %v388 = vadd.f32 %v134, %v387
    %v389 = vpop.f32.mrb[0].mxu0
    %v390 = vadd.f32 %v130, %v389
    %v391 = vpop.f32.mrb[0].mxu0
    %v392 = vadd.f32 %v134, %v391
    %393 = vmatprep.mubr.bf16.mxu0 0
    %394 = vmatmul.mubr.bf16.gmra.mrb[0].mxu0 %v166
    %v395 = vpop.f32.mrb[0].mxu0
    %v396 = vadd.f32 %v130, %v395
    %v397 = vpop.f32.mrb[0].mxu0
    %v398 = vadd.f32 %v134, %v397
    %v399 = vpop.f32.mrb[0].mxu0
    %v400 = vadd.f32 %v130, %v399
    %v401 = vpop.f32.mrb[0].mxu0
    %v402 = vadd.f32 %v134, %v401
    %403 = vdwg.mxu0
    %404 = vmatprep.subr.bf16.mxu0 %v270
    %405 = vmatpush1.bf16.msra.mxu0 %v269
    %406 = vmatprep.subr.bf16.mxu0 %v274
    %407 = vmatpush1.bf16.msra.mxu0 %v273
    %408 = vmatprep.subr.bf16.mxu0 %v278
    %409 = vmatpush1.bf16.msra.mxu0 %v277
    %410 = vmatprep.subr.bf16.mxu0 %v282
    %411 = vmatpush1.bf16.msra.mxu0 %v281
    %412 = vmatprep.subr.bf16.mxu0 %v286
    %413 = vmatpush1.bf16.msra.mxu0 %v285
    %414 = vmatprep.subr.bf16.mxu0 %v290
    %415 = vmatpush1.bf16.msra.mxu0 %v289
    %416 = vmatprep.subr.bf16.mxu0 %v294
    %417 = vmatpush1.bf16.msra.mxu0 %v293
    %418 = vmatprep.subr.bf16.mxu0 %v298
    %419 = vmatpush1.bf16.msra.mxu0 %v297
    %420 = vmatprep.subr.bf16.mxu0 0
    %421 = vmatpush1.bf16.msra.mxu0 0
    %422 = vmatprep.subr.bf16.mxu0 0
    %423 = vmatpush1.bf16.msra.mxu0 0
    %424 = vmatprep.subr.bf16.mxu0 0
    %425 = vmatpush1.bf16.msra.mxu0 0
    %426 = vmatprep.subr.bf16.mxu0 0
    %427 = vmatpush1.bf16.msra.mxu0 0
    %428 = vmatprep.subr.bf16.mxu0 0
    %429 = vmatpush1.bf16.msra.mxu0 0
    %430 = vmatprep.subr.bf16.mxu0 0
    %431 = vmatpush1.bf16.msra.mxu0 0
    %432 = vmatprep.subr.bf16.mxu0 0
    %433 = vmatpush1.bf16.msra.mxu0 0
    %434 = vmatprep.subr.bf16.mxu0 0
    %435 = vmatpush1.bf16.msra.mxu0 0
    %436 = vmatprep.mubr.bf16.mxu0 0
    %437 = vmatmul.mubr.bf16.gmra.mrb[0].mxu0 %v163
    %v438 = vpop.f32.mrb[0].mxu0
    %v439 = vadd.f32 %v138, %v438
    %v440 = vpop.f32.mrb[0].mxu0
    %v441 = vadd.f32 %v142, %v440
    %v442 = vpop.f32.mrb[0].mxu0
    %v443 = vadd.f32 %v138, %v442
    %v444 = vpop.f32.mrb[0].mxu0
    %v445 = vadd.f32 %v142, %v444
    %446 = vmatprep.mubr.bf16.mxu0 0
    %447 = vmatmul.mubr.bf16.gmra.mrb[0].mxu0 %v164
    %v448 = vpop.f32.mrb[0].mxu0
    %v449 = vadd.f32 %v138, %v448
    %v450 = vpop.f32.mrb[0].mxu0
    %v451 = vadd.f32 %v142, %v450
    %v452 = vpop.f32.mrb[0].mxu0
    %v453 = vadd.f32 %v138, %v452
    %v454 = vpop.f32.mrb[0].mxu0
    %v455 = vadd.f32 %v142, %v454
    %456 = vmatprep.mubr.bf16.mxu0 0
    %457 = vmatmul.mubr.bf16.gmra.mrb[0].mxu0 %v165
    %v458 = vpop.f32.mrb[0].mxu0
    %v459 = vadd.f32 %v138, %v458
    %v460 = vpop.f32.mrb[0].mxu0
    %v461 = vadd.f32 %v142, %v460
    %v462 = vpop.f32.mrb[0].mxu0
    %v463 = vadd.f32 %v138, %v462
    %v464 = vpop.f32.mrb[0].mxu0
    %v465 = vadd.f32 %v142, %v464
    %466 = vmatprep.mubr.bf16.mxu0 0
    %467 = vmatmul.mubr.bf16.gmra.mrb[0].mxu0 %v166
    %v468 = vpop.f32.mrb[0].mxu0
    %v469 = vadd.f32 %v138, %v468
    %v470 = vpop.f32.mrb[0].mxu0
    %v471 = vadd.f32 %v142, %v470
    %v472 = vpop.f32.mrb[0].mxu0
    %v473 = vadd.f32 %v138, %v472
    %v474 = vpop.f32.mrb[0].mxu0
    %v475 = vadd.f32 %v142, %v474
    %476 = vdwg.mxu0
    %v509 = vunpack.c.l.b16 %v53
    %v510 = vunpack.c.h.b16 %v53
    %v511 = vunpack.c.l.b16 %v54
    %v512 = vunpack.c.h.b16 %v54
    %v513 = vunpack.c.l.b16 %v55
    %v514 = vunpack.c.h.b16 %v55
    %v515 = vunpack.c.l.b16 %v56
    %v516 = vunpack.c.h.b16 %v56
    %v517 = vunpack.c.l.b16 %v57
    %v518 = vunpack.c.h.b16 %v57
    %v519 = vunpack.c.l.b16 %v58
    %v520 = vunpack.c.h.b16 %v58
    %v521 = vunpack.c.l.b16 %v59
    %v522 = vunpack.c.h.b16 %v59
    %v523 = vunpack.c.l.b16 %v60
    %v524 = vunpack.c.h.b16 %v60
    %v525 = vunpack.c.l.b16 %v61
    %v526 = vunpack.c.h.b16 %v61
    %v527 = vunpack.c.l.b16 %v62
    %v528 = vunpack.c.h.b16 %v62
    %v529 = vunpack.c.l.b16 %v63
    %v530 = vunpack.c.h.b16 %v63
    %v531 = vunpack.c.l.b16 %v64
    %v532 = vunpack.c.h.b16 %v64
    %v533 = vunpack.c.l.b16 %v65
    %v534 = vunpack.c.h.b16 %v65
    %v535 = vunpack.c.l.b16 %v66
    %v536 = vunpack.c.h.b16 %v66
    %v537 = vunpack.c.l.b16 %v67
    %v538 = vunpack.c.h.b16 %v67
    %v539 = vunpack.c.l.b16 %v68
    %v540 = vunpack.c.h.b16 %v68
    %v541 = vunpack.c.l.b16 %v69
    %v542 = vunpack.c.h.b16 %v69
    %v543 = vunpack.c.l.b16 %v70
    %v544 = vunpack.c.h.b16 %v70
    %v545 = vunpack.c.l.b16 %v71
    %v546 = vunpack.c.h.b16 %v71
    %v547 = vunpack.c.l.b16 %v72
    %v548 = vunpack.c.h.b16 %v72
    %v549 = vunpack.c.l.b16 %v73
    %v550 = vunpack.c.h.b16 %v73
    %v551 = vunpack.c.l.b16 %v74
    %v552 = vunpack.c.h.b16 %v74
    %v553 = vunpack.c.l.b16 %v75
    %v554 = vunpack.c.h.b16 %v75
    %v555 = vunpack.c.l.b16 %v76
    %v556 = vunpack.c.h.b16 %v76
    %v557 = vunpack.c.l.b16 %v77
    %v558 = vunpack.c.h.b16 %v77
    %v559 = vunpack.c.l.b16 %v78
    %v560 = vunpack.c.h.b16 %v78
    %v561 = vunpack.c.l.b16 %v79
    %v562 = vunpack.c.h.b16 %v79
    %v563 = vunpack.c.l.b16 %v80
    %v564 = vunpack.c.h.b16 %v80
    %v565 = vunpack.c.l.b16 %v81
    %v566 = vunpack.c.h.b16 %v81
    %v567 = vunpack.c.l.b16 %v82
    %v568 = vunpack.c.h.b16 %v82
    %v569 = vunpack.c.l.b16 %v83
    %v570 = vunpack.c.h.b16 %v83
    %v571 = vunpack.c.l.b16 %v84
    %v572 = vunpack.c.h.b16 %v84
    %v573 = vpack.c.b16 %v513, %v509
    %v574 = vpack.c.b16 %v514, %v510
    %v575 = vpack.c.b16 %v515, %v511
    %v576 = vpack.c.b16 %v516, %v512
    %v577 = vpack.c.b16 %v521, %v517
    %v578 = vpack.c.b16 %v522, %v518
    %v579 = vpack.c.b16 %v523, %v519
    %v580 = vpack.c.b16 %v524, %v520
    %v581 = vpack.c.b16 %v529, %v525
    %v582 = vpack.c.b16 %v530, %v526
    %v583 = vpack.c.b16 %v531, %v527
    %v584 = vpack.c.b16 %v532, %v528
    %v585 = vpack.c.b16 %v537, %v533
    %v586 = vpack.c.b16 %v538, %v534
    %v587 = vpack.c.b16 %v539, %v535
    %v588 = vpack.c.b16 %v540, %v536
    %v589 = vpack.c.b16 %v545, %v541
    %v590 = vpack.c.b16 %v546, %v542
    %v591 = vpack.c.b16 %v547, %v543
    %v592 = vpack.c.b16 %v548, %v544
    %v593 = vpack.c.b16 %v553, %v549
    %v594 = vpack.c.b16 %v554, %v550
    %v595 = vpack.c.b16 %v555, %v551
    %v596 = vpack.c.b16 %v556, %v552
    %v597 = vpack.c.b16 %v561, %v557
    %v598 = vpack.c.b16 %v562, %v558
    %v599 = vpack.c.b16 %v563, %v559
    %v600 = vpack.c.b16 %v564, %v560
    %v601 = vpack.c.b16 %v569, %v565
    %v602 = vpack.c.b16 %v570, %v566
    %v603 = vpack.c.b16 %v571, %v567
    %v604 = vpack.c.b16 %v572, %v568
    %637 = vmatprep.subr.bf16.mxu0 %v574
    %638 = vmatpush1.bf16.msra.mxu0 %v573
    %639 = vmatprep.subr.bf16.mxu0 %v578
    %640 = vmatpush1.bf16.msra.mxu0 %v577
    %641 = vmatprep.subr.bf16.mxu0 %v582
    %642 = vmatpush1.bf16.msra.mxu0 %v581
    %643 = vmatprep.subr.bf16.mxu0 %v586
    %644 = vmatpush1.bf16.msra.mxu0 %v585
    %645 = vmatprep.subr.bf16.mxu0 %v590
    %646 = vmatpush1.bf16.msra.mxu0 %v589
    %647 = vmatprep.subr.bf16.mxu0 %v594
    %648 = vmatpush1.bf16.msra.mxu0 %v593
    %649 = vmatprep.subr.bf16.mxu0 %v598
    %650 = vmatpush1.bf16.msra.mxu0 %v597
    %651 = vmatprep.subr.bf16.mxu0 %v602
    %652 = vmatpush1.bf16.msra.mxu0 %v601
    %653 = vmatprep.subr.bf16.mxu0 0
    %654 = vmatpush1.bf16.msra.mxu0 0
    %655 = vmatprep.subr.bf16.mxu0 0
    %656 = vmatpush1.bf16.msra.mxu0 0
    %657 = vmatprep.subr.bf16.mxu0 0
    %658 = vmatpush1.bf16.msra.mxu0 0
    %659 = vmatprep.subr.bf16.mxu0 0
    %660 = vmatpush1.bf16.msra.mxu0 0
    %661 = vmatprep.subr.bf16.mxu0 0
    %662 = vmatpush1.bf16.msra.mxu0 0
    %663 = vmatprep.subr.bf16.mxu0 0
    %664 = vmatpush1.bf16.msra.mxu0 0
    %665 = vmatprep.subr.bf16.mxu0 0
    %666 = vmatpush1.bf16.msra.mxu0 0
    %667 = vmatprep.subr.bf16.mxu0 0
    %668 = vmatpush1.bf16.msra.mxu0 0
    %669 = vmatprep.mubr.bf16.mxu0 0
    %670 = vmatmul.mubr.bf16.gmra.mrb[0].mxu0 0
    %v671 = vpop.f32.mrb[0].mxu0
    %v672 = vadd.f32 0.0, %v671
    %v673 = vpop.f32.mrb[0].mxu0
    %v674 = vadd.f32 0.0, %v673
    %v675 = vpop.f32.mrb[0].mxu0
    %v676 = vpop.f32.mrb[0].mxu0
    %677 = vdwg.mxu0
    %678 = vmatprep.subr.bf16.mxu0 %v576
    %679 = vmatpush1.bf16.msra.mxu0 %v575
    %680 = vmatprep.subr.bf16.mxu0 %v580
    %681 = vmatpush1.bf16.msra.mxu0 %v579
    %682 = vmatprep.subr.bf16.mxu0 %v584
    %683 = vmatpush1.bf16.msra.mxu0 %v583
    %684 = vmatprep.subr.bf16.mxu0 %v588
    %685 = vmatpush1.bf16.msra.mxu0 %v587
    %686 = vmatprep.subr.bf16.mxu0 %v592
    %687 = vmatpush1.bf16.msra.mxu0 %v591
    %688 = vmatprep.subr.bf16.mxu0 %v596
    %689 = vmatpush1.bf16.msra.mxu0 %v595
    %690 = vmatprep.subr.bf16.mxu0 %v600
    %691 = vmatpush1.bf16.msra.mxu0 %v599
    %692 = vmatprep.subr.bf16.mxu0 %v604
    %693 = vmatpush1.bf16.msra.mxu0 %v603
    %694 = vmatprep.subr.bf16.mxu0 0
    %695 = vmatpush1.bf16.msra.mxu0 0
    %696 = vmatprep.subr.bf16.mxu0 0
    %697 = vmatpush1.bf16.msra.mxu0 0
    %698 = vmatprep.subr.bf16.mxu0 0
    %699 = vmatpush1.bf16.msra.mxu0 0
    %700 = vmatprep.subr.bf16.mxu0 0
    %701 = vmatpush1.bf16.msra.mxu0 0
    %702 = vmatprep.subr.bf16.mxu0 0
    %703 = vmatpush1.bf16.msra.mxu0 0
    %704 = vmatprep.subr.bf16.mxu0 0
    %705 = vmatpush1.bf16.msra.mxu0 0
    %706 = vmatprep.subr.bf16.mxu0 0
    %707 = vmatpush1.bf16.msra.mxu0 0
    %708 = vmatprep.subr.bf16.mxu0 0
    %709 = vmatpush1.bf16.msra.mxu0 0
    %710 = vmatprep.mubr.bf16.mxu0 0
    %711 = vmatmul.mubr.bf16.gmra.mrb[0].mxu0 0
    %v712 = vpop.f32.mrb[0].mxu0
    %v713 = vadd.f32 0.0, %v712
    %v714 = vpop.f32.mrb[0].mxu0
    %v715 = vadd.f32 0.0, %v714
    %v716 = vpop.f32.mrb[0].mxu0
    %v717 = vpop.f32.mrb[0].mxu0
    %718 = vdwg.mxu0
    %v719 = vadd.f32 %v366, %v672
    %v720 = vadd.f32 %v368, %v674
    %v721 = vadd.f32 %v439, %v713
    %v722 = vadd.f32 %v441, %v715
    %v723 = vxor.u32 %v719, 2147483648
    %v724 = vmul.f32 %v723, 1.442695
    %v725 = vpow.pop %v724
    %v726 = vadd.f32 %v725, 1.0
    %v727 = vrcp.pop %v726
    %v728 = vmul.f32 1.0, %v727
    %v729 = vxor.u32 %v720, 2147483648
    %v730 = vmul.f32 %v729, 1.442695
    %v731 = vpow.pop %v730
    %v732 = vadd.f32 %v731, 1.0
    %v733 = vrcp.pop %v732
    %v734 = vmul.f32 1.0, %v733
    %v735 = vtanh.pop %v721
    %v736 = vxor.u32 %v722, 2147483648
    %v737 = vmul.f32 %v736, 1.442695
    %v738 = vpow.pop %v737
    %v739 = vadd.f32 %v738, 1.0
    %v740 = vrcp.pop %v739
    %v741 = vmul.f32 1.0, %v740
    %v742 = vmul.f32 %v734, 0.0
    %v743 = vmul.f32 %v728, %v735
    %v744 = vadd.f32 %v742, %v743
    %v745 = vtanh.pop %v744
    %v746 = vmul.f32 %v741, %v745
    %v747 = vpack.c.bf16 %v746, %v746
    %748 = vmatprep.subr.bf16.mxu0 %v574
    %749 = vmatpush1.bf16.msra.mxu0 %v573
    %750 = vmatprep.subr.bf16.mxu0 %v578
    %751 = vmatpush1.bf16.msra.mxu0 %v577
    %752 = vmatprep.subr.bf16.mxu0 %v582
    %753 = vmatpush1.bf16.msra.mxu0 %v581
    %754 = vmatprep.subr.bf16.mxu0 %v586
    %755 = vmatpush1.bf16.msra.mxu0 %v585
    %756 = vmatprep.subr.bf16.mxu0 %v590
    %757 = vmatpush1.bf16.msra.mxu0 %v589
    %758 = vmatprep.subr.bf16.mxu0 %v594
    %759 = vmatpush1.bf16.msra.mxu0 %v593
    %760 = vmatprep.subr.bf16.mxu0 %v598
    %761 = vmatpush1.bf16.msra.mxu0 %v597
    %762 = vmatprep.subr.bf16.mxu0 %v602
    %763 = vmatpush1.bf16.msra.mxu0 %v601
    %764 = vmatprep.subr.bf16.mxu0 0
    %765 = vmatpush1.bf16.msra.mxu0 0
    %766 = vmatprep.subr.bf16.mxu0 0
    %767 = vmatpush1.bf16.msra.mxu0 0
    %768 = vmatprep.subr.bf16.mxu0 0
    %769 = vmatpush1.bf16.msra.mxu0 0
    %770 = vmatprep.subr.bf16.mxu0 0
    %771 = vmatpush1.bf16.msra.mxu0 0
    %772 = vmatprep.subr.bf16.mxu0 0
    %773 = vmatpush1.bf16.msra.mxu0 0
    %774 = vmatprep.subr.bf16.mxu0 0
    %775 = vmatpush1.bf16.msra.mxu0 0
    %776 = vmatprep.subr.bf16.mxu0 0
    %777 = vmatpush1.bf16.msra.mxu0 0
    %778 = vmatprep.subr.bf16.mxu0 0
    %779 = vmatpush1.bf16.msra.mxu0 0
    %780 = vmatprep.mubr.bf16.mxu0 0
    %781 = vmatmul.mubr.bf16.gmra.mrb[0].mxu0 %v747
    %v782 = vpop.f32.mrb[0].mxu0
    %v783 = vadd.f32 0.0, %v782
    %v784 = vpop.f32.mrb[0].mxu0
    %v785 = vadd.f32 0.0, %v784
    %v786 = vpop.f32.mrb[0].mxu0
    %v787 = vpop.f32.mrb[0].mxu0
    %788 = vdwg.mxu0
    %789 = vmatprep.subr.bf16.mxu0 %v576
    %790 = vmatpush1.bf16.msra.mxu0 %v575
    %791 = vmatprep.subr.bf16.mxu0 %v580
    %792 = vmatpush1.bf16.msra.mxu0 %v579
    %793 = vmatprep.subr.bf16.mxu0 %v584
    %794 = vmatpush1.bf16.msra.mxu0 %v583
    %795 = vmatprep.subr.bf16.mxu0 %v588
    %796 = vmatpush1.bf16.msra.mxu0 %v587
    %797 = vmatprep.subr.bf16.mxu0 %v592
    %798 = vmatpush1.bf16.msra.mxu0 %v591
    %799 = vmatprep.subr.bf16.mxu0 %v596
    %800 = vmatpush1.bf16.msra.mxu0 %v595
    %801 = vmatprep.subr.bf16.mxu0 %v600
    %802 = vmatpush1.bf16.msra.mxu0 %v599
    %803 = vmatprep.subr.bf16.mxu0 %v604
    %804 = vmatpush1.bf16.msra.mxu0 %v603
    %805 = vmatprep.subr.bf16.mxu0 0
    %806 = vmatpush1.bf16.msra.mxu0 0
    %807 = vmatprep.subr.bf16.mxu0 0
    %808 = vmatpush1.bf16.msra.mxu0 0
    %809 = vmatprep.subr.bf16.mxu0 0
    %810 = vmatpush1.bf16.msra.mxu0 0
    %811 = vmatprep.subr.bf16.mxu0 0
    %812 = vmatpush1.bf16.msra.mxu0 0
    %813 = vmatprep.subr.bf16.mxu0 0
    %814 = vmatpush1.bf16.msra.mxu0 0
    %815 = vmatprep.subr.bf16.mxu0 0
    %816 = vmatpush1.bf16.msra.mxu0 0
    %817 = vmatprep.subr.bf16.mxu0 0
    %818 = vmatpush1.bf16.msra.mxu0 0
    %819 = vmatprep.subr.bf16.mxu0 0
    %820 = vmatpush1.bf16.msra.mxu0 0
    %821 = vmatprep.mubr.bf16.mxu0 0
    %822 = vmatmul.mubr.bf16.gmra.mrb[0].mxu0 %v747
    %v823 = vpop.f32.mrb[0].mxu0
    %v824 = vadd.f32 0.0, %v823
    %v825 = vpop.f32.mrb[0].mxu0
    %v826 = vadd.f32 0.0, %v825
    %v827 = vpop.f32.mrb[0].mxu0
    %v828 = vpop.f32.mrb[0].mxu0
    %829 = vdwg.mxu0
    %v830 = vadd.f32 %v370, %v783
    %v831 = vadd.f32 %v372, %v785
    %v832 = vadd.f32 %v443, %v824
    %v833 = vadd.f32 %v445, %v826
    %v834 = vxor.u32 %v830, 2147483648
    %v835 = vmul.f32 %v834, 1.442695
    %v836 = vpow.pop %v835
    %v837 = vadd.f32 %v836, 1.0
    %v838 = vrcp.pop %v837
    %v839 = vmul.f32 1.0, %v838
    %v840 = vxor.u32 %v831, 2147483648
    %v841 = vmul.f32 %v840, 1.442695
    %v842 = vpow.pop %v841
    %v843 = vadd.f32 %v842, 1.0
    %v844 = vrcp.pop %v843
    %v845 = vmul.f32 1.0, %v844
    %v846 = vtanh.pop %v832
    %v847 = vxor.u32 %v833, 2147483648
    %v848 = vmul.f32 %v847, 1.442695
    %v849 = vpow.pop %v848
    %v850 = vadd.f32 %v849, 1.0
    %v851 = vrcp.pop %v850
    %v852 = vmul.f32 1.0, %v851
    %v853 = vmul.f32 %v845, %v744
    %v854 = vmul.f32 %v839, %v846
    %v855 = vadd.f32 %v853, %v854
    %v856 = vtanh.pop %v855
    %v857 = vmul.f32 %v852, %v856
    %v858 = vpack.c.bf16 %v857, %v857
    %859 = vmatprep.subr.bf16.mxu0 %v574
    %860 = vmatpush1.bf16.msra.mxu0 %v573
    %861 = vmatprep.subr.bf16.mxu0 %v578
    %862 = vmatpush1.bf16.msra.mxu0 %v577
    %863 = vmatprep.subr.bf16.mxu0 %v582
    %864 = vmatpush1.bf16.msra.mxu0 %v581
    %865 = vmatprep.subr.bf16.mxu0 %v586
    %866 = vmatpush1.bf16.msra.mxu0 %v585
    %867 = vmatprep.subr.bf16.mxu0 %v590
    %868 = vmatpush1.bf16.msra.mxu0 %v589
    %869 = vmatprep.subr.bf16.mxu0 %v594
    %870 = vmatpush1.bf16.msra.mxu0 %v593
    %871 = vmatprep.subr.bf16.mxu0 %v598
    %872 = vmatpush1.bf16.msra.mxu0 %v597
    %873 = vmatprep.subr.bf16.mxu0 %v602
    %874 = vmatpush1.bf16.msra.mxu0 %v601
    %875 = vmatprep.subr.bf16.mxu0 0
    %876 = vmatpush1.bf16.msra.mxu0 0
    %877 = vmatprep.subr.bf16.mxu0 0
    %878 = vmatpush1.bf16.msra.mxu0 0
    %879 = vmatprep.subr.bf16.mxu0 0
    %880 = vmatpush1.bf16.msra.mxu0 0
    %881 = vmatprep.subr.bf16.mxu0 0
    %882 = vmatpush1.bf16.msra.mxu0 0
    %883 = vmatprep.subr.bf16.mxu0 0
    %884 = vmatpush1.bf16.msra.mxu0 0
    %885 = vmatprep.subr.bf16.mxu0 0
    %886 = vmatpush1.bf16.msra.mxu0 0
    %887 = vmatprep.subr.bf16.mxu0 0
    %888 = vmatpush1.bf16.msra.mxu0 0
    %889 = vmatprep.subr.bf16.mxu0 0
    %890 = vmatpush1.bf16.msra.mxu0 0
    %891 = vmatprep.mubr.bf16.mxu0 0
    %892 = vmatmul.mubr.bf16.gmra.mrb[0].mxu0 %v858
    %v893 = vpop.f32.mrb[0].mxu0
    %v894 = vadd.f32 0.0, %v893
    %v895 = vpop.f32.mrb[0].mxu0
    %v896 = vadd.f32 0.0, %v895
    %v897 = vpop.f32.mrb[0].mxu0
    %v898 = vpop.f32.mrb[0].mxu0
    %899 = vdwg.mxu0
    %900 = vmatprep.subr.bf16.mxu0 %v576
    %901 = vmatpush1.bf16.msra.mxu0 %v575
    %902 = vmatprep.subr.bf16.mxu0 %v580
    %903 = vmatpush1.bf16.msra.mxu0 %v579
    %904 = vmatprep.subr.bf16.mxu0 %v584
    %905 = vmatpush1.bf16.msra.mxu0 %v583
    %906 = vmatprep.subr.bf16.mxu0 %v588
    %907 = vmatpush1.bf16.msra.mxu0 %v587
    %908 = vmatprep.subr.bf16.mxu0 %v592
    %909 = vmatpush1.bf16.msra.mxu0 %v591
    %910 = vmatprep.subr.bf16.mxu0 %v596
    %911 = vmatpush1.bf16.msra.mxu0 %v595
    %912 = vmatprep.subr.bf16.mxu0 %v600
    %913 = vmatpush1.bf16.msra.mxu0 %v599
    %914 = vmatprep.subr.bf16.mxu0 %v604
    %915 = vmatpush1.bf16.msra.mxu0 %v603
    %916 = vmatprep.subr.bf16.mxu0 0
    %917 = vmatpush1.bf16.msra.mxu0 0
    %918 = vmatprep.subr.bf16.mxu0 0
    %919 = vmatpush1.bf16.msra.mxu0 0
    %920 = vmatprep.subr.bf16.mxu0 0
    %921 = vmatpush1.bf16.msra.mxu0 0
    %922 = vmatprep.subr.bf16.mxu0 0
    %923 = vmatpush1.bf16.msra.mxu0 0
    %924 = vmatprep.subr.bf16.mxu0 0
    %925 = vmatpush1.bf16.msra.mxu0 0
    %926 = vmatprep.subr.bf16.mxu0 0
    %927 = vmatpush1.bf16.msra.mxu0 0
    %928 = vmatprep.subr.bf16.mxu0 0
    %929 = vmatpush1.bf16.msra.mxu0 0
    %930 = vmatprep.subr.bf16.mxu0 0
    %931 = vmatpush1.bf16.msra.mxu0 0
    %932 = vmatprep.mubr.bf16.mxu0 0
    %933 = vmatmul.mubr.bf16.gmra.mrb[0].mxu0 %v858
    %v934 = vpop.f32.mrb[0].mxu0
    %v935 = vadd.f32 0.0, %v934
    %v936 = vpop.f32.mrb[0].mxu0
    %v937 = vadd.f32 0.0, %v936
    %v938 = vpop.f32.mrb[0].mxu0
    %v939 = vpop.f32.mrb[0].mxu0
    %940 = vdwg.mxu0
    %v941 = vadd.f32 %v376, %v894
    %v942 = vadd.f32 %v378, %v896
    %v943 = vadd.f32 %v449, %v935
    %v944 = vadd.f32 %v451, %v937
    %v945 = vxor.u32 %v941, 2147483648
    %v946 = vmul.f32 %v945, 1.442695
    %v947 = vpow.pop %v946
    %v948 = vadd.f32 %v947, 1.0
    %v949 = vrcp.pop %v948
    %v950 = vmul.f32 1.0, %v949
    %v951 = vxor.u32 %v942, 2147483648
    %v952 = vmul.f32 %v951, 1.442695
    %v953 = vpow.pop %v952
    %v954 = vadd.f32 %v953, 1.0
    %v955 = vrcp.pop %v954
    %v956 = vmul.f32 1.0, %v955
    %v957 = vtanh.pop %v943
    %v958 = vxor.u32 %v944, 2147483648
    %v959 = vmul.f32 %v958, 1.442695
    %v960 = vpow.pop %v959
    %v961 = vadd.f32 %v960, 1.0
    %v962 = vrcp.pop %v961
    %v963 = vmul.f32 1.0, %v962
    %v964 = vmul.f32 %v956, %v855
    %v965 = vmul.f32 %v950, %v957
    %v966 = vadd.f32 %v964, %v965
    %v967 = vtanh.pop %v966
    %v968 = vmul.f32 %v963, %v967
    %v969 = vpack.c.bf16 %v968, %v968
    %970 = vmatprep.subr.bf16.mxu0 %v574
    %971 = vmatpush1.bf16.msra.mxu0 %v573
    %972 = vmatprep.subr.bf16.mxu0 %v578
    %973 = vmatpush1.bf16.msra.mxu0 %v577
    %974 = vmatprep.subr.bf16.mxu0 %v582
    %975 = vmatpush1.bf16.msra.mxu0 %v581
    %976 = vmatprep.subr.bf16.mxu0 %v586
    %977 = vmatpush1.bf16.msra.mxu0 %v585
    %978 = vmatprep.subr.bf16.mxu0 %v590
    %979 = vmatpush1.bf16.msra.mxu0 %v589
    %980 = vmatprep.subr.bf16.mxu0 %v594
    %981 = vmatpush1.bf16.msra.mxu0 %v593
    %982 = vmatprep.subr.bf16.mxu0 %v598
    %983 = vmatpush1.bf16.msra.mxu0 %v597
    %984 = vmatprep.subr.bf16.mxu0 %v602
    %985 = vmatpush1.bf16.msra.mxu0 %v601
    %986 = vmatprep.subr.bf16.mxu0 0
    %987 = vmatpush1.bf16.msra.mxu0 0
    %988 = vmatprep.subr.bf16.mxu0 0
    %989 = vmatpush1.bf16.msra.mxu0 0
    %990 = vmatprep.subr.bf16.mxu0 0
    %991 = vmatpush1.bf16.msra.mxu0 0
    %992 = vmatprep.subr.bf16.mxu0 0
    %993 = vmatpush1.bf16.msra.mxu0 0
    %994 = vmatprep.subr.bf16.mxu0 0
    %995 = vmatpush1.bf16.msra.mxu0 0
    %996 = vmatprep.subr.bf16.mxu0 0
    %997 = vmatpush1.bf16.msra.mxu0 0
    %998 = vmatprep.subr.bf16.mxu0 0
    %999 = vmatpush1.bf16.msra.mxu0 0
    %1000 = vmatprep.subr.bf16.mxu0 0
    %1001 = vmatpush1.bf16.msra.mxu0 0
    %1002 = vmatprep.mubr.bf16.mxu0 0
    %1003 = vmatmul.mubr.bf16.gmra.mrb[0].mxu0 %v969
    %v1004 = vpop.f32.mrb[0].mxu0
    %v1005 = vadd.f32 0.0, %v1004
    %v1006 = vpop.f32.mrb[0].mxu0
    %v1007 = vadd.f32 0.0, %v1006
    %v1008 = vpop.f32.mrb[0].mxu0
    %v1009 = vpop.f32.mrb[0].mxu0
    %1010 = vdwg.mxu0
    %1011 = vmatprep.subr.bf16.mxu0 %v576
    %1012 = vmatpush1.bf16.msra.mxu0 %v575
    %1013 = vmatprep.subr.bf16.mxu0 %v580
    %1014 = vmatpush1.bf16.msra.mxu0 %v579
    %1015 = vmatprep.subr.bf16.mxu0 %v584
    %1016 = vmatpush1.bf16.msra.mxu0 %v583
    %1017 = vmatprep.subr.bf16.mxu0 %v588
    %1018 = vmatpush1.bf16.msra.mxu0 %v587
    %1019 = vmatprep.subr.bf16.mxu0 %v592
    %1020 = vmatpush1.bf16.msra.mxu0 %v591
    %1021 = vmatprep.subr.bf16.mxu0 %v596
    %1022 = vmatpush1.bf16.msra.mxu0 %v595
    %1023 = vmatprep.subr.bf16.mxu0 %v600
    %1024 = vmatpush1.bf16.msra.mxu0 %v599
    %1025 = vmatprep.subr.bf16.mxu0 %v604
    %1026 = vmatpush1.bf16.msra.mxu0 %v603
    %1027 = vmatprep.subr.bf16.mxu0 0
    %1028 = vmatpush1.bf16.msra.mxu0 0
    %1029 = vmatprep.subr.bf16.mxu0 0
    %1030 = vmatpush1.bf16.msra.mxu0 0
    %1031 = vmatprep.subr.bf16.mxu0 0
    %1032 = vmatpush1.bf16.msra.mxu0 0
    %1033 = vmatprep.subr.bf16.mxu0 0
    %1034 = vmatpush1.bf16.msra.mxu0 0
    %1035 = vmatprep.subr.bf16.mxu0 0
    %1036 = vmatpush1.bf16.msra.mxu0 0
    %1037 = vmatprep.subr.bf16.mxu0 0
    %1038 = vmatpush1.bf16.msra.mxu0 0
    %1039 = vmatprep.subr.bf16.mxu0 0
    %1040 = vmatpush1.bf16.msra.mxu0 0
    %1041 = vmatprep.subr.bf16.mxu0 0
    %1042 = vmatpush1.bf16.msra.mxu0 0
    %1043 = vmatprep.mubr.bf16.mxu0 0
    %1044 = vmatmul.mubr.bf16.gmra.mrb[0].mxu0 %v969
    %v1045 = vpop.f32.mrb[0].mxu0
    %v1046 = vadd.f32 0.0, %v1045
    %v1047 = vpop.f32.mrb[0].mxu0
    %v1048 = vadd.f32 0.0, %v1047
    %v1049 = vpop.f32.mrb[0].mxu0
    %v1050 = vpop.f32.mrb[0].mxu0
    %1051 = vdwg.mxu0
    %v1052 = vadd.f32 %v380, %v1005
    %v1053 = vadd.f32 %v382, %v1007
    %v1054 = vadd.f32 %v453, %v1046
    %v1055 = vadd.f32 %v455, %v1048
    %v1056 = vxor.u32 %v1052, 2147483648
    %v1057 = vmul.f32 %v1056, 1.442695
    %v1058 = vpow.pop %v1057
    %v1059 = vadd.f32 %v1058, 1.0
    %v1060 = vrcp.pop %v1059
    %v1061 = vmul.f32 1.0, %v1060
    %v1062 = vxor.u32 %v1053, 2147483648
    %v1063 = vmul.f32 %v1062, 1.442695
    %v1064 = vpow.pop %v1063
    %v1065 = vadd.f32 %v1064, 1.0
    %v1066 = vrcp.pop %v1065
    %v1067 = vmul.f32 1.0, %v1066
    %v1068 = vtanh.pop %v1054
    %v1069 = vxor.u32 %v1055, 2147483648
    %v1070 = vmul.f32 %v1069, 1.442695
    %v1071 = vpow.pop %v1070
    %v1072 = vadd.f32 %v1071, 1.0
    %v1073 = vrcp.pop %v1072
    %v1074 = vmul.f32 1.0, %v1073
    %v1075 = vmul.f32 %v1067, %v966
    %v1076 = vmul.f32 %v1061, %v1068
    %v1077 = vadd.f32 %v1075, %v1076
    %v1078 = vtanh.pop %v1077
    %v1079 = vmul.f32 %v1074, %v1078
    %v1080 = vpack.c.bf16 %v1079, %v1079
    %1081 = vmatprep.subr.bf16.mxu0 %v574
    %1082 = vmatpush1.bf16.msra.mxu0 %v573
    %1083 = vmatprep.subr.bf16.mxu0 %v578
    %1084 = vmatpush1.bf16.msra.mxu0 %v577
    %1085 = vmatprep.subr.bf16.mxu0 %v582
    %1086 = vmatpush1.bf16.msra.mxu0 %v581
    %1087 = vmatprep.subr.bf16.mxu0 %v586
    %1088 = vmatpush1.bf16.msra.mxu0 %v585
    %1089 = vmatprep.subr.bf16.mxu0 %v590
    %1090 = vmatpush1.bf16.msra.mxu0 %v589
    %1091 = vmatprep.subr.bf16.mxu0 %v594
    %1092 = vmatpush1.bf16.msra.mxu0 %v593
    %1093 = vmatprep.subr.bf16.mxu0 %v598
    %1094 = vmatpush1.bf16.msra.mxu0 %v597
    %1095 = vmatprep.subr.bf16.mxu0 %v602
    %1096 = vmatpush1.bf16.msra.mxu0 %v601
    %1097 = vmatprep.subr.bf16.mxu0 0
    %1098 = vmatpush1.bf16.msra.mxu0 0
    %1099 = vmatprep.subr.bf16.mxu0 0
    %1100 = vmatpush1.bf16.msra.mxu0 0
    %1101 = vmatprep.subr.bf16.mxu0 0
    %1102 = vmatpush1.bf16.msra.mxu0 0
    %1103 = vmatprep.subr.bf16.mxu0 0
    %1104 = vmatpush1.bf16.msra.mxu0 0
    %1105 = vmatprep.subr.bf16.mxu0 0
    %1106 = vmatpush1.bf16.msra.mxu0 0
    %1107 = vmatprep.subr.bf16.mxu0 0
    %1108 = vmatpush1.bf16.msra.mxu0 0
    %1109 = vmatprep.subr.bf16.mxu0 0
    %1110 = vmatpush1.bf16.msra.mxu0 0
    %1111 = vmatprep.subr.bf16.mxu0 0
    %1112 = vmatpush1.bf16.msra.mxu0 0
    %1113 = vmatprep.mubr.bf16.mxu0 0
    %1114 = vmatmul.mubr.bf16.gmra.mrb[0].mxu0 %v1080
    %v1115 = vpop.f32.mrb[0].mxu0
    %v1116 = vadd.f32 0.0, %v1115
    %v1117 = vpop.f32.mrb[0].mxu0
    %v1118 = vadd.f32 0.0, %v1117
    %v1119 = vpop.f32.mrb[0].mxu0
    %v1120 = vpop.f32.mrb[0].mxu0
    %1121 = vdwg.mxu0
    %1122 = vmatprep.subr.bf16.mxu0 %v576
    %1123 = vmatpush1.bf16.msra.mxu0 %v575
    %1124 = vmatprep.subr.bf16.mxu0 %v580
    %1125 = vmatpush1.bf16.msra.mxu0 %v579
    %1126 = vmatprep.subr.bf16.mxu0 %v584
    %1127 = vmatpush1.bf16.msra.mxu0 %v583
    %1128 = vmatprep.subr.bf16.mxu0 %v588
    %1129 = vmatpush1.bf16.msra.mxu0 %v587
    %1130 = vmatprep.subr.bf16.mxu0 %v592
    %1131 = vmatpush1.bf16.msra.mxu0 %v591
    %1132 = vmatprep.subr.bf16.mxu0 %v596
    %1133 = vmatpush1.bf16.msra.mxu0 %v595
    %1134 = vmatprep.subr.bf16.mxu0 %v600
    %1135 = vmatpush1.bf16.msra.mxu0 %v599
    %1136 = vmatprep.subr.bf16.mxu0 %v604
    %1137 = vmatpush1.bf16.msra.mxu0 %v603
    %1138 = vmatprep.subr.bf16.mxu0 0
    %1139 = vmatpush1.bf16.msra.mxu0 0
    %1140 = vmatprep.subr.bf16.mxu0 0
    %1141 = vmatpush1.bf16.msra.mxu0 0
    %1142 = vmatprep.subr.bf16.mxu0 0
    %1143 = vmatpush1.bf16.msra.mxu0 0
    %1144 = vmatprep.subr.bf16.mxu0 0
    %1145 = vmatpush1.bf16.msra.mxu0 0
    %1146 = vmatprep.subr.bf16.mxu0 0
    %1147 = vmatpush1.bf16.msra.mxu0 0
    %1148 = vmatprep.subr.bf16.mxu0 0
    %1149 = vmatpush1.bf16.msra.mxu0 0
    %1150 = vmatprep.subr.bf16.mxu0 0
    %1151 = vmatpush1.bf16.msra.mxu0 0
    %1152 = vmatprep.subr.bf16.mxu0 0
    %1153 = vmatpush1.bf16.msra.mxu0 0
    %1154 = vmatprep.mubr.bf16.mxu0 0
    %1155 = vmatmul.mubr.bf16.gmra.mrb[0].mxu0 %v1080
    %v1156 = vpop.f32.mrb[0].mxu0
    %v1157 = vadd.f32 0.0, %v1156
    %v1158 = vpop.f32.mrb[0].mxu0
    %v1159 = vadd.f32 0.0, %v1158
    %v1160 = vpop.f32.mrb[0].mxu0
    %v1161 = vpop.f32.mrb[0].mxu0
    %1162 = vdwg.mxu0
    %v1163 = vadd.f32 %v386, %v1116
    %v1164 = vadd.f32 %v388, %v1118
    %v1165 = vadd.f32 %v459, %v1157
    %v1166 = vadd.f32 %v461, %v1159
    %v1167 = vxor.u32 %v1163, 2147483648
    %v1168 = vmul.f32 %v1167, 1.442695
    %v1169 = vpow.pop %v1168
    %v1170 = vadd.f32 %v1169, 1.0
    %v1171 = vrcp.pop %v1170
    %v1172 = vmul.f32 1.0, %v1171
    %v1173 = vxor.u32 %v1164, 2147483648
    %v1174 = vmul.f32 %v1173, 1.442695
    %v1175 = vpow.pop %v1174
    %v1176 = vadd.f32 %v1175, 1.0
    %v1177 = vrcp.pop %v1176
    %v1178 = vmul.f32 1.0, %v1177
    %v1179 = vtanh.pop %v1165
    %v1180 = vxor.u32 %v1166, 2147483648
    %v1181 = vmul.f32 %v1180, 1.442695
    %v1182 = vpow.pop %v1181
    %v1183 = vadd.f32 %v1182, 1.0
    %v1184 = vrcp.pop %v1183
    %v1185 = vmul.f32 1.0, %v1184
    %v1186 = vmul.f32 %v1178, %v1077
    %v1187 = vmul.f32 %v1172, %v1179
    %v1188 = vadd.f32 %v1186, %v1187
    %v1189 = vtanh.pop %v1188
    %v1190 = vmul.f32 %v1185, %v1189
    %v1191 = vpack.c.bf16 %v1190, %v1190
    %1192 = vmatprep.subr.bf16.mxu0 %v574
    %1193 = vmatpush1.bf16.msra.mxu0 %v573
    %1194 = vmatprep.subr.bf16.mxu0 %v578
    %1195 = vmatpush1.bf16.msra.mxu0 %v577
    %1196 = vmatprep.subr.bf16.mxu0 %v582
    %1197 = vmatpush1.bf16.msra.mxu0 %v581
    %1198 = vmatprep.subr.bf16.mxu0 %v586
    %1199 = vmatpush1.bf16.msra.mxu0 %v585
    %1200 = vmatprep.subr.bf16.mxu0 %v590
    %1201 = vmatpush1.bf16.msra.mxu0 %v589
    %1202 = vmatprep.subr.bf16.mxu0 %v594
    %1203 = vmatpush1.bf16.msra.mxu0 %v593
    %1204 = vmatprep.subr.bf16.mxu0 %v598
    %1205 = vmatpush1.bf16.msra.mxu0 %v597
    %1206 = vmatprep.subr.bf16.mxu0 %v602
    %1207 = vmatpush1.bf16.msra.mxu0 %v601
    %1208 = vmatprep.subr.bf16.mxu0 0
    %1209 = vmatpush1.bf16.msra.mxu0 0
    %1210 = vmatprep.subr.bf16.mxu0 0
    %1211 = vmatpush1.bf16.msra.mxu0 0
    %1212 = vmatprep.subr.bf16.mxu0 0
    %1213 = vmatpush1.bf16.msra.mxu0 0
    %1214 = vmatprep.subr.bf16.mxu0 0
    %1215 = vmatpush1.bf16.msra.mxu0 0
    %1216 = vmatprep.subr.bf16.mxu0 0
    %1217 = vmatpush1.bf16.msra.mxu0 0
    %1218 = vmatprep.subr.bf16.mxu0 0
    %1219 = vmatpush1.bf16.msra.mxu0 0
    %1220 = vmatprep.subr.bf16.mxu0 0
    %1221 = vmatpush1.bf16.msra.mxu0 0
    %1222 = vmatprep.subr.bf16.mxu0 0
    %1223 = vmatpush1.bf16.msra.mxu0 0
    %1224 = vmatprep.mubr.bf16.mxu0 0
    %1225 = vmatmul.mubr.bf16.gmra.mrb[0].mxu0 %v1191
    %v1226 = vpop.f32.mrb[0].mxu0
    %v1227 = vadd.f32 0.0, %v1226
    %v1228 = vpop.f32.mrb[0].mxu0
    %v1229 = vadd.f32 0.0, %v1228
    %v1230 = vpop.f32.mrb[0].mxu0
    %v1231 = vpop.f32.mrb[0].mxu0
    %1232 = vdwg.mxu0
    %1233 = vmatprep.subr.bf16.mxu0 %v576
    %1234 = vmatpush1.bf16.msra.mxu0 %v575
    %1235 = vmatprep.subr.bf16.mxu0 %v580
    %1236 = vmatpush1.bf16.msra.mxu0 %v579
    %1237 = vmatprep.subr.bf16.mxu0 %v584
    %1238 = vmatpush1.bf16.msra.mxu0 %v583
    %1239 = vmatprep.subr.bf16.mxu0 %v588
    %1240 = vmatpush1.bf16.msra.mxu0 %v587
    %1241 = vmatprep.subr.bf16.mxu0 %v592
    %1242 = vmatpush1.bf16.msra.mxu0 %v591
    %1243 = vmatprep.subr.bf16.mxu0 %v596
    %1244 = vmatpush1.bf16.msra.mxu0 %v595
    %1245 = vmatprep.subr.bf16.mxu0 %v600
    %1246 = vmatpush1.bf16.msra.mxu0 %v599
    %1247 = vmatprep.subr.bf16.mxu0 %v604
    %1248 = vmatpush1.bf16.msra.mxu0 %v603
    %1249 = vmatprep.subr.bf16.mxu0 0
    %1250 = vmatpush1.bf16.msra.mxu0 0
    %1251 = vmatprep.subr.bf16.mxu0 0
    %1252 = vmatpush1.bf16.msra.mxu0 0
    %1253 = vmatprep.subr.bf16.mxu0 0
    %1254 = vmatpush1.bf16.msra.mxu0 0
    %1255 = vmatprep.subr.bf16.mxu0 0
    %1256 = vmatpush1.bf16.msra.mxu0 0
    %1257 = vmatprep.subr.bf16.mxu0 0
    %1258 = vmatpush1.bf16.msra.mxu0 0
    %1259 = vmatprep.subr.bf16.mxu0 0
    %1260 = vmatpush1.bf16.msra.mxu0 0
    %1261 = vmatprep.subr.bf16.mxu0 0
    %1262 = vmatpush1.bf16.msra.mxu0 0
    %1263 = vmatprep.subr.bf16.mxu0 0
    %1264 = vmatpush1.bf16.msra.mxu0 0
    %1265 = vmatprep.mubr.bf16.mxu0 0
    %1266 = vmatmul.mubr.bf16.gmra.mrb[0].mxu0 %v1191
    %v1267 = vpop.f32.mrb[0].mxu0
    %v1268 = vadd.f32 0.0, %v1267
    %v1269 = vpop.f32.mrb[0].mxu0
    %v1270 = vadd.f32 0.0, %v1269
    %v1271 = vpop.f32.mrb[0].mxu0
    %v1272 = vpop.f32.mrb[0].mxu0
    %1273 = vdwg.mxu0
    %v1274 = vadd.f32 %v390, %v1227
    %v1275 = vadd.f32 %v392, %v1229
    %v1276 = vadd.f32 %v463, %v1268
    %v1277 = vadd.f32 %v465, %v1270
    %v1278 = vxor.u32 %v1274, 2147483648
    %v1279 = vmul.f32 %v1278, 1.442695
    %v1280 = vpow.pop %v1279
    %v1281 = vadd.f32 %v1280, 1.0
    %v1282 = vrcp.pop %v1281
    %v1283 = vmul.f32 1.0, %v1282
    %v1284 = vxor.u32 %v1275, 2147483648
    %v1285 = vmul.f32 %v1284, 1.442695
    %v1286 = vpow.pop %v1285
    %v1287 = vadd.f32 %v1286, 1.0
    %v1288 = vrcp.pop %v1287
    %v1289 = vmul.f32 1.0, %v1288
    %v1290 = vtanh.pop %v1276
    %v1291 = vxor.u32 %v1277, 2147483648
    %v1292 = vmul.f32 %v1291, 1.442695
    %v1293 = vpow.pop %v1292
    %v1294 = vadd.f32 %v1293, 1.0
    %v1295 = vrcp.pop %v1294
    %v1296 = vmul.f32 1.0, %v1295
    %v1297 = vmul.f32 %v1289, %v1188
    %v1298 = vmul.f32 %v1283, %v1290
    %v1299 = vadd.f32 %v1297, %v1298
    %v1300 = vtanh.pop %v1299
    %v1301 = vmul.f32 %v1296, %v1300
    %v1302 = vpack.c.bf16 %v1301, %v1301
    %1303 = vmatprep.subr.bf16.mxu0 %v574
    %1304 = vmatpush1.bf16.msra.mxu0 %v573
    %1305 = vmatprep.subr.bf16.mxu0 %v578
    %1306 = vmatpush1.bf16.msra.mxu0 %v577
    %1307 = vmatprep.subr.bf16.mxu0 %v582
    %1308 = vmatpush1.bf16.msra.mxu0 %v581
    %1309 = vmatprep.subr.bf16.mxu0 %v586
    %1310 = vmatpush1.bf16.msra.mxu0 %v585
    %1311 = vmatprep.subr.bf16.mxu0 %v590
    %1312 = vmatpush1.bf16.msra.mxu0 %v589
    %1313 = vmatprep.subr.bf16.mxu0 %v594
    %1314 = vmatpush1.bf16.msra.mxu0 %v593
    %1315 = vmatprep.subr.bf16.mxu0 %v598
    %1316 = vmatpush1.bf16.msra.mxu0 %v597
    %1317 = vmatprep.subr.bf16.mxu0 %v602
    %1318 = vmatpush1.bf16.msra.mxu0 %v601
    %1319 = vmatprep.subr.bf16.mxu0 0
    %1320 = vmatpush1.bf16.msra.mxu0 0
    %1321 = vmatprep.subr.bf16.mxu0 0
    %1322 = vmatpush1.bf16.msra.mxu0 0
    %1323 = vmatprep.subr.bf16.mxu0 0
    %1324 = vmatpush1.bf16.msra.mxu0 0
    %1325 = vmatprep.subr.bf16.mxu0 0
    %1326 = vmatpush1.bf16.msra.mxu0 0
    %1327 = vmatprep.subr.bf16.mxu0 0
    %1328 = vmatpush1.bf16.msra.mxu0 0
    %1329 = vmatprep.subr.bf16.mxu0 0
    %1330 = vmatpush1.bf16.msra.mxu0 0
    %1331 = vmatprep.subr.bf16.mxu0 0
    %1332 = vmatpush1.bf16.msra.mxu0 0
    %1333 = vmatprep.subr.bf16.mxu0 0
    %1334 = vmatpush1.bf16.msra.mxu0 0
    %1335 = vmatprep.mubr.bf16.mxu0 0
    %1336 = vmatmul.mubr.bf16.gmra.mrb[0].mxu0 %v1302
    %v1337 = vpop.f32.mrb[0].mxu0
    %v1338 = vadd.f32 0.0, %v1337
    %v1339 = vpop.f32.mrb[0].mxu0
    %v1340 = vadd.f32 0.0, %v1339
    %v1341 = vpop.f32.mrb[0].mxu0
    %v1342 = vpop.f32.mrb[0].mxu0
    %1343 = vdwg.mxu0
    %1344 = vmatprep.subr.bf16.mxu0 %v576
    %1345 = vmatpush1.bf16.msra.mxu0 %v575
    %1346 = vmatprep.subr.bf16.mxu0 %v580
    %1347 = vmatpush1.bf16.msra.mxu0 %v579
    %1348 = vmatprep.subr.bf16.mxu0 %v584
    %1349 = vmatpush1.bf16.msra.mxu0 %v583
    %1350 = vmatprep.subr.bf16.mxu0 %v588
    %1351 = vmatpush1.bf16.msra.mxu0 %v587
    %1352 = vmatprep.subr.bf16.mxu0 %v592
    %1353 = vmatpush1.bf16.msra.mxu0 %v591
    %1354 = vmatprep.subr.bf16.mxu0 %v596
    %1355 = vmatpush1.bf16.msra.mxu0 %v595
    %1356 = vmatprep.subr.bf16.mxu0 %v600
    %1357 = vmatpush1.bf16.msra.mxu0 %v599
    %1358 = vmatprep.subr.bf16.mxu0 %v604
    %1359 = vmatpush1.bf16.msra.mxu0 %v603
    %1360 = vmatprep.subr.bf16.mxu0 0
    %1361 = vmatpush1.bf16.msra.mxu0 0
    %1362 = vmatprep.subr.bf16.mxu0 0
    %1363 = vmatpush1.bf16.msra.mxu0 0
    %1364 = vmatprep.subr.bf16.mxu0 0
    %1365 = vmatpush1.bf16.msra.mxu0 0
    %1366 = vmatprep.subr.bf16.mxu0 0
    %1367 = vmatpush1.bf16.msra.mxu0 0
    %1368 = vmatprep.subr.bf16.mxu0 0
    %1369 = vmatpush1.bf16.msra.mxu0 0
    %1370 = vmatprep.subr.bf16.mxu0 0
    %1371 = vmatpush1.bf16.msra.mxu0 0
    %1372 = vmatprep.subr.bf16.mxu0 0
    %1373 = vmatpush1.bf16.msra.mxu0 0
    %1374 = vmatprep.subr.bf16.mxu0 0
    %1375 = vmatpush1.bf16.msra.mxu0 0
    %1376 = vmatprep.mubr.bf16.mxu0 0
    %1377 = vmatmul.mubr.bf16.gmra.mrb[0].mxu0 %v1302
    %v1378 = vpop.f32.mrb[0].mxu0
    %v1379 = vadd.f32 0.0, %v1378
    %v1380 = vpop.f32.mrb[0].mxu0
    %v1381 = vadd.f32 0.0, %v1380
    %v1382 = vpop.f32.mrb[0].mxu0
    %v1383 = vpop.f32.mrb[0].mxu0
    %1384 = vdwg.mxu0
    %v1385 = vadd.f32 %v396, %v1338
    %v1386 = vadd.f32 %v398, %v1340
    %v1387 = vadd.f32 %v469, %v1379
    %v1388 = vadd.f32 %v471, %v1381
    %v1389 = vxor.u32 %v1385, 2147483648
    %v1390 = vmul.f32 %v1389, 1.442695
    %v1391 = vpow.pop %v1390
    %v1392 = vadd.f32 %v1391, 1.0
    %v1393 = vrcp.pop %v1392
    %v1394 = vmul.f32 1.0, %v1393
    %v1395 = vxor.u32 %v1386, 2147483648
    %v1396 = vmul.f32 %v1395, 1.442695
    %v1397 = vpow.pop %v1396
    %v1398 = vadd.f32 %v1397, 1.0
    %v1399 = vrcp.pop %v1398
    %v1400 = vmul.f32 1.0, %v1399
    %v1401 = vtanh.pop %v1387
    %v1402 = vxor.u32 %v1388, 2147483648
    %v1403 = vmul.f32 %v1402, 1.442695
    %v1404 = vpow.pop %v1403
    %v1405 = vadd.f32 %v1404, 1.0
    %v1406 = vrcp.pop %v1405
    %v1407 = vmul.f32 1.0, %v1406
    %v1408 = vmul.f32 %v1400, %v1299
    %v1409 = vmul.f32 %v1394, %v1401
    %v1410 = vadd.f32 %v1408, %v1409
    %v1411 = vtanh.pop %v1410
    %v1412 = vmul.f32 %v1407, %v1411
    %v1413 = vpack.c.bf16 %v1412, %v1412
    %1414 = vmatprep.subr.bf16.mxu0 %v574
    %1415 = vmatpush1.bf16.msra.mxu0 %v573
    %1416 = vmatprep.subr.bf16.mxu0 %v578
    %1417 = vmatpush1.bf16.msra.mxu0 %v577
    %1418 = vmatprep.subr.bf16.mxu0 %v582
    %1419 = vmatpush1.bf16.msra.mxu0 %v581
    %1420 = vmatprep.subr.bf16.mxu0 %v586
    %1421 = vmatpush1.bf16.msra.mxu0 %v585
    %1422 = vmatprep.subr.bf16.mxu0 %v590
    %1423 = vmatpush1.bf16.msra.mxu0 %v589
    %1424 = vmatprep.subr.bf16.mxu0 %v594
    %1425 = vmatpush1.bf16.msra.mxu0 %v593
    %1426 = vmatprep.subr.bf16.mxu0 %v598
    %1427 = vmatpush1.bf16.msra.mxu0 %v597
    %1428 = vmatprep.subr.bf16.mxu0 %v602
    %1429 = vmatpush1.bf16.msra.mxu0 %v601
    %1430 = vmatprep.subr.bf16.mxu0 0
    %1431 = vmatpush1.bf16.msra.mxu0 0
    %1432 = vmatprep.subr.bf16.mxu0 0
    %1433 = vmatpush1.bf16.msra.mxu0 0
    %1434 = vmatprep.subr.bf16.mxu0 0
    %1435 = vmatpush1.bf16.msra.mxu0 0
    %1436 = vmatprep.subr.bf16.mxu0 0
    %1437 = vmatpush1.bf16.msra.mxu0 0
    %1438 = vmatprep.subr.bf16.mxu0 0
    %1439 = vmatpush1.bf16.msra.mxu0 0
    %1440 = vmatprep.subr.bf16.mxu0 0
    %1441 = vmatpush1.bf16.msra.mxu0 0
    %1442 = vmatprep.subr.bf16.mxu0 0
    %1443 = vmatpush1.bf16.msra.mxu0 0
    %1444 = vmatprep.subr.bf16.mxu0 0
    %1445 = vmatpush1.bf16.msra.mxu0 0
    %1446 = vmatprep.mubr.bf16.mxu0 0
    %1447 = vmatmul.mubr.bf16.gmra.mrb[0].mxu0 %v1413
    %v1448 = vpop.f32.mrb[0].mxu0
    %v1449 = vadd.f32 0.0, %v1448
    %v1450 = vpop.f32.mrb[0].mxu0
    %v1451 = vadd.f32 0.0, %v1450
    %v1452 = vpop.f32.mrb[0].mxu0
    %v1453 = vpop.f32.mrb[0].mxu0
    %1454 = vdwg.mxu0
    %1455 = vmatprep.subr.bf16.mxu0 %v576
    %1456 = vmatpush1.bf16.msra.mxu0 %v575
    %1457 = vmatprep.subr.bf16.mxu0 %v580
    %1458 = vmatpush1.bf16.msra.mxu0 %v579
    %1459 = vmatprep.subr.bf16.mxu0 %v584
    %1460 = vmatpush1.bf16.msra.mxu0 %v583
    %1461 = vmatprep.subr.bf16.mxu0 %v588
    %1462 = vmatpush1.bf16.msra.mxu0 %v587
    %1463 = vmatprep.subr.bf16.mxu0 %v592
    %1464 = vmatpush1.bf16.msra.mxu0 %v591
    %1465 = vmatprep.subr.bf16.mxu0 %v596
    %1466 = vmatpush1.bf16.msra.mxu0 %v595
    %1467 = vmatprep.subr.bf16.mxu0 %v600
    %1468 = vmatpush1.bf16.msra.mxu0 %v599
    %1469 = vmatprep.subr.bf16.mxu0 %v604
    %1470 = vmatpush1.bf16.msra.mxu0 %v603
    %1471 = vmatprep.subr.bf16.mxu0 0
    %1472 = vmatpush1.bf16.msra.mxu0 0
    %1473 = vmatprep.subr.bf16.mxu0 0
    %1474 = vmatpush1.bf16.msra.mxu0 0
    %1475 = vmatprep.subr.bf16.mxu0 0
    %1476 = vmatpush1.bf16.msra.mxu0 0
    %1477 = vmatprep.subr.bf16.mxu0 0
    %1478 = vmatpush1.bf16.msra.mxu0 0
    %1479 = vmatprep.subr.bf16.mxu0 0
    %1480 = vmatpush1.bf16.msra.mxu0 0
    %1481 = vmatprep.subr.bf16.mxu0 0
    %1482 = vmatpush1.bf16.msra.mxu0 0
    %1483 = vmatprep.subr.bf16.mxu0 0
    %1484 = vmatpush1.bf16.msra.mxu0 0
    %1485 = vmatprep.subr.bf16.mxu0 0
    %1486 = vmatpush1.bf16.msra.mxu0 0
    %1487 = vmatprep.mubr.bf16.mxu0 0
    %1488 = vmatmul.mubr.bf16.gmra.mrb[0].mxu0 %v1413
    %v1489 = vpop.f32.mrb[0].mxu0
    %v1490 = vadd.f32 0.0, %v1489
    %v1491 = vpop.f32.mrb[0].mxu0
    %v1492 = vadd.f32 0.0, %v1491
    %v1493 = vpop.f32.mrb[0].mxu0
    %v1494 = vpop.f32.mrb[0].mxu0
    %1495 = vdwg.mxu0
    %v1496 = vadd.f32 %v400, %v1449
    %v1497 = vadd.f32 %v402, %v1451
    %v1498 = vadd.f32 %v473, %v1490
    %v1499 = vadd.f32 %v475, %v1492
    %v1500 = vxor.u32 %v1496, 2147483648
    %v1501 = vmul.f32 %v1500, 1.442695
    %v1502 = vpow.pop %v1501
    %v1503 = vadd.f32 %v1502, 1.0
    %v1504 = vrcp.pop %v1503
    %v1505 = vmul.f32 1.0, %v1504
    %v1506 = vxor.u32 %v1497, 2147483648
    %v1507 = vmul.f32 %v1506, 1.442695
    %v1508 = vpow.pop %v1507
    %v1509 = vadd.f32 %v1508, 1.0
    %v1510 = vrcp.pop %v1509
    %v1511 = vmul.f32 1.0, %v1510
    %v1512 = vtanh.pop %v1498
    %v1513 = vxor.u32 %v1499, 2147483648
    %v1514 = vmul.f32 %v1513, 1.442695
    %v1515 = vpow.pop %v1514
    %v1516 = vadd.f32 %v1515, 1.0
    %v1517 = vrcp.pop %v1516
    %v1518 = vmul.f32 1.0, %v1517
    %v1519 = vmul.f32 %v1511, %v1410
    %v1520 = vmul.f32 %v1505, %v1512
    %v1521 = vadd.f32 %v1519, %v1520
    %v1522 = vtanh.pop %v1521
    %v1523 = vmul.f32 %v1518, %v1522
    %v1524 = vpack.c.bf16 %v1523, %v1523
    %v1525 = vld [vmem:[%s6] sm:$0xf]
    %v1526 = vld [vmem:[%s6 + $0x4] sm:$0xf]
    %v1527 = vld [vmem:[%s6 + $0x8] sm:$0xf]
    %v1528 = vld [vmem:[%s6 + $0xc] sm:$0xf]
    %v1529 = vld [vmem:[%s6 + $0x10] sm:$0xf]
    %v1530 = vld [vmem:[%s6 + $0x14] sm:$0xf]
    %v1531 = vld [vmem:[%s6 + $0x18] sm:$0xf]
    %v1532 = vld [vmem:[%s6 + $0x1c] sm:$0xf]
    %v1533 = vld [vmem:[%s6 + $0x20] sm:$0xf]
    %v1534 = vld [vmem:[%s6 + $0x24] sm:$0xf]
    %v1535 = vld [vmem:[%s6 + $0x28] sm:$0xf]
    %v1536 = vld [vmem:[%s6 + $0x2c] sm:$0xf]
    %v1537 = vld [vmem:[%s6 + $0x30] sm:$0xf]
    %v1538 = vld [vmem:[%s6 + $0x34] sm:$0xf]
    %v1539 = vld [vmem:[%s6 + $0x38] sm:$0xf]
    %v1540 = vld [vmem:[%s6 + $0x3c] sm:$0xf]
    %v1541 = vld [vmem:[%s7] sm:$0x1]
    %v1543 = vlaneseq
    %v1544 = vshrl.u32 %v1543, 7
    %v1545 = vsub.s32 0, %v1544
    %v1546 = vrot.slane %v1541, %v1545
    %v1564 = vunpack.c.l.b16 %v1525
    %v1565 = vunpack.c.l.b16 %v1526
    %v1566 = vunpack.c.l.b16 %v1527
    %v1567 = vunpack.c.l.b16 %v1528
    %v1568 = vunpack.c.l.b16 %v1529
    %v1569 = vunpack.c.l.b16 %v1530
    %v1570 = vunpack.c.l.b16 %v1531
    %v1571 = vunpack.c.l.b16 %v1532
    %v1572 = vunpack.c.l.b16 %v1533
    %v1573 = vunpack.c.l.b16 %v1534
    %v1574 = vunpack.c.l.b16 %v1535
    %v1575 = vunpack.c.l.b16 %v1536
    %v1576 = vunpack.c.l.b16 %v1537
    %v1577 = vunpack.c.l.b16 %v1538
    %v1578 = vunpack.c.l.b16 %v1539
    %v1579 = vunpack.c.l.b16 %v1540
    %v1580 = vpack.c.b16 %v1565, %v1564
    %v1581 = vpack.c.b16 %v1567, %v1566
    %v1582 = vpack.c.b16 %v1569, %v1568
    %v1583 = vpack.c.b16 %v1571, %v1570
    %v1584 = vpack.c.b16 %v1573, %v1572
    %v1585 = vpack.c.b16 %v1575, %v1574
    %v1586 = vpack.c.b16 %v1577, %v1576
    %v1587 = vpack.c.b16 %v1579, %v1578
    %1596 = vmatprep.subr.bf16.mxu0 0
    %1597 = vmatpush1.bf16.msra.mxu0 %v1580
    %1598 = vmatprep.subr.bf16.mxu0 0
    %1599 = vmatpush1.bf16.msra.mxu0 %v1581
    %1600 = vmatprep.subr.bf16.mxu0 0
    %1601 = vmatpush1.bf16.msra.mxu0 %v1582
    %1602 = vmatprep.subr.bf16.mxu0 0
    %1603 = vmatpush1.bf16.msra.mxu0 %v1583
    %1604 = vmatprep.subr.bf16.mxu0 0
    %1605 = vmatpush1.bf16.msra.mxu0 %v1584
    %1606 = vmatprep.subr.bf16.mxu0 0
    %1607 = vmatpush1.bf16.msra.mxu0 %v1585
    %1608 = vmatprep.subr.bf16.mxu0 0
    %1609 = vmatpush1.bf16.msra.mxu0 %v1586
    %1610 = vmatprep.subr.bf16.mxu0 0
    %1611 = vmatpush1.bf16.msra.mxu0 %v1587
    %1612 = vmatprep.subr.bf16.mxu0 0
    %1613 = vmatpush1.bf16.msra.mxu0 0
    %1614 = vmatprep.subr.bf16.mxu0 0
    %1615 = vmatpush1.bf16.msra.mxu0 0
    %1616 = vmatprep.subr.bf16.mxu0 0
    %1617 = vmatpush1.bf16.msra.mxu0 0
    %1618 = vmatprep.subr.bf16.mxu0 0
    %1619 = vmatpush1.bf16.msra.mxu0 0
    %1620 = vmatprep.subr.bf16.mxu0 0
    %1621 = vmatpush1.bf16.msra.mxu0 0
    %1622 = vmatprep.subr.bf16.mxu0 0
    %1623 = vmatpush1.bf16.msra.mxu0 0
    %1624 = vmatprep.subr.bf16.mxu0 0
    %1625 = vmatpush1.bf16.msra.mxu0 0
    %1626 = vmatprep.subr.bf16.mxu0 0
    %1627 = vmatpush1.bf16.msra.mxu0 0
    %1628 = vmatprep.mubr.bf16.mxu0 0
    %1629 = vmatmul.mubr.bf16.gmra.mrb[0].mxu0 %v1524
    %v1630 = vpop.f32.mrb[0].mxu0
    %v1631 = vadd.f32 %v1546, %v1630
    %v1632 = vpop.f32.mrb[0].mxu0
    %v1633 = vpop.f32.mrb[0].mxu0
    %v1634 = vpop.f32.mrb[0].mxu0
    %1635 = vdwg.mxu0
    %vm1636 = vcmask 261120
    %1637 = vst.msk [vmem:[#allocation2] sm:$0xff] %vm1636, %v1631
    %1639 = vrot.lane.b32.xlu0 %v1631, 96
    %v1640 = vpop.permute.xlu0 %1639
    %1642 = vst.msk [vmem:[#allocation4] sm:$0xff] %vm1636, %v1640
    %v1643 = vmul.f32 %v1631, 0.5
    %v1644 = vmul.f32 %v1643, 1.442695
    %v1645 = vpow.pop %v1644
    %v1646 = vld [vmem:[%s1] sm:$0xff]
    %1648 = vrot.lane.b32.xlu0 %v1645, 96
    %v1649 = vpop.permute.xlu0 %1648
    %v1651 = vmul.f32 %v1646, %v1649
    %v1652 = vadd.f32 %v1631, %v1651
    %v1653 = vpack.c.bf16 %v1652, %v1652
    %v1654 = vld [vmem:[%s8] sm:$0xf]
    %v1655 = vld [vmem:[%s8 + $0x4] sm:$0xf]
    %v1656 = vld [vmem:[%s8 + $0x8] sm:$0xf]
    %v1657 = vld [vmem:[%s8 + $0xc] sm:$0xf]
    %v1658 = vld [vmem:[%s2] sm:$0xff]
    %v1659 = vpack.c.bf16 %v1658, %v1658
    %v1660 = vld [vmem:[%s9] sm:$0xf]
    %v1661 = vld [vmem:[%s9 + $0x4] sm:$0xf]
    %v1664 = vunpack.c.l.b16 %v1660
    %v1665 = vunpack.c.l.b16 %v1661
    %v1666 = vpack.c.b16 %v1665, %v1664
    %vm1668 = vcmask 130048
    %v1670 = vsel %vm1668, %v1659, 0
    %1672 = vmatprep.subr.bf16.mxu0 0
    %1673 = vmatpush1.bf16.msra.mxu0 %v1666
    %1674 = vmatprep.subr.bf16.mxu0 0
    %1675 = vmatpush1.bf16.msra.mxu0 0
    %1676 = vmatprep.subr.bf16.mxu0 0
    %1677 = vmatpush1.bf16.msra.mxu0 0
    %1678 = vmatprep.subr.bf16.mxu0 0
    %1679 = vmatpush1.bf16.msra.mxu0 0
    %1680 = vmatprep.subr.bf16.mxu0 0
    %1681 = vmatpush1.bf16.msra.mxu0 0
    %1682 = vmatprep.subr.bf16.mxu0 0
    %1683 = vmatpush1.bf16.msra.mxu0 0
    %1684 = vmatprep.subr.bf16.mxu0 0
    %1685 = vmatpush1.bf16.msra.mxu0 0
    %1686 = vmatprep.subr.bf16.mxu0 0
    %1687 = vmatpush1.bf16.msra.mxu0 0
    %1688 = vmatprep.subr.bf16.mxu0 0
    %1689 = vmatpush1.bf16.msra.mxu0 0
    %1690 = vmatprep.subr.bf16.mxu0 0
    %1691 = vmatpush1.bf16.msra.mxu0 0
    %1692 = vmatprep.subr.bf16.mxu0 0
    %1693 = vmatpush1.bf16.msra.mxu0 0
    %1694 = vmatprep.subr.bf16.mxu0 0
    %1695 = vmatpush1.bf16.msra.mxu0 0
    %1696 = vmatprep.subr.bf16.mxu0 0
    %1697 = vmatpush1.bf16.msra.mxu0 0
    %1698 = vmatprep.subr.bf16.mxu0 0
    %1699 = vmatpush1.bf16.msra.mxu0 0
    %1700 = vmatprep.subr.bf16.mxu0 0
    %1701 = vmatpush1.bf16.msra.mxu0 0
    %1702 = vmatprep.subr.bf16.mxu0 0
    %1703 = vmatpush1.bf16.msra.mxu0 0
    %1704 = vmatprep.mubr.bf16.mxu0 0
    %1705 = vmatmul.mubr.bf16.gmra.mrb[0].mxu0 %v1670
    %v1706 = vpop.f32.mrb[0].mxu0
    %v1707 = vadd.f32 0.0, %v1706
    %v1708 = vpop.f32.mrb[0].mxu0
    %v1709 = vpop.f32.mrb[0].mxu0
    %v1710 = vpop.f32.mrb[0].mxu0
    %1711 = vdwg.mxu0
    %v1716 = vunpack.c.l.b16 %v1654
    %v1717 = vunpack.c.l.b16 %v1655
    %v1718 = vunpack.c.l.b16 %v1656
    %v1719 = vunpack.c.l.b16 %v1657
    %v1720 = vpack.c.b16 %v1717, %v1716
    %v1721 = vpack.c.b16 %v1719, %v1718
    %v1725 = vsel %vm1636, %v1653, 0
    %1727 = vmatprep.subr.bf16.mxu0 0
    %1728 = vmatpush1.bf16.msra.mxu0 %v1720
    %1729 = vmatprep.subr.bf16.mxu0 0
    %1730 = vmatpush1.bf16.msra.mxu0 %v1721
    %1731 = vmatprep.subr.bf16.mxu0 0
    %1732 = vmatpush1.bf16.msra.mxu0 0
    %1733 = vmatprep.subr.bf16.mxu0 0
    %1734 = vmatpush1.bf16.msra.mxu0 0
    %1735 = vmatprep.subr.bf16.mxu0 0
    %1736 = vmatpush1.bf16.msra.mxu0 0
    %1737 = vmatprep.subr.bf16.mxu0 0
    %1738 = vmatpush1.bf16.msra.mxu0 0
    %1739 = vmatprep.subr.bf16.mxu0 0
    %1740 = vmatpush1.bf16.msra.mxu0 0
    %1741 = vmatprep.subr.bf16.mxu0 0
    %1742 = vmatpush1.bf16.msra.mxu0 0
    %1743 = vmatprep.subr.bf16.mxu0 0
    %1744 = vmatpush1.bf16.msra.mxu0 0
    %1745 = vmatprep.subr.bf16.mxu0 0
    %1746 = vmatpush1.bf16.msra.mxu0 0
    %1747 = vmatprep.subr.bf16.mxu0 0
    %1748 = vmatpush1.bf16.msra.mxu0 0
    %1749 = vmatprep.subr.bf16.mxu0 0
    %1750 = vmatpush1.bf16.msra.mxu0 0
    %1751 = vmatprep.subr.bf16.mxu0 0
    %1752 = vmatpush1.bf16.msra.mxu0 0
    %1753 = vmatprep.subr.bf16.mxu0 0
    %1754 = vmatpush1.bf16.msra.mxu0 0
    %1755 = vmatprep.subr.bf16.mxu0 0
    %1756 = vmatpush1.bf16.msra.mxu0 0
    %1757 = vmatprep.subr.bf16.mxu0 0
    %1758 = vmatpush1.bf16.msra.mxu0 0
    %1759 = vmatprep.mubr.bf16.mxu0 0
    %1760 = vmatmul.mubr.bf16.gmra.mrb[0].mxu0 %v1725
    %v1761 = vpop.f32.mrb[0].mxu0
    %v1762 = vadd.f32 %v1707, %v1761
    %v1763 = vpop.f32.mrb[0].mxu0
    %v1764 = vpop.f32.mrb[0].mxu0
    %v1765 = vpop.f32.mrb[0].mxu0
    %1766 = vdwg.mxu0
    %v1767 = vld [vmem:[%s10] sm:$0x1]
    %v1769 = vlaneseq
    %v1770 = vshrl.u32 %v1769, 7
    %v1771 = vsub.s32 0, %v1770
    %v1772 = vrot.slane %v1767, %v1771
    %v1774 = vadd.f32 %v1762, %v1772
    %v1775 = vld [vmem:[%s12] sm:$0xff]
    %v1776 = vld [vmem:[%s12 + $0x8] sm:$0xff]
    %v1777 = vld [vmem:[%s12 + $0x10] sm:$0xff]
    %v1778 = vld [vmem:[%s12 + $0x18] sm:$0xff]
    %v1779 = vld [vmem:[%s12 + $0x20] sm:$0xff]
    %v1780 = vld [vmem:[%s12 + $0x28] sm:$0xff]
    %v1781 = vld [vmem:[%s12 + $0x30] sm:$0xff]
    %v1782 = vld [vmem:[%s12 + $0x38] sm:$0xff]
    %v1783 = vld [vmem:[%s12 + $0x40] sm:$0xff]
    %v1784 = vld [vmem:[%s12 + $0x48] sm:$0xff]
    %v1785 = vld [vmem:[%s12 + $0x50] sm:$0xff]
    %v1786 = vld [vmem:[%s12 + $0x58] sm:$0xff]
    %v1787 = vld [vmem:[%s12 + $0x60] sm:$0xff]
    %v1788 = vld [vmem:[%s12 + $0x68] sm:$0xff]
    %v1789 = vld [vmem:[%s12 + $0x70] sm:$0xff]
    %v1790 = vld [vmem:[%s12 + $0x78] sm:$0xff]
    %v1791 = vld [vmem:[%s12 + $0x80] sm:$0xff]
    %v1792 = vld [vmem:[%s12 + $0x88] sm:$0xff]
    %v1793 = vld [vmem:[%s12 + $0x90] sm:$0xff]
    %v1794 = vld [vmem:[%s12 + $0x98] sm:$0xff]
    %v1795 = vld [vmem:[%s12 + $0xa0] sm:$0xff]
    %v1796 = vld [vmem:[%s12 + $0xa8] sm:$0xff]
    %v1797 = vld [vmem:[%s12 + $0xb0] sm:$0xff]
    %v1798 = vld [vmem:[%s12 + $0xb8] sm:$0xff]
    %v1799 = vld [vmem:[%s12 + $0xc0] sm:$0xff]
    %v1800 = vld [vmem:[%s12 + $0xc8] sm:$0xff]
    %v1801 = vld [vmem:[%s12 + $0xd0] sm:$0xff]
    %v1802 = vld [vmem:[%s12 + $0xd8] sm:$0xff]
    %v1803 = vld [vmem:[%s12 + $0xe0] sm:$0xff]
    %v1804 = vld [vmem:[%s12 + $0xe8] sm:$0xff]
    %v1805 = vld [vmem:[%s12 + $0xf0] sm:$0xff]
    %v1806 = vld [vmem:[%s12 + $0xf8] sm:$0xff]
    %v1807 = vpack.c.bf16 %v1774, %v1774
    %v1808 = vld [vmem:[%s11] sm:$0xff]
    %v1809 = vld [vmem:[%s11 + $0x8] sm:$0xff]
    %v1810 = vld [vmem:[%s11 + $0x10] sm:$0xff]
    %v1811 = vld [vmem:[%s11 + $0x18] sm:$0xff]
    %v1812 = vld [vmem:[%s11 + $0x20] sm:$0xff]
    %v1813 = vld [vmem:[%s11 + $0x28] sm:$0xff]
    %v1814 = vld [vmem:[%s11 + $0x30] sm:$0xff]
    %v1815 = vld [vmem:[%s11 + $0x38] sm:$0xff]
    %v1816 = vld [vmem:[%s11 + $0x40] sm:$0xff]
    %v1817 = vld [vmem:[%s11 + $0x48] sm:$0xff]
    %v1818 = vld [vmem:[%s11 + $0x50] sm:$0xff]
    %v1819 = vld [vmem:[%s11 + $0x58] sm:$0xff]
    %v1820 = vld [vmem:[%s11 + $0x60] sm:$0xff]
    %v1821 = vld [vmem:[%s11 + $0x68] sm:$0xff]
    %v1822 = vld [vmem:[%s11 + $0x70] sm:$0xff]
    %v1823 = vld [vmem:[%s11 + $0x78] sm:$0xff]
    %v1824 = vld [vmem:[%s13] sm:$0xf]
    %v1826 = vlaneseq
    %v1827 = vshrl.u32 %v1826, 7
    %v1828 = vsub.s32 0, %v1827
    %v1829 = vrot.slane %v1824, %v1828
    %v1830 = vlaneseq
    %v1831 = vshrl.u32 %v1830, 7
    %v1832 = vsub.s32 1, %v1831
    %v1833 = vrot.slane %v1824, %v1832
    %v1834 = vlaneseq
    %v1835 = vshrl.u32 %v1834, 7
    %v1836 = vsub.s32 2, %v1835
    %v1837 = vrot.slane %v1824, %v1836
    %v1838 = vlaneseq
    %v1839 = vshrl.u32 %v1838, 7
    %v1840 = vsub.s32 3, %v1839
    %v1841 = vrot.slane %v1824, %v1840
    %v1862 = vunpack.c.l.b16 %v1808
    %v1863 = vunpack.c.h.b16 %v1808
    %v1864 = vunpack.c.l.b16 %v1809
    %v1865 = vunpack.c.h.b16 %v1809
    %v1866 = vunpack.c.l.b16 %v1810
    %v1867 = vunpack.c.h.b16 %v1810
    %v1868 = vunpack.c.l.b16 %v1811
    %v1869 = vunpack.c.h.b16 %v1811
    %v1870 = vunpack.c.l.b16 %v1812
    %v1871 = vunpack.c.h.b16 %v1812
    %v1872 = vunpack.c.l.b16 %v1813
    %v1873 = vunpack.c.h.b16 %v1813
    %v1874 = vunpack.c.l.b16 %v1814
    %v1875 = vunpack.c.h.b16 %v1814
    %v1876 = vunpack.c.l.b16 %v1815
    %v1877 = vunpack.c.h.b16 %v1815
    %v1878 = vunpack.c.l.b16 %v1816
    %v1879 = vunpack.c.h.b16 %v1816
    %v1880 = vunpack.c.l.b16 %v1817
    %v1881 = vunpack.c.h.b16 %v1817
    %v1882 = vunpack.c.l.b16 %v1818
    %v1883 = vunpack.c.h.b16 %v1818
    %v1884 = vunpack.c.l.b16 %v1819
    %v1885 = vunpack.c.h.b16 %v1819
    %v1886 = vunpack.c.l.b16 %v1820
    %v1887 = vunpack.c.h.b16 %v1820
    %v1888 = vunpack.c.l.b16 %v1821
    %v1889 = vunpack.c.h.b16 %v1821
    %v1890 = vunpack.c.l.b16 %v1822
    %v1891 = vunpack.c.h.b16 %v1822
    %v1892 = vunpack.c.l.b16 %v1823
    %v1893 = vunpack.c.h.b16 %v1823
    %v1894 = vpack.c.b16 %v1866, %v1862
    %v1895 = vpack.c.b16 %v1867, %v1863
    %v1896 = vpack.c.b16 %v1868, %v1864
    %v1897 = vpack.c.b16 %v1869, %v1865
    %v1898 = vpack.c.b16 %v1874, %v1870
    %v1899 = vpack.c.b16 %v1875, %v1871
    %v1900 = vpack.c.b16 %v1876, %v1872
    %v1901 = vpack.c.b16 %v1877, %v1873
    %v1902 = vpack.c.b16 %v1882, %v1878
    %v1903 = vpack.c.b16 %v1883, %v1879
    %v1904 = vpack.c.b16 %v1884, %v1880
    %v1905 = vpack.c.b16 %v1885, %v1881
    %v1906 = vpack.c.b16 %v1890, %v1886
    %v1907 = vpack.c.b16 %v1891, %v1887
    %v1908 = vpack.c.b16 %v1892, %v1888
    %v1909 = vpack.c.b16 %v1893, %v1889
    %vm1926 = vcmask 523264
    %v1928 = vsel %vm1926, %v1807, 0
    %1930 = vmatprep.subr.bf16.mxu0 %v1895
    %1931 = vmatpush1.bf16.msra.mxu0 %v1894
    %1932 = vmatprep.subr.bf16.mxu0 %v1899
    %1933 = vmatpush1.bf16.msra.mxu0 %v1898
    %1934 = vmatprep.subr.bf16.mxu0 %v1903
    %1935 = vmatpush1.bf16.msra.mxu0 %v1902
    %1936 = vmatprep.subr.bf16.mxu0 %v1907
    %1937 = vmatpush1.bf16.msra.mxu0 %v1906
    %1938 = vmatprep.subr.bf16.mxu0 0
    %1939 = vmatpush1.bf16.msra.mxu0 0
    %1940 = vmatprep.subr.bf16.mxu0 0
    %1941 = vmatpush1.bf16.msra.mxu0 0
    %1942 = vmatprep.subr.bf16.mxu0 0
    %1943 = vmatpush1.bf16.msra.mxu0 0
    %1944 = vmatprep.subr.bf16.mxu0 0
    %1945 = vmatpush1.bf16.msra.mxu0 0
    %1946 = vmatprep.subr.bf16.mxu0 0
    %1947 = vmatpush1.bf16.msra.mxu0 0
    %1948 = vmatprep.subr.bf16.mxu0 0
    %1949 = vmatpush1.bf16.msra.mxu0 0
    %1950 = vmatprep.subr.bf16.mxu0 0
    %1951 = vmatpush1.bf16.msra.mxu0 0
    %1952 = vmatprep.subr.bf16.mxu0 0
    %1953 = vmatpush1.bf16.msra.mxu0 0
    %1954 = vmatprep.subr.bf16.mxu0 0
    %1955 = vmatpush1.bf16.msra.mxu0 0
    %1956 = vmatprep.subr.bf16.mxu0 0
    %1957 = vmatpush1.bf16.msra.mxu0 0
    %1958 = vmatprep.subr.bf16.mxu0 0
    %1959 = vmatpush1.bf16.msra.mxu0 0
    %1960 = vmatprep.subr.bf16.mxu0 0
    %1961 = vmatpush1.bf16.msra.mxu0 0
    %1962 = vmatprep.mubr.bf16.mxu0 0
    %1963 = vmatmul.mubr.bf16.gmra.mrb[0].mxu0 %v1928
    %v1964 = vpop.f32.mrb[0].mxu0
    %v1965 = vadd.f32 %v1829, %v1964
    %v1966 = vpop.f32.mrb[0].mxu0
    %v1967 = vadd.f32 %v1833, %v1966
    %v1968 = vpop.f32.mrb[0].mxu0
    %v1969 = vpop.f32.mrb[0].mxu0
    %1970 = vdwg.mxu0
    %1971 = vmatprep.subr.bf16.mxu0 %v1897
    %1972 = vmatpush1.bf16.msra.mxu0 %v1896
    %1973 = vmatprep.subr.bf16.mxu0 %v1901
    %1974 = vmatpush1.bf16.msra.mxu0 %v1900
    %1975 = vmatprep.subr.bf16.mxu0 %v1905
    %1976 = vmatpush1.bf16.msra.mxu0 %v1904
    %1977 = vmatprep.subr.bf16.mxu0 %v1909
    %1978 = vmatpush1.bf16.msra.mxu0 %v1908
    %1979 = vmatprep.subr.bf16.mxu0 0
    %1980 = vmatpush1.bf16.msra.mxu0 0
    %1981 = vmatprep.subr.bf16.mxu0 0
    %1982 = vmatpush1.bf16.msra.mxu0 0
    %1983 = vmatprep.subr.bf16.mxu0 0
    %1984 = vmatpush1.bf16.msra.mxu0 0
    %1985 = vmatprep.subr.bf16.mxu0 0
    %1986 = vmatpush1.bf16.msra.mxu0 0
    %1987 = vmatprep.subr.bf16.mxu0 0
    %1988 = vmatpush1.bf16.msra.mxu0 0
    %1989 = vmatprep.subr.bf16.mxu0 0
    %1990 = vmatpush1.bf16.msra.mxu0 0
    %1991 = vmatprep.subr.bf16.mxu0 0
    %1992 = vmatpush1.bf16.msra.mxu0 0
    %1993 = vmatprep.subr.bf16.mxu0 0
    %1994 = vmatpush1.bf16.msra.mxu0 0
    %1995 = vmatprep.subr.bf16.mxu0 0
    %1996 = vmatpush1.bf16.msra.mxu0 0
    %1997 = vmatprep.subr.bf16.mxu0 0
    %1998 = vmatpush1.bf16.msra.mxu0 0
    %1999 = vmatprep.subr.bf16.mxu0 0
    %2000 = vmatpush1.bf16.msra.mxu0 0
    %2001 = vmatprep.subr.bf16.mxu0 0
    %2002 = vmatpush1.bf16.msra.mxu0 0
    %2003 = vmatprep.mubr.bf16.mxu0 0
    %2004 = vmatmul.mubr.bf16.gmra.mrb[0].mxu0 %v1928
    %v2005 = vpop.f32.mrb[0].mxu0
    %v2006 = vadd.f32 %v1837, %v2005
    %v2007 = vpop.f32.mrb[0].mxu0
    %v2008 = vadd.f32 %v1841, %v2007
    %v2009 = vpop.f32.mrb[0].mxu0
    %v2010 = vpop.f32.mrb[0].mxu0
    %2011 = vdwg.mxu0
    %v2044 = vunpack.c.l.b16 %v1775
    %v2045 = vunpack.c.h.b16 %v1775
    %v2046 = vunpack.c.l.b16 %v1776
    %v2047 = vunpack.c.h.b16 %v1776
    %v2048 = vunpack.c.l.b16 %v1777
    %v2049 = vunpack.c.h.b16 %v1777
    %v2050 = vunpack.c.l.b16 %v1778
    %v2051 = vunpack.c.h.b16 %v1778
    %v2052 = vunpack.c.l.b16 %v1779
    %v2053 = vunpack.c.h.b16 %v1779
    %v2054 = vunpack.c.l.b16 %v1780
    %v2055 = vunpack.c.h.b16 %v1780
    %v2056 = vunpack.c.l.b16 %v1781
    %v2057 = vunpack.c.h.b16 %v1781
    %v2058 = vunpack.c.l.b16 %v1782
    %v2059 = vunpack.c.h.b16 %v1782
    %v2060 = vunpack.c.l.b16 %v1783
    %v2061 = vunpack.c.h.b16 %v1783
    %v2062 = vunpack.c.l.b16 %v1784
    %v2063 = vunpack.c.h.b16 %v1784
    %v2064 = vunpack.c.l.b16 %v1785
    %v2065 = vunpack.c.h.b16 %v1785
    %v2066 = vunpack.c.l.b16 %v1786
    %v2067 = vunpack.c.h.b16 %v1786
    %v2068 = vunpack.c.l.b16 %v1787
    %v2069 = vunpack.c.h.b16 %v1787
    %v2070 = vunpack.c.l.b16 %v1788
    %v2071 = vunpack.c.h.b16 %v1788
    %v2072 = vunpack.c.l.b16 %v1789
    %v2073 = vunpack.c.h.b16 %v1789
    %v2074 = vunpack.c.l.b16 %v1790
    %v2075 = vunpack.c.h.b16 %v1790
    %v2076 = vunpack.c.l.b16 %v1791
    %v2077 = vunpack.c.h.b16 %v1791
    %v2078 = vunpack.c.l.b16 %v1792
    %v2079 = vunpack.c.h.b16 %v1792
    %v2080 = vunpack.c.l.b16 %v1793
    %v2081 = vunpack.c.h.b16 %v1793
    %v2082 = vunpack.c.l.b16 %v1794
    %v2083 = vunpack.c.h.b16 %v1794
    %v2084 = vunpack.c.l.b16 %v1795
    %v2085 = vunpack.c.h.b16 %v1795
    %v2086 = vunpack.c.l.b16 %v1796
    %v2087 = vunpack.c.h.b16 %v1796
    %v2088 = vunpack.c.l.b16 %v1797
    %v2089 = vunpack.c.h.b16 %v1797
    %v2090 = vunpack.c.l.b16 %v1798
    %v2091 = vunpack.c.h.b16 %v1798
    %v2092 = vunpack.c.l.b16 %v1799
    %v2093 = vunpack.c.h.b16 %v1799
    %v2094 = vunpack.c.l.b16 %v1800
    %v2095 = vunpack.c.h.b16 %v1800
    %v2096 = vunpack.c.l.b16 %v1801
    %v2097 = vunpack.c.h.b16 %v1801
    %v2098 = vunpack.c.l.b16 %v1802
    %v2099 = vunpack.c.h.b16 %v1802
    %v2100 = vunpack.c.l.b16 %v1803
    %v2101 = vunpack.c.h.b16 %v1803
    %v2102 = vunpack.c.l.b16 %v1804
    %v2103 = vunpack.c.h.b16 %v1804
    %v2104 = vunpack.c.l.b16 %v1805
    %v2105 = vunpack.c.h.b16 %v1805
    %v2106 = vunpack.c.l.b16 %v1806
    %v2107 = vunpack.c.h.b16 %v1806
    %v2108 = vpack.c.b16 %v2048, %v2044
    %v2109 = vpack.c.b16 %v2049, %v2045
    %v2110 = vpack.c.b16 %v2050, %v2046
    %v2111 = vpack.c.b16 %v2051, %v2047
    %v2112 = vpack.c.b16 %v2056, %v2052
    %v2113 = vpack.c.b16 %v2057, %v2053
    %v2114 = vpack.c.b16 %v2058, %v2054
    %v2115 = vpack.c.b16 %v2059, %v2055
    %v2116 = vpack.c.b16 %v2064, %v2060
    %v2117 = vpack.c.b16 %v2065, %v2061
    %v2118 = vpack.c.b16 %v2066, %v2062
    %v2119 = vpack.c.b16 %v2067, %v2063
    %v2120 = vpack.c.b16 %v2072, %v2068
    %v2121 = vpack.c.b16 %v2073, %v2069
    %v2122 = vpack.c.b16 %v2074, %v2070
    %v2123 = vpack.c.b16 %v2075, %v2071
    %v2124 = vpack.c.b16 %v2080, %v2076
    %v2125 = vpack.c.b16 %v2081, %v2077
    %v2126 = vpack.c.b16 %v2082, %v2078
    %v2127 = vpack.c.b16 %v2083, %v2079
    %v2128 = vpack.c.b16 %v2088, %v2084
    %v2129 = vpack.c.b16 %v2089, %v2085
    %v2130 = vpack.c.b16 %v2090, %v2086
    %v2131 = vpack.c.b16 %v2091, %v2087
    %v2132 = vpack.c.b16 %v2096, %v2092
    %v2133 = vpack.c.b16 %v2097, %v2093
    %v2134 = vpack.c.b16 %v2098, %v2094
    %v2135 = vpack.c.b16 %v2099, %v2095
    %v2136 = vpack.c.b16 %v2104, %v2100
    %v2137 = vpack.c.b16 %v2105, %v2101
    %v2138 = vpack.c.b16 %v2106, %v2102
    %v2139 = vpack.c.b16 %v2107, %v2103
    %2172 = vmatprep.subr.bf16.mxu0 %v2109
    %2173 = vmatpush1.bf16.msra.mxu0 %v2108
    %2174 = vmatprep.subr.bf16.mxu0 %v2113
    %2175 = vmatpush1.bf16.msra.mxu0 %v2112
    %2176 = vmatprep.subr.bf16.mxu0 %v2117
    %2177 = vmatpush1.bf16.msra.mxu0 %v2116
    %2178 = vmatprep.subr.bf16.mxu0 %v2121
    %2179 = vmatpush1.bf16.msra.mxu0 %v2120
    %2180 = vmatprep.subr.bf16.mxu0 %v2125
    %2181 = vmatpush1.bf16.msra.mxu0 %v2124
    %2182 = vmatprep.subr.bf16.mxu0 %v2129
    %2183 = vmatpush1.bf16.msra.mxu0 %v2128
    %2184 = vmatprep.subr.bf16.mxu0 %v2133
    %2185 = vmatpush1.bf16.msra.mxu0 %v2132
    %2186 = vmatprep.subr.bf16.mxu0 %v2137
    %2187 = vmatpush1.bf16.msra.mxu0 %v2136
    %2188 = vmatprep.subr.bf16.mxu0 0
    %2189 = vmatpush1.bf16.msra.mxu0 0
    %2190 = vmatprep.subr.bf16.mxu0 0
    %2191 = vmatpush1.bf16.msra.mxu0 0
    %2192 = vmatprep.subr.bf16.mxu0 0
    %2193 = vmatpush1.bf16.msra.mxu0 0
    %2194 = vmatprep.subr.bf16.mxu0 0
    %2195 = vmatpush1.bf16.msra.mxu0 0
    %2196 = vmatprep.subr.bf16.mxu0 0
    %2197 = vmatpush1.bf16.msra.mxu0 0
    %2198 = vmatprep.subr.bf16.mxu0 0
    %2199 = vmatpush1.bf16.msra.mxu0 0
    %2200 = vmatprep.subr.bf16.mxu0 0
    %2201 = vmatpush1.bf16.msra.mxu0 0
    %2202 = vmatprep.subr.bf16.mxu0 0
    %2203 = vmatpush1.bf16.msra.mxu0 0
    %2204 = vmatprep.mubr.bf16.mxu0 0
    %2205 = vmatmul.mubr.bf16.gmra.mrb[0].mxu0 0
    %v2206 = vpop.f32.mrb[0].mxu0
    %v2207 = vadd.f32 0.0, %v2206
    %v2208 = vpop.f32.mrb[0].mxu0
    %v2209 = vadd.f32 0.0, %v2208
    %v2210 = vpop.f32.mrb[0].mxu0
    %v2211 = vpop.f32.mrb[0].mxu0
    %2212 = vdwg.mxu0
    %2213 = vmatprep.subr.bf16.mxu0 %v2111
    %2214 = vmatpush1.bf16.msra.mxu0 %v2110
    %2215 = vmatprep.subr.bf16.mxu0 %v2115
    %2216 = vmatpush1.bf16.msra.mxu0 %v2114
    %2217 = vmatprep.subr.bf16.mxu0 %v2119
    %2218 = vmatpush1.bf16.msra.mxu0 %v2118
    %2219 = vmatprep.subr.bf16.mxu0 %v2123
    %2220 = vmatpush1.bf16.msra.mxu0 %v2122
    %2221 = vmatprep.subr.bf16.mxu0 %v2127
    %2222 = vmatpush1.bf16.msra.mxu0 %v2126
    %2223 = vmatprep.subr.bf16.mxu0 %v2131
    %2224 = vmatpush1.bf16.msra.mxu0 %v2130
    %2225 = vmatprep.subr.bf16.mxu0 %v2135
    %2226 = vmatpush1.bf16.msra.mxu0 %v2134
    %2227 = vmatprep.subr.bf16.mxu0 %v2139
    %2228 = vmatpush1.bf16.msra.mxu0 %v2138
    %2229 = vmatprep.subr.bf16.mxu0 0
    %2230 = vmatpush1.bf16.msra.mxu0 0
    %2231 = vmatprep.subr.bf16.mxu0 0
    %2232 = vmatpush1.bf16.msra.mxu0 0
    %2233 = vmatprep.subr.bf16.mxu0 0
    %2234 = vmatpush1.bf16.msra.mxu0 0
    %2235 = vmatprep.subr.bf16.mxu0 0
    %2236 = vmatpush1.bf16.msra.mxu0 0
    %2237 = vmatprep.subr.bf16.mxu0 0
    %2238 = vmatpush1.bf16.msra.mxu0 0
    %2239 = vmatprep.subr.bf16.mxu0 0
    %2240 = vmatpush1.bf16.msra.mxu0 0
    %2241 = vmatprep.subr.bf16.mxu0 0
    %2242 = vmatpush1.bf16.msra.mxu0 0
    %2243 = vmatprep.subr.bf16.mxu0 0
    %2244 = vmatpush1.bf16.msra.mxu0 0
    %2245 = vmatprep.mubr.bf16.mxu0 0
    %2246 = vmatmul.mubr.bf16.gmra.mrb[0].mxu0 0
    %v2247 = vpop.f32.mrb[0].mxu0
    %v2248 = vadd.f32 0.0, %v2247
    %v2249 = vpop.f32.mrb[0].mxu0
    %v2250 = vadd.f32 0.0, %v2249
    %v2251 = vpop.f32.mrb[0].mxu0
    %v2252 = vpop.f32.mrb[0].mxu0
    %2253 = vdwg.mxu0
    %v2254 = vadd.f32 %v1965, %v2207
    %v2255 = vadd.f32 %v1967, %v2209
    %v2256 = vadd.f32 %v2006, %v2248
    %v2257 = vadd.f32 %v2008, %v2250
    %v2258 = vxor.u32 %v2254, 2147483648
    %v2259 = vmul.f32 %v2258, 1.442695
    %v2260 = vpow.pop %v2259
    %v2261 = vadd.f32 %v2260, 1.0
    %v2262 = vrcp.pop %v2261
    %v2263 = vmul.f32 1.0, %v2262
    %v2264 = vxor.u32 %v2255, 2147483648
    %v2265 = vmul.f32 %v2264, 1.442695
    %v2266 = vpow.pop %v2265
    %v2267 = vadd.f32 %v2266, 1.0
    %v2268 = vrcp.pop %v2267
    %v2269 = vmul.f32 1.0, %v2268
    %v2270 = vtanh.pop %v2256
    %v2271 = vxor.u32 %v2257, 2147483648
    %v2272 = vmul.f32 %v2271, 1.442695
    %v2273 = vpow.pop %v2272
    %v2274 = vadd.f32 %v2273, 1.0
    %v2275 = vrcp.pop %v2274
    %v2276 = vmul.f32 1.0, %v2275
    %v2277 = vmul.f32 %v2269, 0.0
    %v2278 = vmul.f32 %v2263, %v2270
    %v2279 = vadd.f32 %v2277, %v2278
    %v2280 = vtanh.pop %v2279
    %v2281 = vmul.f32 %v2276, %v2280
    %v2282 = vpack.c.bf16 %v2281, %v2281
    %2283 = vst [vmem:[%s16] sm:$0xf] %v2282
    %2284 = vmatprep.subr.bf16.mxu0 %v2109
    %2285 = vmatpush1.bf16.msra.mxu0 %v2108
    %2286 = vmatprep.subr.bf16.mxu0 %v2113
    %2287 = vmatpush1.bf16.msra.mxu0 %v2112
    %2288 = vmatprep.subr.bf16.mxu0 %v2117
    %2289 = vmatpush1.bf16.msra.mxu0 %v2116
    %2290 = vmatprep.subr.bf16.mxu0 %v2121
    %2291 = vmatpush1.bf16.msra.mxu0 %v2120
    %2292 = vmatprep.subr.bf16.mxu0 %v2125
    %2293 = vmatpush1.bf16.msra.mxu0 %v2124
    %2294 = vmatprep.subr.bf16.mxu0 %v2129
    %2295 = vmatpush1.bf16.msra.mxu0 %v2128
    %2296 = vmatprep.subr.bf16.mxu0 %v2133
    %2297 = vmatpush1.bf16.msra.mxu0 %v2132
    %2298 = vmatprep.subr.bf16.mxu0 %v2137
    %2299 = vmatpush1.bf16.msra.mxu0 %v2136
    %2300 = vmatprep.subr.bf16.mxu0 0
    %2301 = vmatpush1.bf16.msra.mxu0 0
    %2302 = vmatprep.subr.bf16.mxu0 0
    %2303 = vmatpush1.bf16.msra.mxu0 0
    %2304 = vmatprep.subr.bf16.mxu0 0
    %2305 = vmatpush1.bf16.msra.mxu0 0
    %2306 = vmatprep.subr.bf16.mxu0 0
    %2307 = vmatpush1.bf16.msra.mxu0 0
    %2308 = vmatprep.subr.bf16.mxu0 0
    %2309 = vmatpush1.bf16.msra.mxu0 0
    %2310 = vmatprep.subr.bf16.mxu0 0
    %2311 = vmatpush1.bf16.msra.mxu0 0
    %2312 = vmatprep.subr.bf16.mxu0 0
    %2313 = vmatpush1.bf16.msra.mxu0 0
    %2314 = vmatprep.subr.bf16.mxu0 0
    %2315 = vmatpush1.bf16.msra.mxu0 0
    %2316 = vmatprep.mubr.bf16.mxu0 0
    %2317 = vmatmul.mubr.bf16.gmra.mrb[0].mxu0 %v2282
    %v2318 = vpop.f32.mrb[0].mxu0
    %v2319 = vadd.f32 0.0, %v2318
    %v2320 = vpop.f32.mrb[0].mxu0
    %v2321 = vadd.f32 0.0, %v2320
    %v2322 = vpop.f32.mrb[0].mxu0
    %v2323 = vpop.f32.mrb[0].mxu0
    %2324 = vdwg.mxu0
    %2325 = vmatprep.subr.bf16.mxu0 %v2111
    %2326 = vmatpush1.bf16.msra.mxu0 %v2110
    %2327 = vmatprep.subr.bf16.mxu0 %v2115
    %2328 = vmatpush1.bf16.msra.mxu0 %v2114
    %2329 = vmatprep.subr.bf16.mxu0 %v2119
    %2330 = vmatpush1.bf16.msra.mxu0 %v2118
    %2331 = vmatprep.subr.bf16.mxu0 %v2123
    %2332 = vmatpush1.bf16.msra.mxu0 %v2122
    %2333 = vmatprep.subr.bf16.mxu0 %v2127
    %2334 = vmatpush1.bf16.msra.mxu0 %v2126
    %2335 = vmatprep.subr.bf16.mxu0 %v2131
    %2336 = vmatpush1.bf16.msra.mxu0 %v2130
    %2337 = vmatprep.subr.bf16.mxu0 %v2135
    %2338 = vmatpush1.bf16.msra.mxu0 %v2134
    %2339 = vmatprep.subr.bf16.mxu0 %v2139
    %2340 = vmatpush1.bf16.msra.mxu0 %v2138
    %2341 = vmatprep.subr.bf16.mxu0 0
    %2342 = vmatpush1.bf16.msra.mxu0 0
    %2343 = vmatprep.subr.bf16.mxu0 0
    %2344 = vmatpush1.bf16.msra.mxu0 0
    %2345 = vmatprep.subr.bf16.mxu0 0
    %2346 = vmatpush1.bf16.msra.mxu0 0
    %2347 = vmatprep.subr.bf16.mxu0 0
    %2348 = vmatpush1.bf16.msra.mxu0 0
    %2349 = vmatprep.subr.bf16.mxu0 0
    %2350 = vmatpush1.bf16.msra.mxu0 0
    %2351 = vmatprep.subr.bf16.mxu0 0
    %2352 = vmatpush1.bf16.msra.mxu0 0
    %2353 = vmatprep.subr.bf16.mxu0 0
    %2354 = vmatpush1.bf16.msra.mxu0 0
    %2355 = vmatprep.subr.bf16.mxu0 0
    %2356 = vmatpush1.bf16.msra.mxu0 0
    %2357 = vmatprep.mubr.bf16.mxu0 0
    %2358 = vmatmul.mubr.bf16.gmra.mrb[0].mxu0 %v2282
    %v2359 = vpop.f32.mrb[0].mxu0
    %v2360 = vadd.f32 0.0, %v2359
    %v2361 = vpop.f32.mrb[0].mxu0
    %v2362 = vadd.f32 0.0, %v2361
    %v2363 = vpop.f32.mrb[0].mxu0
    %v2364 = vpop.f32.mrb[0].mxu0
    %2365 = vdwg.mxu0
    %v2366 = vadd.f32 %v1965, %v2319
    %v2367 = vadd.f32 %v1967, %v2321
    %v2368 = vadd.f32 %v2006, %v2360
    %v2369 = vadd.f32 %v2008, %v2362
    %v2370 = vxor.u32 %v2366, 2147483648
    %v2371 = vmul.f32 %v2370, 1.442695
    %v2372 = vpow.pop %v2371
    %v2373 = vadd.f32 %v2372, 1.0
    %v2374 = vrcp.pop %v2373
    %v2375 = vmul.f32 1.0, %v2374
    %v2376 = vxor.u32 %v2367, 2147483648
    %v2377 = vmul.f32 %v2376, 1.442695
    %v2378 = vpow.pop %v2377
    %v2379 = vadd.f32 %v2378, 1.0
    %v2380 = vrcp.pop %v2379
    %v2381 = vmul.f32 1.0, %v2380
    %v2382 = vtanh.pop %v2368
    %v2383 = vxor.u32 %v2369, 2147483648
    %v2384 = vmul.f32 %v2383, 1.442695
    %v2385 = vpow.pop %v2384
    %v2386 = vadd.f32 %v2385, 1.0
    %v2387 = vrcp.pop %v2386
    %v2388 = vmul.f32 1.0, %v2387
    %v2389 = vmul.f32 %v2381, %v2279
    %v2390 = vmul.f32 %v2375, %v2382
    %v2391 = vadd.f32 %v2389, %v2390
    %v2392 = vtanh.pop %v2391
    %v2393 = vmul.f32 %v2388, %v2392
    %v2394 = vpack.c.bf16 %v2393, %v2393
    %s2395 = scalar_lea.vmem %s16, 4
    %2396 = vst [vmem:[%s2395] sm:$0xf] %v2394
    %2397 = vmatprep.subr.bf16.mxu0 %v2109
    %2398 = vmatpush1.bf16.msra.mxu0 %v2108
    %2399 = vmatprep.subr.bf16.mxu0 %v2113
    %2400 = vmatpush1.bf16.msra.mxu0 %v2112
    %2401 = vmatprep.subr.bf16.mxu0 %v2117
    %2402 = vmatpush1.bf16.msra.mxu0 %v2116
    %2403 = vmatprep.subr.bf16.mxu0 %v2121
    %2404 = vmatpush1.bf16.msra.mxu0 %v2120
    %2405 = vmatprep.subr.bf16.mxu0 %v2125
    %2406 = vmatpush1.bf16.msra.mxu0 %v2124
    %2407 = vmatprep.subr.bf16.mxu0 %v2129
    %2408 = vmatpush1.bf16.msra.mxu0 %v2128
    %2409 = vmatprep.subr.bf16.mxu0 %v2133
    %2410 = vmatpush1.bf16.msra.mxu0 %v2132
    %2411 = vmatprep.subr.bf16.mxu0 %v2137
    %2412 = vmatpush1.bf16.msra.mxu0 %v2136
    %2413 = vmatprep.subr.bf16.mxu0 0
    %2414 = vmatpush1.bf16.msra.mxu0 0
    %2415 = vmatprep.subr.bf16.mxu0 0
    %2416 = vmatpush1.bf16.msra.mxu0 0
    %2417 = vmatprep.subr.bf16.mxu0 0
    %2418 = vmatpush1.bf16.msra.mxu0 0
    %2419 = vmatprep.subr.bf16.mxu0 0
    %2420 = vmatpush1.bf16.msra.mxu0 0
    %2421 = vmatprep.subr.bf16.mxu0 0
    %2422 = vmatpush1.bf16.msra.mxu0 0
    %2423 = vmatprep.subr.bf16.mxu0 0
    %2424 = vmatpush1.bf16.msra.mxu0 0
    %2425 = vmatprep.subr.bf16.mxu0 0
    %2426 = vmatpush1.bf16.msra.mxu0 0
    %2427 = vmatprep.subr.bf16.mxu0 0
    %2428 = vmatpush1.bf16.msra.mxu0 0
    %2429 = vmatprep.mubr.bf16.mxu0 0
    %2430 = vmatmul.mubr.bf16.gmra.mrb[0].mxu0 %v2394
    %v2431 = vpop.f32.mrb[0].mxu0
    %v2432 = vadd.f32 0.0, %v2431
    %v2433 = vpop.f32.mrb[0].mxu0
    %v2434 = vadd.f32 0.0, %v2433
    %v2435 = vpop.f32.mrb[0].mxu0
    %v2436 = vpop.f32.mrb[0].mxu0
    %2437 = vdwg.mxu0
    %2438 = vmatprep.subr.bf16.mxu0 %v2111
    %2439 = vmatpush1.bf16.msra.mxu0 %v2110
    %2440 = vmatprep.subr.bf16.mxu0 %v2115
    %2441 = vmatpush1.bf16.msra.mxu0 %v2114
    %2442 = vmatprep.subr.bf16.mxu0 %v2119
    %2443 = vmatpush1.bf16.msra.mxu0 %v2118
    %2444 = vmatprep.subr.bf16.mxu0 %v2123
    %2445 = vmatpush1.bf16.msra.mxu0 %v2122
    %2446 = vmatprep.subr.bf16.mxu0 %v2127
    %2447 = vmatpush1.bf16.msra.mxu0 %v2126
    %2448 = vmatprep.subr.bf16.mxu0 %v2131
    %2449 = vmatpush1.bf16.msra.mxu0 %v2130
    %2450 = vmatprep.subr.bf16.mxu0 %v2135
    %2451 = vmatpush1.bf16.msra.mxu0 %v2134
    %2452 = vmatprep.subr.bf16.mxu0 %v2139
    %2453 = vmatpush1.bf16.msra.mxu0 %v2138
    %2454 = vmatprep.subr.bf16.mxu0 0
    %2455 = vmatpush1.bf16.msra.mxu0 0
    %2456 = vmatprep.subr.bf16.mxu0 0
    %2457 = vmatpush1.bf16.msra.mxu0 0
    %2458 = vmatprep.subr.bf16.mxu0 0
    %2459 = vmatpush1.bf16.msra.mxu0 0
    %2460 = vmatprep.subr.bf16.mxu0 0
    %2461 = vmatpush1.bf16.msra.mxu0 0
    %2462 = vmatprep.subr.bf16.mxu0 0
    %2463 = vmatpush1.bf16.msra.mxu0 0
    %2464 = vmatprep.subr.bf16.mxu0 0
    %2465 = vmatpush1.bf16.msra.mxu0 0
    %2466 = vmatprep.subr.bf16.mxu0 0
    %2467 = vmatpush1.bf16.msra.mxu0 0
    %2468 = vmatprep.subr.bf16.mxu0 0
    %2469 = vmatpush1.bf16.msra.mxu0 0
    %2470 = vmatprep.mubr.bf16.mxu0 0
    %2471 = vmatmul.mubr.bf16.gmra.mrb[0].mxu0 %v2394
    %v2472 = vpop.f32.mrb[0].mxu0
    %v2473 = vadd.f32 0.0, %v2472
    %v2474 = vpop.f32.mrb[0].mxu0
    %v2475 = vadd.f32 0.0, %v2474
    %v2476 = vpop.f32.mrb[0].mxu0
    %v2477 = vpop.f32.mrb[0].mxu0
    %2478 = vdwg.mxu0
    %v2479 = vadd.f32 %v1965, %v2432
    %v2480 = vadd.f32 %v1967, %v2434
    %v2481 = vadd.f32 %v2006, %v2473
    %v2482 = vadd.f32 %v2008, %v2475
    %v2483 = vxor.u32 %v2479, 2147483648
    %v2484 = vmul.f32 %v2483, 1.442695
    %v2485 = vpow.pop %v2484
    %v2486 = vadd.f32 %v2485, 1.0
    %v2487 = vrcp.pop %v2486
    %v2488 = vmul.f32 1.0, %v2487
    %v2489 = vxor.u32 %v2480, 2147483648
    %v2490 = vmul.f32 %v2489, 1.442695
    %v2491 = vpow.pop %v2490
    %v2492 = vadd.f32 %v2491, 1.0
    %v2493 = vrcp.pop %v2492
    %v2494 = vmul.f32 1.0, %v2493
    %v2495 = vtanh.pop %v2481
    %v2496 = vxor.u32 %v2482, 2147483648
    %v2497 = vmul.f32 %v2496, 1.442695
    %v2498 = vpow.pop %v2497
    %v2499 = vadd.f32 %v2498, 1.0
    %v2500 = vrcp.pop %v2499
    %v2501 = vmul.f32 1.0, %v2500
    %v2502 = vmul.f32 %v2494, %v2391
    %v2503 = vmul.f32 %v2488, %v2495
    %v2504 = vadd.f32 %v2502, %v2503
    %v2505 = vtanh.pop %v2504
    %v2506 = vmul.f32 %v2501, %v2505
    %v2507 = vpack.c.bf16 %v2506, %v2506
    %s2508 = scalar_lea.vmem %s16, 8
    %2509 = vst [vmem:[%s2508] sm:$0xf] %v2507
    %2510 = vmatprep.subr.bf16.mxu0 %v2109
    %2511 = vmatpush1.bf16.msra.mxu0 %v2108
    %2512 = vmatprep.subr.bf16.mxu0 %v2113
    %2513 = vmatpush1.bf16.msra.mxu0 %v2112
    %2514 = vmatprep.subr.bf16.mxu0 %v2117
    %2515 = vmatpush1.bf16.msra.mxu0 %v2116
    %2516 = vmatprep.subr.bf16.mxu0 %v2121
    %2517 = vmatpush1.bf16.msra.mxu0 %v2120
    %2518 = vmatprep.subr.bf16.mxu0 %v2125
    %2519 = vmatpush1.bf16.msra.mxu0 %v2124
    %2520 = vmatprep.subr.bf16.mxu0 %v2129
    %2521 = vmatpush1.bf16.msra.mxu0 %v2128
    %2522 = vmatprep.subr.bf16.mxu0 %v2133
    %2523 = vmatpush1.bf16.msra.mxu0 %v2132
    %2524 = vmatprep.subr.bf16.mxu0 %v2137
    %2525 = vmatpush1.bf16.msra.mxu0 %v2136
    %2526 = vmatprep.subr.bf16.mxu0 0
    %2527 = vmatpush1.bf16.msra.mxu0 0
    %2528 = vmatprep.subr.bf16.mxu0 0
    %2529 = vmatpush1.bf16.msra.mxu0 0
    %2530 = vmatprep.subr.bf16.mxu0 0
    %2531 = vmatpush1.bf16.msra.mxu0 0
    %2532 = vmatprep.subr.bf16.mxu0 0
    %2533 = vmatpush1.bf16.msra.mxu0 0
    %2534 = vmatprep.subr.bf16.mxu0 0
    %2535 = vmatpush1.bf16.msra.mxu0 0
    %2536 = vmatprep.subr.bf16.mxu0 0
    %2537 = vmatpush1.bf16.msra.mxu0 0
    %2538 = vmatprep.subr.bf16.mxu0 0
    %2539 = vmatpush1.bf16.msra.mxu0 0
    %2540 = vmatprep.subr.bf16.mxu0 0
    %2541 = vmatpush1.bf16.msra.mxu0 0
    %2542 = vmatprep.mubr.bf16.mxu0 0
    %2543 = vmatmul.mubr.bf16.gmra.mrb[0].mxu0 %v2507
    %v2544 = vpop.f32.mrb[0].mxu0
    %v2545 = vadd.f32 0.0, %v2544
    %v2546 = vpop.f32.mrb[0].mxu0
    %v2547 = vadd.f32 0.0, %v2546
    %v2548 = vpop.f32.mrb[0].mxu0
    %v2549 = vpop.f32.mrb[0].mxu0
    %2550 = vdwg.mxu0
    %2551 = vmatprep.subr.bf16.mxu0 %v2111
    %2552 = vmatpush1.bf16.msra.mxu0 %v2110
    %2553 = vmatprep.subr.bf16.mxu0 %v2115
    %2554 = vmatpush1.bf16.msra.mxu0 %v2114
    %2555 = vmatprep.subr.bf16.mxu0 %v2119
    %2556 = vmatpush1.bf16.msra.mxu0 %v2118
    %2557 = vmatprep.subr.bf16.mxu0 %v2123
    %2558 = vmatpush1.bf16.msra.mxu0 %v2122
    %2559 = vmatprep.subr.bf16.mxu0 %v2127
    %2560 = vmatpush1.bf16.msra.mxu0 %v2126
    %2561 = vmatprep.subr.bf16.mxu0 %v2131
    %2562 = vmatpush1.bf16.msra.mxu0 %v2130
    %2563 = vmatprep.subr.bf16.mxu0 %v2135
    %2564 = vmatpush1.bf16.msra.mxu0 %v2134
    %2565 = vmatprep.subr.bf16.mxu0 %v2139
    %2566 = vmatpush1.bf16.msra.mxu0 %v2138
    %2567 = vmatprep.subr.bf16.mxu0 0
    %2568 = vmatpush1.bf16.msra.mxu0 0
    %2569 = vmatprep.subr.bf16.mxu0 0
    %2570 = vmatpush1.bf16.msra.mxu0 0
    %2571 = vmatprep.subr.bf16.mxu0 0
    %2572 = vmatpush1.bf16.msra.mxu0 0
    %2573 = vmatprep.subr.bf16.mxu0 0
    %2574 = vmatpush1.bf16.msra.mxu0 0
    %2575 = vmatprep.subr.bf16.mxu0 0
    %2576 = vmatpush1.bf16.msra.mxu0 0
    %2577 = vmatprep.subr.bf16.mxu0 0
    %2578 = vmatpush1.bf16.msra.mxu0 0
    %2579 = vmatprep.subr.bf16.mxu0 0
    %2580 = vmatpush1.bf16.msra.mxu0 0
    %2581 = vmatprep.subr.bf16.mxu0 0
    %2582 = vmatpush1.bf16.msra.mxu0 0
    %2583 = vmatprep.mubr.bf16.mxu0 0
    %2584 = vmatmul.mubr.bf16.gmra.mrb[0].mxu0 %v2507
    %v2585 = vpop.f32.mrb[0].mxu0
    %v2586 = vadd.f32 0.0, %v2585
    %v2587 = vpop.f32.mrb[0].mxu0
    %v2588 = vadd.f32 0.0, %v2587
    %v2589 = vpop.f32.mrb[0].mxu0
    %v2590 = vpop.f32.mrb[0].mxu0
    %2591 = vdwg.mxu0
    %v2592 = vadd.f32 %v1965, %v2545
    %v2593 = vadd.f32 %v1967, %v2547
    %v2594 = vadd.f32 %v2006, %v2586
    %v2595 = vadd.f32 %v2008, %v2588
    %v2596 = vxor.u32 %v2592, 2147483648
    %v2597 = vmul.f32 %v2596, 1.442695
    %v2598 = vpow.pop %v2597
    %v2599 = vadd.f32 %v2598, 1.0
    %v2600 = vrcp.pop %v2599
    %v2601 = vmul.f32 1.0, %v2600
    %v2602 = vxor.u32 %v2593, 2147483648
    %v2603 = vmul.f32 %v2602, 1.442695
    %v2604 = vpow.pop %v2603
    %v2605 = vadd.f32 %v2604, 1.0
    %v2606 = vrcp.pop %v2605
    %v2607 = vmul.f32 1.0, %v2606
    %v2608 = vtanh.pop %v2594
    %v2609 = vxor.u32 %v2595, 2147483648
    %v2610 = vmul.f32 %v2609, 1.442695
    %v2611 = vpow.pop %v2610
    %v2612 = vadd.f32 %v2611, 1.0
    %v2613 = vrcp.pop %v2612
    %v2614 = vmul.f32 1.0, %v2613
    %v2615 = vmul.f32 %v2607, %v2504
    %v2616 = vmul.f32 %v2601, %v2608
    %v2617 = vadd.f32 %v2615, %v2616
    %v2618 = vtanh.pop %v2617
    %v2619 = vmul.f32 %v2614, %v2618
    %v2620 = vpack.c.bf16 %v2619, %v2619
    %s2621 = scalar_lea.vmem %s16, 12
    %2622 = vst [vmem:[%s2621] sm:$0xf] %v2620
    %2623 = vmatprep.subr.bf16.mxu0 %v2109
    %2624 = vmatpush1.bf16.msra.mxu0 %v2108
    %2625 = vmatprep.subr.bf16.mxu0 %v2113
    %2626 = vmatpush1.bf16.msra.mxu0 %v2112
    %2627 = vmatprep.subr.bf16.mxu0 %v2117
    %2628 = vmatpush1.bf16.msra.mxu0 %v2116
    %2629 = vmatprep.subr.bf16.mxu0 %v2121
    %2630 = vmatpush1.bf16.msra.mxu0 %v2120
    %2631 = vmatprep.subr.bf16.mxu0 %v2125
    %2632 = vmatpush1.bf16.msra.mxu0 %v2124
    %2633 = vmatprep.subr.bf16.mxu0 %v2129
    %2634 = vmatpush1.bf16.msra.mxu0 %v2128
    %2635 = vmatprep.subr.bf16.mxu0 %v2133
    %2636 = vmatpush1.bf16.msra.mxu0 %v2132
    %2637 = vmatprep.subr.bf16.mxu0 %v2137
    %2638 = vmatpush1.bf16.msra.mxu0 %v2136
    %2639 = vmatprep.subr.bf16.mxu0 0
    %2640 = vmatpush1.bf16.msra.mxu0 0
    %2641 = vmatprep.subr.bf16.mxu0 0
    %2642 = vmatpush1.bf16.msra.mxu0 0
    %2643 = vmatprep.subr.bf16.mxu0 0
    %2644 = vmatpush1.bf16.msra.mxu0 0
    %2645 = vmatprep.subr.bf16.mxu0 0
    %2646 = vmatpush1.bf16.msra.mxu0 0
    %2647 = vmatprep.subr.bf16.mxu0 0
    %2648 = vmatpush1.bf16.msra.mxu0 0
    %2649 = vmatprep.subr.bf16.mxu0 0
    %2650 = vmatpush1.bf16.msra.mxu0 0
    %2651 = vmatprep.subr.bf16.mxu0 0
    %2652 = vmatpush1.bf16.msra.mxu0 0
    %2653 = vmatprep.subr.bf16.mxu0 0
    %2654 = vmatpush1.bf16.msra.mxu0 0
    %2655 = vmatprep.mubr.bf16.mxu0 0
    %2656 = vmatmul.mubr.bf16.gmra.mrb[0].mxu0 %v2620
    %v2657 = vpop.f32.mrb[0].mxu0
    %v2658 = vadd.f32 0.0, %v2657
    %v2659 = vpop.f32.mrb[0].mxu0
    %v2660 = vadd.f32 0.0, %v2659
    %v2661 = vpop.f32.mrb[0].mxu0
    %v2662 = vpop.f32.mrb[0].mxu0
    %2663 = vdwg.mxu0
    %2664 = vmatprep.subr.bf16.mxu0 %v2111
    %2665 = vmatpush1.bf16.msra.mxu0 %v2110
    %2666 = vmatprep.subr.bf16.mxu0 %v2115
    %2667 = vmatpush1.bf16.msra.mxu0 %v2114
    %2668 = vmatprep.subr.bf16.mxu0 %v2119
    %2669 = vmatpush1.bf16.msra.mxu0 %v2118
    %2670 = vmatprep.subr.bf16.mxu0 %v2123
    %2671 = vmatpush1.bf16.msra.mxu0 %v2122
    %2672 = vmatprep.subr.bf16.mxu0 %v2127
    %2673 = vmatpush1.bf16.msra.mxu0 %v2126
    %2674 = vmatprep.subr.bf16.mxu0 %v2131
    %2675 = vmatpush1.bf16.msra.mxu0 %v2130
    %2676 = vmatprep.subr.bf16.mxu0 %v2135
    %2677 = vmatpush1.bf16.msra.mxu0 %v2134
    %2678 = vmatprep.subr.bf16.mxu0 %v2139
    %2679 = vmatpush1.bf16.msra.mxu0 %v2138
    %2680 = vmatprep.subr.bf16.mxu0 0
    %2681 = vmatpush1.bf16.msra.mxu0 0
    %2682 = vmatprep.subr.bf16.mxu0 0
    %2683 = vmatpush1.bf16.msra.mxu0 0
    %2684 = vmatprep.subr.bf16.mxu0 0
    %2685 = vmatpush1.bf16.msra.mxu0 0
    %2686 = vmatprep.subr.bf16.mxu0 0
    %2687 = vmatpush1.bf16.msra.mxu0 0
    %2688 = vmatprep.subr.bf16.mxu0 0
    %2689 = vmatpush1.bf16.msra.mxu0 0
    %2690 = vmatprep.subr.bf16.mxu0 0
    %2691 = vmatpush1.bf16.msra.mxu0 0
    %2692 = vmatprep.subr.bf16.mxu0 0
    %2693 = vmatpush1.bf16.msra.mxu0 0
    %2694 = vmatprep.subr.bf16.mxu0 0
    %2695 = vmatpush1.bf16.msra.mxu0 0
    %2696 = vmatprep.mubr.bf16.mxu0 0
    %2697 = vmatmul.mubr.bf16.gmra.mrb[0].mxu0 %v2620
    %v2698 = vpop.f32.mrb[0].mxu0
    %v2699 = vadd.f32 0.0, %v2698
    %v2700 = vpop.f32.mrb[0].mxu0
    %v2701 = vadd.f32 0.0, %v2700
    %v2702 = vpop.f32.mrb[0].mxu0
    %v2703 = vpop.f32.mrb[0].mxu0
    %2704 = vdwg.mxu0
    %v2705 = vadd.f32 %v1965, %v2658
    %v2706 = vadd.f32 %v1967, %v2660
    %v2707 = vadd.f32 %v2006, %v2699
    %v2708 = vadd.f32 %v2008, %v2701
    %v2709 = vxor.u32 %v2705, 2147483648
    %v2710 = vmul.f32 %v2709, 1.442695
    %v2711 = vpow.pop %v2710
    %v2712 = vadd.f32 %v2711, 1.0
    %v2713 = vrcp.pop %v2712
    %v2714 = vmul.f32 1.0, %v2713
    %v2715 = vxor.u32 %v2706, 2147483648
    %v2716 = vmul.f32 %v2715, 1.442695
    %v2717 = vpow.pop %v2716
    %v2718 = vadd.f32 %v2717, 1.0
    %v2719 = vrcp.pop %v2718
    %v2720 = vmul.f32 1.0, %v2719
    %v2721 = vtanh.pop %v2707
    %v2722 = vxor.u32 %v2708, 2147483648
    %v2723 = vmul.f32 %v2722, 1.442695
    %v2724 = vpow.pop %v2723
    %v2725 = vadd.f32 %v2724, 1.0
    %v2726 = vrcp.pop %v2725
    %v2727 = vmul.f32 1.0, %v2726
    %v2728 = vmul.f32 %v2720, %v2617
    %v2729 = vmul.f32 %v2714, %v2721
    %v2730 = vadd.f32 %v2728, %v2729
    %v2731 = vtanh.pop %v2730
    %v2732 = vmul.f32 %v2727, %v2731
    %v2733 = vpack.c.bf16 %v2732, %v2732
    %s2734 = scalar_lea.vmem %s16, 16
    %2735 = vst [vmem:[%s2734] sm:$0xf] %v2733
    %2736 = vmatprep.subr.bf16.mxu0 %v2109
    %2737 = vmatpush1.bf16.msra.mxu0 %v2108
    %2738 = vmatprep.subr.bf16.mxu0 %v2113
    %2739 = vmatpush1.bf16.msra.mxu0 %v2112
    %2740 = vmatprep.subr.bf16.mxu0 %v2117
    %2741 = vmatpush1.bf16.msra.mxu0 %v2116
    %2742 = vmatprep.subr.bf16.mxu0 %v2121
    %2743 = vmatpush1.bf16.msra.mxu0 %v2120
    %2744 = vmatprep.subr.bf16.mxu0 %v2125
    %2745 = vmatpush1.bf16.msra.mxu0 %v2124
    %2746 = vmatprep.subr.bf16.mxu0 %v2129
    %2747 = vmatpush1.bf16.msra.mxu0 %v2128
    %2748 = vmatprep.subr.bf16.mxu0 %v2133
    %2749 = vmatpush1.bf16.msra.mxu0 %v2132
    %2750 = vmatprep.subr.bf16.mxu0 %v2137
    %2751 = vmatpush1.bf16.msra.mxu0 %v2136
    %2752 = vmatprep.subr.bf16.mxu0 0
    %2753 = vmatpush1.bf16.msra.mxu0 0
    %2754 = vmatprep.subr.bf16.mxu0 0
    %2755 = vmatpush1.bf16.msra.mxu0 0
    %2756 = vmatprep.subr.bf16.mxu0 0
    %2757 = vmatpush1.bf16.msra.mxu0 0
    %2758 = vmatprep.subr.bf16.mxu0 0
    %2759 = vmatpush1.bf16.msra.mxu0 0
    %2760 = vmatprep.subr.bf16.mxu0 0
    %2761 = vmatpush1.bf16.msra.mxu0 0
    %2762 = vmatprep.subr.bf16.mxu0 0
    %2763 = vmatpush1.bf16.msra.mxu0 0
    %2764 = vmatprep.subr.bf16.mxu0 0
    %2765 = vmatpush1.bf16.msra.mxu0 0
    %2766 = vmatprep.subr.bf16.mxu0 0
    %2767 = vmatpush1.bf16.msra.mxu0 0
    %2768 = vmatprep.mubr.bf16.mxu0 0
    %2769 = vmatmul.mubr.bf16.gmra.mrb[0].mxu0 %v2733
    %v2770 = vpop.f32.mrb[0].mxu0
    %v2771 = vadd.f32 0.0, %v2770
    %v2772 = vpop.f32.mrb[0].mxu0
    %v2773 = vadd.f32 0.0, %v2772
    %v2774 = vpop.f32.mrb[0].mxu0
    %v2775 = vpop.f32.mrb[0].mxu0
    %2776 = vdwg.mxu0
    %2777 = vmatprep.subr.bf16.mxu0 %v2111
    %2778 = vmatpush1.bf16.msra.mxu0 %v2110
    %2779 = vmatprep.subr.bf16.mxu0 %v2115
    %2780 = vmatpush1.bf16.msra.mxu0 %v2114
    %2781 = vmatprep.subr.bf16.mxu0 %v2119
    %2782 = vmatpush1.bf16.msra.mxu0 %v2118
    %2783 = vmatprep.subr.bf16.mxu0 %v2123
    %2784 = vmatpush1.bf16.msra.mxu0 %v2122
    %2785 = vmatprep.subr.bf16.mxu0 %v2127
    %2786 = vmatpush1.bf16.msra.mxu0 %v2126
    %2787 = vmatprep.subr.bf16.mxu0 %v2131
    %2788 = vmatpush1.bf16.msra.mxu0 %v2130
    %2789 = vmatprep.subr.bf16.mxu0 %v2135
    %2790 = vmatpush1.bf16.msra.mxu0 %v2134
    %2791 = vmatprep.subr.bf16.mxu0 %v2139
    %2792 = vmatpush1.bf16.msra.mxu0 %v2138
    %2793 = vmatprep.subr.bf16.mxu0 0
    %2794 = vmatpush1.bf16.msra.mxu0 0
    %2795 = vmatprep.subr.bf16.mxu0 0
    %2796 = vmatpush1.bf16.msra.mxu0 0
    %2797 = vmatprep.subr.bf16.mxu0 0
    %2798 = vmatpush1.bf16.msra.mxu0 0
    %2799 = vmatprep.subr.bf16.mxu0 0
    %2800 = vmatpush1.bf16.msra.mxu0 0
    %2801 = vmatprep.subr.bf16.mxu0 0
    %2802 = vmatpush1.bf16.msra.mxu0 0
    %2803 = vmatprep.subr.bf16.mxu0 0
    %2804 = vmatpush1.bf16.msra.mxu0 0
    %2805 = vmatprep.subr.bf16.mxu0 0
    %2806 = vmatpush1.bf16.msra.mxu0 0
    %2807 = vmatprep.subr.bf16.mxu0 0
    %2808 = vmatpush1.bf16.msra.mxu0 0
    %2809 = vmatprep.mubr.bf16.mxu0 0
    %2810 = vmatmul.mubr.bf16.gmra.mrb[0].mxu0 %v2733
    %v2811 = vpop.f32.mrb[0].mxu0
    %v2812 = vadd.f32 0.0, %v2811
    %v2813 = vpop.f32.mrb[0].mxu0
    %v2814 = vadd.f32 0.0, %v2813
    %v2815 = vpop.f32.mrb[0].mxu0
    %v2816 = vpop.f32.mrb[0].mxu0
    %2817 = vdwg.mxu0
    %v2818 = vadd.f32 %v1965, %v2771
    %v2819 = vadd.f32 %v1967, %v2773
    %v2820 = vadd.f32 %v2006, %v2812
    %v2821 = vadd.f32 %v2008, %v2814
    %v2822 = vxor.u32 %v2818, 2147483648
    %v2823 = vmul.f32 %v2822, 1.442695
    %v2824 = vpow.pop %v2823
    %v2825 = vadd.f32 %v2824, 1.0
    %v2826 = vrcp.pop %v2825
    %v2827 = vmul.f32 1.0, %v2826
    %v2828 = vxor.u32 %v2819, 2147483648
    %v2829 = vmul.f32 %v2828, 1.442695
    %v2830 = vpow.pop %v2829
    %v2831 = vadd.f32 %v2830, 1.0
    %v2832 = vrcp.pop %v2831
    %v2833 = vmul.f32 1.0, %v2832
    %v2834 = vtanh.pop %v2820
    %v2835 = vxor.u32 %v2821, 2147483648
    %v2836 = vmul.f32 %v2835, 1.442695
    %v2837 = vpow.pop %v2836
    %v2838 = vadd.f32 %v2837, 1.0
    %v2839 = vrcp.pop %v2838
    %v2840 = vmul.f32 1.0, %v2839
    %v2841 = vmul.f32 %v2833, %v2730
    %v2842 = vmul.f32 %v2827, %v2834
    %v2843 = vadd.f32 %v2841, %v2842
    %v2844 = vtanh.pop %v2843
    %v2845 = vmul.f32 %v2840, %v2844
    %v2846 = vpack.c.bf16 %v2845, %v2845
    %s2847 = scalar_lea.vmem %s16, 20
    %2848 = vst [vmem:[%s2847] sm:$0xf] %v2846
    %2849 = vmatprep.subr.bf16.mxu0 %v2109
    %2850 = vmatpush1.bf16.msra.mxu0 %v2108
    %2851 = vmatprep.subr.bf16.mxu0 %v2113
    %2852 = vmatpush1.bf16.msra.mxu0 %v2112
    %2853 = vmatprep.subr.bf16.mxu0 %v2117
    %2854 = vmatpush1.bf16.msra.mxu0 %v2116
    %2855 = vmatprep.subr.bf16.mxu0 %v2121
    %2856 = vmatpush1.bf16.msra.mxu0 %v2120
    %2857 = vmatprep.subr.bf16.mxu0 %v2125
    %2858 = vmatpush1.bf16.msra.mxu0 %v2124
    %2859 = vmatprep.subr.bf16.mxu0 %v2129
    %2860 = vmatpush1.bf16.msra.mxu0 %v2128
    %2861 = vmatprep.subr.bf16.mxu0 %v2133
    %2862 = vmatpush1.bf16.msra.mxu0 %v2132
    %2863 = vmatprep.subr.bf16.mxu0 %v2137
    %2864 = vmatpush1.bf16.msra.mxu0 %v2136
    %2865 = vmatprep.subr.bf16.mxu0 0
    %2866 = vmatpush1.bf16.msra.mxu0 0
    %2867 = vmatprep.subr.bf16.mxu0 0
    %2868 = vmatpush1.bf16.msra.mxu0 0
    %2869 = vmatprep.subr.bf16.mxu0 0
    %2870 = vmatpush1.bf16.msra.mxu0 0
    %2871 = vmatprep.subr.bf16.mxu0 0
    %2872 = vmatpush1.bf16.msra.mxu0 0
    %2873 = vmatprep.subr.bf16.mxu0 0
    %2874 = vmatpush1.bf16.msra.mxu0 0
    %2875 = vmatprep.subr.bf16.mxu0 0
    %2876 = vmatpush1.bf16.msra.mxu0 0
    %2877 = vmatprep.subr.bf16.mxu0 0
    %2878 = vmatpush1.bf16.msra.mxu0 0
    %2879 = vmatprep.subr.bf16.mxu0 0
    %2880 = vmatpush1.bf16.msra.mxu0 0
    %2881 = vmatprep.mubr.bf16.mxu0 0
    %2882 = vmatmul.mubr.bf16.gmra.mrb[0].mxu0 %v2846
    %v2883 = vpop.f32.mrb[0].mxu0
    %v2884 = vadd.f32 0.0, %v2883
    %v2885 = vpop.f32.mrb[0].mxu0
    %v2886 = vadd.f32 0.0, %v2885
    %v2887 = vpop.f32.mrb[0].mxu0
    %v2888 = vpop.f32.mrb[0].mxu0
    %2889 = vdwg.mxu0
    %2890 = vmatprep.subr.bf16.mxu0 %v2111
    %2891 = vmatpush1.bf16.msra.mxu0 %v2110
    %2892 = vmatprep.subr.bf16.mxu0 %v2115
    %2893 = vmatpush1.bf16.msra.mxu0 %v2114
    %2894 = vmatprep.subr.bf16.mxu0 %v2119
    %2895 = vmatpush1.bf16.msra.mxu0 %v2118
    %2896 = vmatprep.subr.bf16.mxu0 %v2123
    %2897 = vmatpush1.bf16.msra.mxu0 %v2122
    %2898 = vmatprep.subr.bf16.mxu0 %v2127
    %2899 = vmatpush1.bf16.msra.mxu0 %v2126
    %2900 = vmatprep.subr.bf16.mxu0 %v2131
    %2901 = vmatpush1.bf16.msra.mxu0 %v2130
    %2902 = vmatprep.subr.bf16.mxu0 %v2135
    %2903 = vmatpush1.bf16.msra.mxu0 %v2134
    %2904 = vmatprep.subr.bf16.mxu0 %v2139
    %2905 = vmatpush1.bf16.msra.mxu0 %v2138
    %2906 = vmatprep.subr.bf16.mxu0 0
    %2907 = vmatpush1.bf16.msra.mxu0 0
    %2908 = vmatprep.subr.bf16.mxu0 0
    %2909 = vmatpush1.bf16.msra.mxu0 0
    %2910 = vmatprep.subr.bf16.mxu0 0
    %2911 = vmatpush1.bf16.msra.mxu0 0
    %2912 = vmatprep.subr.bf16.mxu0 0
    %2913 = vmatpush1.bf16.msra.mxu0 0
    %2914 = vmatprep.subr.bf16.mxu0 0
    %2915 = vmatpush1.bf16.msra.mxu0 0
    %2916 = vmatprep.subr.bf16.mxu0 0
    %2917 = vmatpush1.bf16.msra.mxu0 0
    %2918 = vmatprep.subr.bf16.mxu0 0
    %2919 = vmatpush1.bf16.msra.mxu0 0
    %2920 = vmatprep.subr.bf16.mxu0 0
    %2921 = vmatpush1.bf16.msra.mxu0 0
    %2922 = vmatprep.mubr.bf16.mxu0 0
    %2923 = vmatmul.mubr.bf16.gmra.mrb[0].mxu0 %v2846
    %v2924 = vpop.f32.mrb[0].mxu0
    %v2925 = vadd.f32 0.0, %v2924
    %v2926 = vpop.f32.mrb[0].mxu0
    %v2927 = vadd.f32 0.0, %v2926
    %v2928 = vpop.f32.mrb[0].mxu0
    %v2929 = vpop.f32.mrb[0].mxu0
    %2930 = vdwg.mxu0
    %v2931 = vadd.f32 %v1965, %v2884
    %v2932 = vadd.f32 %v1967, %v2886
    %v2933 = vadd.f32 %v2006, %v2925
    %v2934 = vadd.f32 %v2008, %v2927
    %v2935 = vxor.u32 %v2931, 2147483648
    %v2936 = vmul.f32 %v2935, 1.442695
    %v2937 = vpow.pop %v2936
    %v2938 = vadd.f32 %v2937, 1.0
    %v2939 = vrcp.pop %v2938
    %v2940 = vmul.f32 1.0, %v2939
    %v2941 = vxor.u32 %v2932, 2147483648
    %v2942 = vmul.f32 %v2941, 1.442695
    %v2943 = vpow.pop %v2942
    %v2944 = vadd.f32 %v2943, 1.0
    %v2945 = vrcp.pop %v2944
    %v2946 = vmul.f32 1.0, %v2945
    %v2947 = vtanh.pop %v2933
    %v2948 = vxor.u32 %v2934, 2147483648
    %v2949 = vmul.f32 %v2948, 1.442695
    %v2950 = vpow.pop %v2949
    %v2951 = vadd.f32 %v2950, 1.0
    %v2952 = vrcp.pop %v2951
    %v2953 = vmul.f32 1.0, %v2952
    %v2954 = vmul.f32 %v2946, %v2843
    %v2955 = vmul.f32 %v2940, %v2947
    %v2956 = vadd.f32 %v2954, %v2955
    %v2957 = vtanh.pop %v2956
    %v2958 = vmul.f32 %v2953, %v2957
    %v2959 = vpack.c.bf16 %v2958, %v2958
    %s2960 = scalar_lea.vmem %s16, 24
    %2961 = vst [vmem:[%s2960] sm:$0xf] %v2959
    %2962 = vmatprep.subr.bf16.mxu0 %v2109
    %2963 = vmatpush1.bf16.msra.mxu0 %v2108
    %2964 = vmatprep.subr.bf16.mxu0 %v2113
    %2965 = vmatpush1.bf16.msra.mxu0 %v2112
    %2966 = vmatprep.subr.bf16.mxu0 %v2117
    %2967 = vmatpush1.bf16.msra.mxu0 %v2116
    %2968 = vmatprep.subr.bf16.mxu0 %v2121
    %2969 = vmatpush1.bf16.msra.mxu0 %v2120
    %2970 = vmatprep.subr.bf16.mxu0 %v2125
    %2971 = vmatpush1.bf16.msra.mxu0 %v2124
    %2972 = vmatprep.subr.bf16.mxu0 %v2129
    %2973 = vmatpush1.bf16.msra.mxu0 %v2128
    %2974 = vmatprep.subr.bf16.mxu0 %v2133
    %2975 = vmatpush1.bf16.msra.mxu0 %v2132
    %2976 = vmatprep.subr.bf16.mxu0 %v2137
    %2977 = vmatpush1.bf16.msra.mxu0 %v2136
    %2978 = vmatprep.subr.bf16.mxu0 0
    %2979 = vmatpush1.bf16.msra.mxu0 0
    %2980 = vmatprep.subr.bf16.mxu0 0
    %2981 = vmatpush1.bf16.msra.mxu0 0
    %2982 = vmatprep.subr.bf16.mxu0 0
    %2983 = vmatpush1.bf16.msra.mxu0 0
    %2984 = vmatprep.subr.bf16.mxu0 0
    %2985 = vmatpush1.bf16.msra.mxu0 0
    %2986 = vmatprep.subr.bf16.mxu0 0
    %2987 = vmatpush1.bf16.msra.mxu0 0
    %2988 = vmatprep.subr.bf16.mxu0 0
    %2989 = vmatpush1.bf16.msra.mxu0 0
    %2990 = vmatprep.subr.bf16.mxu0 0
    %2991 = vmatpush1.bf16.msra.mxu0 0
    %2992 = vmatprep.subr.bf16.mxu0 0
    %2993 = vmatpush1.bf16.msra.mxu0 0
    %2994 = vmatprep.mubr.bf16.mxu0 0
    %2995 = vmatmul.mubr.bf16.gmra.mrb[0].mxu0 %v2959
    %v2996 = vpop.f32.mrb[0].mxu0
    %v2997 = vadd.f32 0.0, %v2996
    %v2998 = vpop.f32.mrb[0].mxu0
    %v2999 = vadd.f32 0.0, %v2998
    %v3000 = vpop.f32.mrb[0].mxu0
    %v3001 = vpop.f32.mrb[0].mxu0
    %3002 = vdwg.mxu0
    %3003 = vmatprep.subr.bf16.mxu0 %v2111
    %3004 = vmatpush1.bf16.msra.mxu0 %v2110
    %3005 = vmatprep.subr.bf16.mxu0 %v2115
    %3006 = vmatpush1.bf16.msra.mxu0 %v2114
    %3007 = vmatprep.subr.bf16.mxu0 %v2119
    %3008 = vmatpush1.bf16.msra.mxu0 %v2118
    %3009 = vmatprep.subr.bf16.mxu0 %v2123
    %3010 = vmatpush1.bf16.msra.mxu0 %v2122
    %3011 = vmatprep.subr.bf16.mxu0 %v2127
    %3012 = vmatpush1.bf16.msra.mxu0 %v2126
    %3013 = vmatprep.subr.bf16.mxu0 %v2131
    %3014 = vmatpush1.bf16.msra.mxu0 %v2130
    %3015 = vmatprep.subr.bf16.mxu0 %v2135
    %3016 = vmatpush1.bf16.msra.mxu0 %v2134
    %3017 = vmatprep.subr.bf16.mxu0 %v2139
    %3018 = vmatpush1.bf16.msra.mxu0 %v2138
    %3019 = vmatprep.subr.bf16.mxu0 0
    %3020 = vmatpush1.bf16.msra.mxu0 0
    %3021 = vmatprep.subr.bf16.mxu0 0
    %3022 = vmatpush1.bf16.msra.mxu0 0
    %3023 = vmatprep.subr.bf16.mxu0 0
    %3024 = vmatpush1.bf16.msra.mxu0 0
    %3025 = vmatprep.subr.bf16.mxu0 0
    %3026 = vmatpush1.bf16.msra.mxu0 0
    %3027 = vmatprep.subr.bf16.mxu0 0
    %3028 = vmatpush1.bf16.msra.mxu0 0
    %3029 = vmatprep.subr.bf16.mxu0 0
    %3030 = vmatpush1.bf16.msra.mxu0 0
    %3031 = vmatprep.subr.bf16.mxu0 0
    %3032 = vmatpush1.bf16.msra.mxu0 0
    %3033 = vmatprep.subr.bf16.mxu0 0
    %3034 = vmatpush1.bf16.msra.mxu0 0
    %3035 = vmatprep.mubr.bf16.mxu0 0
    %3036 = vmatmul.mubr.bf16.gmra.mrb[0].mxu0 %v2959
    %v3037 = vpop.f32.mrb[0].mxu0
    %v3038 = vadd.f32 0.0, %v3037
    %v3039 = vpop.f32.mrb[0].mxu0
    %v3040 = vadd.f32 0.0, %v3039
    %v3041 = vpop.f32.mrb[0].mxu0
    %v3042 = vpop.f32.mrb[0].mxu0
    %3043 = vdwg.mxu0
    %v3044 = vadd.f32 %v1965, %v2997
    %v3045 = vadd.f32 %v1967, %v2999
    %v3046 = vadd.f32 %v2006, %v3038
    %v3047 = vadd.f32 %v2008, %v3040
    %v3048 = vxor.u32 %v3044, 2147483648
    %v3049 = vmul.f32 %v3048, 1.442695
    %v3050 = vpow.pop %v3049
    %v3051 = vadd.f32 %v3050, 1.0
    %v3052 = vrcp.pop %v3051
    %v3053 = vmul.f32 1.0, %v3052
    %v3054 = vxor.u32 %v3045, 2147483648
    %v3055 = vmul.f32 %v3054, 1.442695
    %v3056 = vpow.pop %v3055
    %v3057 = vadd.f32 %v3056, 1.0
    %v3058 = vrcp.pop %v3057
    %v3059 = vmul.f32 1.0, %v3058
    %v3060 = vtanh.pop %v3046
    %v3061 = vxor.u32 %v3047, 2147483648
    %v3062 = vmul.f32 %v3061, 1.442695
    %v3063 = vpow.pop %v3062
    %v3064 = vadd.f32 %v3063, 1.0
    %v3065 = vrcp.pop %v3064
    %v3066 = vmul.f32 1.0, %v3065
    %v3067 = vmul.f32 %v3059, %v2956
    %v3068 = vmul.f32 %v3053, %v3060
    %v3069 = vadd.f32 %v3067, %v3068
    %v3070 = vtanh.pop %v3069
    %v3071 = vmul.f32 %v3066, %v3070
    %v3072 = vpack.c.bf16 %v3071, %v3071
    %s3073 = scalar_lea.vmem %s16, 28
    %3074 = vst [vmem:[%s3073] sm:$0xf] %v3072
    // Predicated region
    $region58: #{forward.2} parent=1 // pred_check
      _
    $region59: #{forward.2} parent=1 // pred_check_branch
      %3076 = sbr.rel (0) target = $region61
    $region60: #{forward.2} parent=1 // pred_region
      %s3078 = ssub.s32 128, 128
      %3079 = vsyncadd [#allocation3], %s3078
      %s3081 = sshll.u32 [#allocation2], 4
      %s3082 = int_to_ptr.vmem [resolvable:$true] %s3081
      %3084 = dma.vmem_to_hbm [thread:$0]  %s3082, 128, %s14, [#allocation3]
    $region61: #{forward.2} parent=1 // pred_fallthru
      _
    // Predicated region
    $region62: #{forward.2} parent=1 // pred_check
      _
    $region63: #{forward.2} parent=1 // pred_check_branch
      %3086 = sbr.rel (0) target = $region65
    $region64: #{forward.2} parent=1 // pred_region
      %s3088 = ssub.s32 128, 128
      %3089 = vsyncadd [#allocation5], %s3088
      %s3091 = sshll.u32 [#allocation4], 4
      %s3092 = int_to_ptr.vmem [resolvable:$true] %s3091
      %3094 = dma.vmem_to_hbm [thread:$0]  %s3092, 128, %s15, [#allocation5]
    $region65: #{forward.2} parent=1 // pred_fallthru
      _
    // Predicated region
    $region66: #{forward.2} parent=1 // pred_check
      _
    $region67: #{forward.2} parent=1 // pred_check_branch
      %3096 = sbr.rel (0) target = $region69
    $region68: #{forward.2} parent=1 // pred_region
      _
    $region69: #{forward.2} parent=1 // pred_fallthru
      _
    // Predicated region
    $region70: #{forward.2} parent=1 // pred_check
      _
    $region71: #{forward.2} parent=1 // pred_check_branch
      %3098 = sbr.rel (0) target = $region73
    $region72: #{forward.2} parent=1 // pred_region
      %3099 = dma.done [#allocation3], 128
    $region73: #{forward.2} parent=1 // pred_fallthru
      _
    // Predicated region
    $region74: #{forward.2} parent=1 // pred_check
      _
    $region75: #{forward.2} parent=1 // pred_check_branch
      %3101 = sbr.rel (0) target = $region77
    $region76: #{forward.2} parent=1 // pred_region
      %3102 = dma.done [#allocation5], 128
    $region77: #{forward.2} parent=1 // pred_fallthru
      _
    // Predicated region
    $region78: #{forward.2} parent=1 // pred_check
      _
    $region79: #{forward.2} parent=1 // pred_check_branch
      %3104 = sbr.rel (0) target = $region81
    $region80: #{forward.2} parent=1 // pred_region
      _
    $region81: #{forward.2} parent=1 // pred_fallthru
      _
    %3105 = vsyncpa [#allocation3], 1
    %3106 = vsyncpa [#allocation5], 1

</llo_original>
